<compile_context>
chip_gen: v7x
topology: tpu7x:2x2x1
jax: 0.10.0
libtpu: 0.0.40
codegen_flags: <defaults>
</compile_context>

<pallas_src>
import jax
import jax.numpy as jnp
from jax.experimental import pallas as pl
from jax.experimental.pallas import tpu as pltpu


# ----------------------------------------------------------------------------
# Encoder kernel: full one-layer AGCRN encoder for a single batch element.
# grid = (B,).
#
# Weight layout (prepared in glue):
#   agx : (N*Din, 2*N*H)  supports folded into x-side gate weights
#   agh : (N*H,   2*N*H)  supports folded into h-side gate weights
#   aux : (N*Din,   N*H)  supports folded into x-side candidate weights
#   auh : (N*H,     N*H)  supports folded into h-side candidate weights
# Gate output columns are ordered (gate g in {z, r}, node n, unit h) so the z/r
# split is a 128-aligned static lane slice of the flat (1, 2*N*H) pre-activation.
# ----------------------------------------------------------------------------
def encoder_kernel(xf_ref, agx_ref, aux_ref, agh_ref, auh_ref, bg_ref, bu_ref,
                   hout_ref):
    T = xf_ref.shape[1]
    NH = hout_ref.shape[2]                       # N * H

    # x-side graph-conv contributions for ALL timesteps, hoisted out of the
    # recurrence: one MXU matmul per gate path (biases folded in here too).
    x_flat = xf_ref[0]                                                # (T, N*Din)
    gx = jnp.dot(x_flat, agx_ref[...],
                 preferred_element_type=jnp.float32) + bg_ref[...]    # (T, 2*N*H)
    ux = jnp.dot(x_flat, aux_ref[...],
                 preferred_element_type=jnp.float32) + bu_ref[...]    # (T, N*H)

    agh = agh_ref[...]                                                # (N*H, 2*N*H)
    auh = auh_ref[...]                                                # (N*H, N*H)

    # recurrence: zr = sigmoid(gconv([x_t, h]));  hc = tanh(gconv([x_t, z*h]))
    #             h  = r*h + (1-r)*hc
    h = jnp.zeros((1, NH), jnp.float32)          # init_hidden_state (zeros)
    for t in range(T):                           # T is small & static: unroll
        pre_g = gx[t:t + 1, :] + jnp.dot(h, agh,
                                         preferred_element_type=jnp.float32)
        zr = jax.nn.sigmoid(pre_g)               # (1, 2*N*H)
        z = zr[:, :NH]
        r = zr[:, NH:]
        pre_u = ux[t:t + 1, :] + jnp.dot(z * h, auh,
                                         preferred_element_type=jnp.float32)
        hc = jnp.tanh(pre_u)
        h = r * h + (1.0 - r) * hc

    hout_ref[0] = h                              # single writeback per batch


def run_encoder(xf, agx_mat, aux_mat, agh_mat, auh_mat, bg_flat, bu_flat, *, N, H):
    B, T, NDin = xf.shape
    NH = N * H
    full2 = lambda b: (0, 0)
    return pl.pallas_call(
        encoder_kernel,
        out_shape=jax.ShapeDtypeStruct((B, 1, NH), jnp.float32),
        grid=(B,),
        in_specs=[
            pl.BlockSpec((1, T, NDin), lambda b: (b, 0, 0)),   # x, flattened (node,feat)
            pl.BlockSpec((NDin, 2 * NH), full2),               # agx
            pl.BlockSpec((NDin, NH), full2),                   # aux
            pl.BlockSpec((NH, 2 * NH), full2),                 # agh
            pl.BlockSpec((NH, NH), full2),                     # auh
            pl.BlockSpec((1, 2 * NH), full2),                  # gate bias (flat)
            pl.BlockSpec((1, NH), full2),                      # candidate bias (flat)
        ],
        out_specs=pl.BlockSpec((1, 1, NH), lambda b: (b, 0, 0)),
        compiler_params=pltpu.CompilerParams(
            dimension_semantics=("parallel",)),                # batch across TCs on v7x
    )(xf, agx_mat, aux_mat, agh_mat, auh_mat, bg_flat, bu_flat)


# ----------------------------------------------------------------------------
# Head kernel: end_conv (1x1xH conv == matmul over hidden dim) + BatchNorm2d
# (training mode: batch statistics over B*N, gamma=1, beta=0, eps=1e-5).
# Kept as a separate call so the batch axis of the encoder stays core-parallel.
# ----------------------------------------------------------------------------
def head_kernel(hl_ref, w_ref, b_ref, out_ref):
    conv = jnp.dot(hl_ref[...], w_ref[...],
                   preferred_element_type=jnp.float32) + b_ref[...]    # (B*N, Cout)
    mean = jnp.mean(conv, axis=0, keepdims=True)
    var = jnp.mean((conv - mean) ** 2, axis=0, keepdims=True)          # biased var
    out_ref[...] = (conv - mean) * jax.lax.rsqrt(var + 1e-5)


def run_head(h_last_flat, conv_w, conv_b):
    BN_, H = h_last_flat.shape
    Cout = conv_w.shape[1]
    return pl.pallas_call(
        head_kernel,
        out_shape=jax.ShapeDtypeStruct((BN_, Cout), jnp.float32),
        grid=(1,),
        in_specs=[
            pl.BlockSpec((BN_, H), lambda i: (0, 0)),
            pl.BlockSpec((H, Cout), lambda i: (0, 0)),
            pl.BlockSpec((1, Cout), lambda i: (0, 0)),
        ],
        out_specs=pl.BlockSpec((BN_, Cout), lambda i: (0, 0)),
    )(h_last_flat, conv_w, conv_b)


# ----------------------------------------------------------------------------
# Full forward. Parameter setup (supports, per-node weights, support-folding,
# gate-column reordering) is data-independent glue in plain JAX.
# ----------------------------------------------------------------------------
def agcrn_forward(source, params, *, cheb_k, horizon, output_dim):
    hp = jax.lax.Precision.HIGHEST
    E = params["node_embeddings"]                                      # (N, D_e)
    B, T, N, Din = source.shape
    H = params["bias_pool_update"].shape[1]
    NH = N * H

    # supports = chebyshev stack of softmax(relu(E E^T))
    S = jax.nn.softmax(jax.nn.relu(E @ E.T), axis=1)
    support_set = [jnp.eye(N, dtype=jnp.float32), S]
    for _ in range(2, cheb_k):
        support_set.append(2.0 * S @ support_set[-1] - support_set[-2])
    supports = jnp.stack(support_set, axis=0)                          # (K, N, N)

    # per-node weights / biases
    Wg = jnp.einsum('nd,dkio->nkio', E, params["weights_pool_gate"], precision=hp)
    bg = E @ params["bias_pool_gate"]                                  # (N, 2H)
    Wu = jnp.einsum('nd,dkio->nkio', E, params["weights_pool_update"], precision=hp)
    bu = E @ params["bias_pool_update"]                                # (N, H)

    # Fold supports into the weights:  A[n,m,c,o] = sum_k S[k,n,m] * W[n,k,c,o]
    def fold(W, c_lo, c_hi):
        return jnp.einsum('knm,nkco->nmco', supports, W[:, :, c_lo:c_hi, :],
                          precision=hp)

    Agx = fold(Wg, 0, Din)            # (N, N, Din, 2H)  x-side gate
    Agh = fold(Wg, Din, Din + H)      # (N, N, H,   2H)  h-side gate
    Aux = fold(Wu, 0, Din)            # (N, N, Din, H)   x-side candidate
    Auh = fold(Wu, Din, Din + H)      # (N, N, H,   H)   h-side candidate

    def gate_mat(A):   # rows (m, c), cols (g, n, oh)  -> (M*C, 2*N*H)
        Nn, M, C, _ = A.shape
        return A.reshape(Nn, M, C, 2, H).transpose(1, 2, 3, 0, 4).reshape(
            M * C, 2 * Nn * H)

    def upd_mat(A):    # rows (m, c), cols (n, oh)     -> (M*C, N*H)
        Nn, M, C, _ = A.shape
        return A.transpose(1, 2, 0, 3).reshape(M * C, Nn * H)

    agx_mat = gate_mat(Agx)                                            # (N*Din, 2NH)
    agh_mat = gate_mat(Agh)                                            # (N*H,   2NH)
    aux_mat = upd_mat(Aux)                                             # (N*Din, NH)
    auh_mat = upd_mat(Auh)                                             # (N*H,   NH)
    bg_flat = bg.reshape(N, 2, H).transpose(1, 0, 2).reshape(1, 2 * NH)
    bu_flat = bu.reshape(1, NH)

    xf = source.astype(jnp.float32).reshape(B, T, N * Din)

    # encoder (Pallas, sequential recurrence inside the kernel, batch-parallel grid)
    h_last = run_encoder(xf, agx_mat, aux_mat, agh_mat, auh_mat, bg_flat, bu_flat,
                         N=N, H=H)                                     # (B, 1, N*H)

    # head: end_conv + batchnorm (Pallas)
    conv_w = params["end_conv_w"].reshape(-1, H).T                     # (H, Cout)
    conv_b = params["end_conv_b"].reshape(1, -1)                       # (1, Cout)
    y = run_head(h_last.reshape(B * N, H), conv_w, conv_b)             # (B*N, Cout)

    # final squeeze/reshape/permute (glue)
    out = y.reshape(B, N, horizon, output_dim).transpose(0, 2, 1, 3)   # (B, horizon, N, out)
    return out


# ----------------------------------------------------------------------------
# Pure-JAX reference (mirrors the PyTorch module semantics)
# ----------------------------------------------------------------------------
def reference_forward(source, params, *, cheb_k, horizon, output_dim):
    hp = jax.lax.Precision.HIGHEST
    E = params["node_embeddings"]
    B, T, N, Din = source.shape
    H = params["bias_pool_update"].shape[1]

    S = jax.nn.softmax(jax.nn.relu(E @ E.T), axis=1)
    support_set = [jnp.eye(N, dtype=jnp.float32), S]
    for _ in range(2, cheb_k):
        support_set.append(2.0 * S @ support_set[-1] - support_set[-2])
    supports = jnp.stack(support_set, axis=0)

    Wg = jnp.einsum('nd,dkio->nkio', E, params["weights_pool_gate"], precision=hp)
    bg = E @ params["bias_pool_gate"]
    Wu = jnp.einsum('nd,dkio->nkio', E, params["weights_pool_update"], precision=hp)
    bu = E @ params["bias_pool_update"]

    def gconv(xin, W, b):
        x_g = jnp.einsum('knm,bmc->bknc', supports, xin, precision=hp)
        x_g = jnp.transpose(x_g, (0, 2, 1, 3))
        return jnp.einsum('bnkc,nkco->bno', x_g, W, precision=hp) + b

    h = jnp.zeros((B, N, H), jnp.float32)
    for t in range(T):
        x_t = source[:, t]
        zr = jax.nn.sigmoid(gconv(jnp.concatenate([x_t, h], axis=-1), Wg, bg))
        z, r = zr[..., :H], zr[..., H:]
        hc = jnp.tanh(gconv(jnp.concatenate([x_t, z * h], axis=-1), Wu, bu))
        h = r * h + (1.0 - r) * hc

    conv_w = params["end_conv_w"].reshape(-1, H)
    conv = jnp.einsum('bnh,oh->bon', h, conv_w, precision=hp) \
           + params["end_conv_b"][None, :, None]                        # (B, Cout, N)
    mean = jnp.mean(conv, axis=(0, 2), keepdims=True)
    var = jnp.mean((conv - mean) ** 2, axis=(0, 2), keepdims=True)
    y = (conv - mean) / jnp.sqrt(var + 1e-5)
    return y.reshape(B, horizon, output_dim, N).transpose(0, 1, 3, 2)


if __name__ == "__main__":
    key = jax.random.PRNGKey(0)
    B, T, N, Din = 2, 8, 8, 2        # batch, seq, num_nodes, input_dim
    H = 32                           # rnn_units
    embed_dim = 8
    cheb_k = 2
    horizon = 3
    output_dim = 2
    Cout = horizon * output_dim
    C = Din + H                      # AVWGCN input dim inside the cell

    ks = jax.random.split(key, 8)
    params = {
        "node_embeddings":     0.5 * jax.random.normal(ks[0], (N, embed_dim), jnp.float32),
        "weights_pool_gate":   0.3 * jax.random.normal(ks[1], (embed_dim, cheb_k, C, 2 * H), jnp.float32),
        "bias_pool_gate":      0.3 * jax.random.normal(ks[2], (embed_dim, 2 * H), jnp.float32),
        "weights_pool_update": 0.3 * jax.random.normal(ks[3], (embed_dim, cheb_k, C, H), jnp.float32),
        "bias_pool_update":    0.3 * jax.random.normal(ks[4], (embed_dim, H), jnp.float32),
        "end_conv_w":          0.3 * jax.random.normal(ks[5], (Cout, 1, 1, H), jnp.float32),
        "end_conv_b":          0.1 * jax.random.normal(ks[6], (Cout,), jnp.float32),
    }
    source = jax.random.normal(ks[7], (B, T, N, Din), jnp.float32)

    out = agcrn_forward(source, params, cheb_k=cheb_k,
                        horizon=horizon, output_dim=output_dim)
    out = jax.block_until_ready(out)
    assert out.shape == (B, horizon, N, output_dim), out.shape

    ref = jax.block_until_ready(
        reference_forward(source, params, cheb_k=cheb_k,
                          horizon=horizon, output_dim=output_dim))
    # Tolerance accounts for default MXU precision (bf16 passes) in the in-kernel
    # matmuls vs the HIGHEST-precision reference, amplified slightly by BatchNorm.
    max_err = float(jnp.max(jnp.abs(out - ref)))
    if not (max_err < 2e-2):
        raise AssertionError(f"kernel/reference mismatch: max_err={max_err}")

    print("KERNEL_OK")
</pallas_src>

<mosaic_0001>
module attributes {stable_mosaic.version = 11 : i64} {
  func.func @encoder_kernel(%arg0: i32, %arg1: memref<1x8x16xf32, #tpu.memory_space<vmem>>, %arg2: memref<16x512xf32, #tpu.memory_space<vmem>>, %arg3: memref<16x256xf32, #tpu.memory_space<vmem>>, %arg4: memref<256x512xf32, #tpu.memory_space<vmem>>, %arg5: memref<256x256xf32, #tpu.memory_space<vmem>>, %arg6: memref<1x512xf32, #tpu.memory_space<vmem>>, %arg7: memref<1x256xf32, #tpu.memory_space<vmem>>, %arg8: memref<1x1x256xf32, #tpu.memory_space<vmem>>) attributes {dimension_semantics = [#tpu.dimension_semantics<parallel>], iteration_bounds = array<i64: 2>, scalar_prefetch = 0 : i64, scratch_operands = 0 : i64, tpu.core_type = #tpu.core_type<tc>, window_params = [{transform_indices = @transform_0, window_bounds = array<i64: 1, 8, 16>}, {pipeline_mode = #tpu.pipeline_mode<synchronous>, transform_indices = @transform_1, window_bounds = array<i64: 16, 512>}, {pipeline_mode = #tpu.pipeline_mode<synchronous>, transform_indices = @transform_2, window_bounds = array<i64: 16, 256>}, {pipeline_mode = #tpu.pipeline_mode<synchronous>, transform_indices = @transform_3, window_bounds = array<i64: 256, 512>}, {pipeline_mode = #tpu.pipeline_mode<synchronous>, transform_indices = @transform_4, window_bounds = array<i64: 256, 256>}, {pipeline_mode = #tpu.pipeline_mode<synchronous>, transform_indices = @transform_5, window_bounds = array<i64: 1, 512>}, {pipeline_mode = #tpu.pipeline_mode<synchronous>, transform_indices = @transform_6, window_bounds = array<i64: 1, 256>}, {transform_indices = @transform_7, window_bounds = array<i64: 1, 1, 256>}]} {
    %c0 = arith.constant 0 : index
    %c0_0 = arith.constant 0 : index
    %c0_1 = arith.constant 0 : index
    %0 = vector.load %arg1[%c0, %c0_0, %c0_1] : memref<1x8x16xf32, #tpu.memory_space<vmem>>, vector<1x8x16xf32>
    %1 = vector.shape_cast %0 : vector<1x8x16xf32> to vector<8x16xf32>
    %c0_2 = arith.constant 0 : index
    %c0_3 = arith.constant 0 : index
    %2 = vector.load %arg2[%c0_2, %c0_3] : memref<16x512xf32, #tpu.memory_space<vmem>>, vector<16x512xf32>
    %cst = arith.constant dense<0.000000e+00> : vector<8x512xf32>
    %3 = tpu.matmul %1, %2, %cst {dimension_numbers = #tpu.dot_dimension_numbers<[1], [0], [0], [1], [0, 0, 1, 1], [], []>} : vector<8x16xf32>, vector<16x512xf32>, vector<8x512xf32> -> vector<8x512xf32>
    %c0_4 = arith.constant 0 : index
    %c0_5 = arith.constant 0 : index
    %4 = vector.load %arg6[%c0_4, %c0_5] : memref<1x512xf32, #tpu.memory_space<vmem>>, vector<1x512xf32>
    %5 = vector.broadcast %4 : vector<1x512xf32> to vector<8x512xf32>
    %6 = arith.addf %3, %5 : vector<8x512xf32>
    %c0_6 = arith.constant 0 : index
    %c0_7 = arith.constant 0 : index
    %7 = vector.load %arg3[%c0_6, %c0_7] : memref<16x256xf32, #tpu.memory_space<vmem>>, vector<16x256xf32>
    %cst_8 = arith.constant dense<0.000000e+00> : vector<8x256xf32>
    %8 = tpu.matmul %1, %7, %cst_8 {dimension_numbers = #tpu.dot_dimension_numbers<[1], [0], [0], [1], [0, 0, 1, 1], [], []>} : vector<8x16xf32>, vector<16x256xf32>, vector<8x256xf32> -> vector<8x256xf32>
    %c0_9 = arith.constant 0 : index
    %c0_10 = arith.constant 0 : index
    %9 = vector.load %arg7[%c0_9, %c0_10] : memref<1x256xf32, #tpu.memory_space<vmem>>, vector<1x256xf32>
    %10 = vector.broadcast %9 : vector<1x256xf32> to vector<8x256xf32>
    %11 = arith.addf %8, %10 : vector<8x256xf32>
    %c0_11 = arith.constant 0 : index
    %c0_12 = arith.constant 0 : index
    %12 = vector.load %arg4[%c0_11, %c0_12] : memref<256x512xf32, #tpu.memory_space<vmem>>, vector<256x512xf32>
    %c0_13 = arith.constant 0 : index
    %c0_14 = arith.constant 0 : index
    %13 = vector.load %arg5[%c0_13, %c0_14] : memref<256x256xf32, #tpu.memory_space<vmem>>, vector<256x256xf32>
    %cst_15 = arith.constant 0.000000e+00 : f32
    %14 = vector.broadcast %cst_15 : f32 to vector<1x256xf32>
    %15 = vector.extract_strided_slice %6 {offsets = [0, 0], sizes = [1, 512], strides = [1, 1]} : vector<8x512xf32> to vector<1x512xf32>
    %cst_16 = arith.constant dense<0.000000e+00> : vector<1x512xf32>
    %16 = tpu.matmul %14, %12, %cst_16 {dimension_numbers = #tpu.dot_dimension_numbers<[1], [0], [0], [1], [0, 0, 1, 1], [], []>} : vector<1x256xf32>, vector<256x512xf32>, vector<1x512xf32> -> vector<1x512xf32>
    %17 = arith.addf %15, %16 : vector<1x512xf32>
    %18 = arith.negf %17 : vector<1x512xf32>
    %19 = math.exp %18 : vector<1x512xf32>
    %cst_17 = arith.constant 1.000000e+00 : f32
    %20 = vector.broadcast %cst_17 : f32 to vector<1x512xf32>
    %21 = arith.addf %20, %19 : vector<1x512xf32>
    %22 = arith.divf %20, %21 : vector<1x512xf32>
    %23 = vector.extract_strided_slice %22 {offsets = [0, 0], sizes = [1, 256], strides = [1, 1]} : vector<1x512xf32> to vector<1x256xf32>
    %24 = vector.extract_strided_slice %22 {offsets = [0, 256], sizes = [1, 256], strides = [1, 1]} : vector<1x512xf32> to vector<1x256xf32>
    %25 = vector.extract_strided_slice %11 {offsets = [0, 0], sizes = [1, 256], strides = [1, 1]} : vector<8x256xf32> to vector<1x256xf32>
    %26 = arith.mulf %23, %14 : vector<1x256xf32>
    %cst_18 = arith.constant dense<0.000000e+00> : vector<1x256xf32>
    %27 = tpu.matmul %26, %13, %cst_18 {dimension_numbers = #tpu.dot_dimension_numbers<[1], [0], [0], [1], [0, 0, 1, 1], [], []>} : vector<1x256xf32>, vector<256x256xf32>, vector<1x256xf32> -> vector<1x256xf32>
    %28 = arith.addf %25, %27 : vector<1x256xf32>
    %29 = math.tanh %28 : vector<1x256xf32>
    %30 = arith.mulf %24, %14 : vector<1x256xf32>
    %cst_19 = arith.constant 1.000000e+00 : f32
    %31 = vector.broadcast %cst_19 : f32 to vector<1x256xf32>
    %32 = arith.subf %31, %24 : vector<1x256xf32>
    %33 = arith.mulf %32, %29 : vector<1x256xf32>
    %34 = arith.addf %30, %33 : vector<1x256xf32>
    %35 = vector.extract_strided_slice %6 {offsets = [1, 0], sizes = [1, 512], strides = [1, 1]} : vector<8x512xf32> to vector<1x512xf32>
    %cst_20 = arith.constant dense<0.000000e+00> : vector<1x512xf32>
    %36 = tpu.matmul %34, %12, %cst_20 {dimension_numbers = #tpu.dot_dimension_numbers<[1], [0], [0], [1], [0, 0, 1, 1], [], []>} : vector<1x256xf32>, vector<256x512xf32>, vector<1x512xf32> -> vector<1x512xf32>
    %37 = arith.addf %35, %36 : vector<1x512xf32>
    %38 = arith.negf %37 : vector<1x512xf32>
    %39 = math.exp %38 : vector<1x512xf32>
    %cst_21 = arith.constant 1.000000e+00 : f32
    %40 = vector.broadcast %cst_21 : f32 to vector<1x512xf32>
    %41 = arith.addf %40, %39 : vector<1x512xf32>
    %42 = arith.divf %40, %41 : vector<1x512xf32>
    %43 = vector.extract_strided_slice %42 {offsets = [0, 0], sizes = [1, 256], strides = [1, 1]} : vector<1x512xf32> to vector<1x256xf32>
    %44 = vector.extract_strided_slice %42 {offsets = [0, 256], sizes = [1, 256], strides = [1, 1]} : vector<1x512xf32> to vector<1x256xf32>
    %45 = vector.extract_strided_slice %11 {offsets = [1, 0], sizes = [1, 256], strides = [1, 1]} : vector<8x256xf32> to vector<1x256xf32>
    %46 = arith.mulf %43, %34 : vector<1x256xf32>
    %cst_22 = arith.constant dense<0.000000e+00> : vector<1x256xf32>
    %47 = tpu.matmul %46, %13, %cst_22 {dimension_numbers = #tpu.dot_dimension_numbers<[1], [0], [0], [1], [0, 0, 1, 1], [], []>} : vector<1x256xf32>, vector<256x256xf32>, vector<1x256xf32> -> vector<1x256xf32>
    %48 = arith.addf %45, %47 : vector<1x256xf32>
    %49 = math.tanh %48 : vector<1x256xf32>
    %50 = arith.mulf %44, %34 : vector<1x256xf32>
    %cst_23 = arith.constant 1.000000e+00 : f32
    %51 = vector.broadcast %cst_23 : f32 to vector<1x256xf32>
    %52 = arith.subf %51, %44 : vector<1x256xf32>
    %53 = arith.mulf %52, %49 : vector<1x256xf32>
    %54 = arith.addf %50, %53 : vector<1x256xf32>
    %55 = vector.extract_strided_slice %6 {offsets = [2, 0], sizes = [1, 512], strides = [1, 1]} : vector<8x512xf32> to vector<1x512xf32>
    %cst_24 = arith.constant dense<0.000000e+00> : vector<1x512xf32>
    %56 = tpu.matmul %54, %12, %cst_24 {dimension_numbers = #tpu.dot_dimension_numbers<[1], [0], [0], [1], [0, 0, 1, 1], [], []>} : vector<1x256xf32>, vector<256x512xf32>, vector<1x512xf32> -> vector<1x512xf32>
    %57 = arith.addf %55, %56 : vector<1x512xf32>
    %58 = arith.negf %57 : vector<1x512xf32>
    %59 = math.exp %58 : vector<1x512xf32>
    %cst_25 = arith.constant 1.000000e+00 : f32
    %60 = vector.broadcast %cst_25 : f32 to vector<1x512xf32>
    %61 = arith.addf %60, %59 : vector<1x512xf32>
    %62 = arith.divf %60, %61 : vector<1x512xf32>
    %63 = vector.extract_strided_slice %62 {offsets = [0, 0], sizes = [1, 256], strides = [1, 1]} : vector<1x512xf32> to vector<1x256xf32>
    %64 = vector.extract_strided_slice %62 {offsets = [0, 256], sizes = [1, 256], strides = [1, 1]} : vector<1x512xf32> to vector<1x256xf32>
    %65 = vector.extract_strided_slice %11 {offsets = [2, 0], sizes = [1, 256], strides = [1, 1]} : vector<8x256xf32> to vector<1x256xf32>
    %66 = arith.mulf %63, %54 : vector<1x256xf32>
    %cst_26 = arith.constant dense<0.000000e+00> : vector<1x256xf32>
    %67 = tpu.matmul %66, %13, %cst_26 {dimension_numbers = #tpu.dot_dimension_numbers<[1], [0], [0], [1], [0, 0, 1, 1], [], []>} : vector<1x256xf32>, vector<256x256xf32>, vector<1x256xf32> -> vector<1x256xf32>
    %68 = arith.addf %65, %67 : vector<1x256xf32>
    %69 = math.tanh %68 : vector<1x256xf32>
    %70 = arith.mulf %64, %54 : vector<1x256xf32>
    %cst_27 = arith.constant 1.000000e+00 : f32
    %71 = vector.broadcast %cst_27 : f32 to vector<1x256xf32>
    %72 = arith.subf %71, %64 : vector<1x256xf32>
    %73 = arith.mulf %72, %69 : vector<1x256xf32>
    %74 = arith.addf %70, %73 : vector<1x256xf32>
    %75 = vector.extract_strided_slice %6 {offsets = [3, 0], sizes = [1, 512], strides = [1, 1]} : vector<8x512xf32> to vector<1x512xf32>
    %cst_28 = arith.constant dense<0.000000e+00> : vector<1x512xf32>
    %76 = tpu.matmul %74, %12, %cst_28 {dimension_numbers = #tpu.dot_dimension_numbers<[1], [0], [0], [1], [0, 0, 1, 1], [], []>} : vector<1x256xf32>, vector<256x512xf32>, vector<1x512xf32> -> vector<1x512xf32>
    %77 = arith.addf %75, %76 : vector<1x512xf32>
    %78 = arith.negf %77 : vector<1x512xf32>
    %79 = math.exp %78 : vector<1x512xf32>
    %cst_29 = arith.constant 1.000000e+00 : f32
    %80 = vector.broadcast %cst_29 : f32 to vector<1x512xf32>
    %81 = arith.addf %80, %79 : vector<1x512xf32>
    %82 = arith.divf %80, %81 : vector<1x512xf32>
    %83 = vector.extract_strided_slice %82 {offsets = [0, 0], sizes = [1, 256], strides = [1, 1]} : vector<1x512xf32> to vector<1x256xf32>
    %84 = vector.extract_strided_slice %82 {offsets = [0, 256], sizes = [1, 256], strides = [1, 1]} : vector<1x512xf32> to vector<1x256xf32>
    %85 = vector.extract_strided_slice %11 {offsets = [3, 0], sizes = [1, 256], strides = [1, 1]} : vector<8x256xf32> to vector<1x256xf32>
    %86 = arith.mulf %83, %74 : vector<1x256xf32>
    %cst_30 = arith.constant dense<0.000000e+00> : vector<1x256xf32>
    %87 = tpu.matmul %86, %13, %cst_30 {dimension_numbers = #tpu.dot_dimension_numbers<[1], [0], [0], [1], [0, 0, 1, 1], [], []>} : vector<1x256xf32>, vector<256x256xf32>, vector<1x256xf32> -> vector<1x256xf32>
    %88 = arith.addf %85, %87 : vector<1x256xf32>
    %89 = math.tanh %88 : vector<1x256xf32>
    %90 = arith.mulf %84, %74 : vector<1x256xf32>
    %cst_31 = arith.constant 1.000000e+00 : f32
    %91 = vector.broadcast %cst_31 : f32 to vector<1x256xf32>
    %92 = arith.subf %91, %84 : vector<1x256xf32>
    %93 = arith.mulf %92, %89 : vector<1x256xf32>
    %94 = arith.addf %90, %93 : vector<1x256xf32>
    %95 = vector.extract_strided_slice %6 {offsets = [4, 0], sizes = [1, 512], strides = [1, 1]} : vector<8x512xf32> to vector<1x512xf32>
    %cst_32 = arith.constant dense<0.000000e+00> : vector<1x512xf32>
    %96 = tpu.matmul %94, %12, %cst_32 {dimension_numbers = #tpu.dot_dimension_numbers<[1], [0], [0], [1], [0, 0, 1, 1], [], []>} : vector<1x256xf32>, vector<256x512xf32>, vector<1x512xf32> -> vector<1x512xf32>
    %97 = arith.addf %95, %96 : vector<1x512xf32>
    %98 = arith.negf %97 : vector<1x512xf32>
    %99 = math.exp %98 : vector<1x512xf32>
    %cst_33 = arith.constant 1.000000e+00 : f32
    %100 = vector.broadcast %cst_33 : f32 to vector<1x512xf32>
    %101 = arith.addf %100, %99 : vector<1x512xf32>
    %102 = arith.divf %100, %101 : vector<1x512xf32>
    %103 = vector.extract_strided_slice %102 {offsets = [0, 0], sizes = [1, 256], strides = [1, 1]} : vector<1x512xf32> to vector<1x256xf32>
    %104 = vector.extract_strided_slice %102 {offsets = [0, 256], sizes = [1, 256], strides = [1, 1]} : vector<1x512xf32> to vector<1x256xf32>
    %105 = vector.extract_strided_slice %11 {offsets = [4, 0], sizes = [1, 256], strides = [1, 1]} : vector<8x256xf32> to vector<1x256xf32>
    %106 = arith.mulf %103, %94 : vector<1x256xf32>
    %cst_34 = arith.constant dense<0.000000e+00> : vector<1x256xf32>
    %107 = tpu.matmul %106, %13, %cst_34 {dimension_numbers = #tpu.dot_dimension_numbers<[1], [0], [0], [1], [0, 0, 1, 1], [], []>} : vector<1x256xf32>, vector<256x256xf32>, vector<1x256xf32> -> vector<1x256xf32>
    %108 = arith.addf %105, %107 : vector<1x256xf32>
    %109 = math.tanh %108 : vector<1x256xf32>
    %110 = arith.mulf %104, %94 : vector<1x256xf32>
    %cst_35 = arith.constant 1.000000e+00 : f32
    %111 = vector.broadcast %cst_35 : f32 to vector<1x256xf32>
    %112 = arith.subf %111, %104 : vector<1x256xf32>
    %113 = arith.mulf %112, %109 : vector<1x256xf32>
    %114 = arith.addf %110, %113 : vector<1x256xf32>
    %115 = vector.extract_strided_slice %6 {offsets = [5, 0], sizes = [1, 512], strides = [1, 1]} : vector<8x512xf32> to vector<1x512xf32>
    %cst_36 = arith.constant dense<0.000000e+00> : vector<1x512xf32>
    %116 = tpu.matmul %114, %12, %cst_36 {dimension_numbers = #tpu.dot_dimension_numbers<[1], [0], [0], [1], [0, 0, 1, 1], [], []>} : vector<1x256xf32>, vector<256x512xf32>, vector<1x512xf32> -> vector<1x512xf32>
    %117 = arith.addf %115, %116 : vector<1x512xf32>
    %118 = arith.negf %117 : vector<1x512xf32>
    %119 = math.exp %118 : vector<1x512xf32>
    %cst_37 = arith.constant 1.000000e+00 : f32
    %120 = vector.broadcast %cst_37 : f32 to vector<1x512xf32>
    %121 = arith.addf %120, %119 : vector<1x512xf32>
    %122 = arith.divf %120, %121 : vector<1x512xf32>
    %123 = vector.extract_strided_slice %122 {offsets = [0, 0], sizes = [1, 256], strides = [1, 1]} : vector<1x512xf32> to vector<1x256xf32>
    %124 = vector.extract_strided_slice %122 {offsets = [0, 256], sizes = [1, 256], strides = [1, 1]} : vector<1x512xf32> to vector<1x256xf32>
    %125 = vector.extract_strided_slice %11 {offsets = [5, 0], sizes = [1, 256], strides = [1, 1]} : vector<8x256xf32> to vector<1x256xf32>
    %126 = arith.mulf %123, %114 : vector<1x256xf32>
    %cst_38 = arith.constant dense<0.000000e+00> : vector<1x256xf32>
    %127 = tpu.matmul %126, %13, %cst_38 {dimension_numbers = #tpu.dot_dimension_numbers<[1], [0], [0], [1], [0, 0, 1, 1], [], []>} : vector<1x256xf32>, vector<256x256xf32>, vector<1x256xf32> -> vector<1x256xf32>
    %128 = arith.addf %125, %127 : vector<1x256xf32>
    %129 = math.tanh %128 : vector<1x256xf32>
    %130 = arith.mulf %124, %114 : vector<1x256xf32>
    %cst_39 = arith.constant 1.000000e+00 : f32
    %131 = vector.broadcast %cst_39 : f32 to vector<1x256xf32>
    %132 = arith.subf %131, %124 : vector<1x256xf32>
    %133 = arith.mulf %132, %129 : vector<1x256xf32>
    %134 = arith.addf %130, %133 : vector<1x256xf32>
    %135 = vector.extract_strided_slice %6 {offsets = [6, 0], sizes = [1, 512], strides = [1, 1]} : vector<8x512xf32> to vector<1x512xf32>
    %cst_40 = arith.constant dense<0.000000e+00> : vector<1x512xf32>
    %136 = tpu.matmul %134, %12, %cst_40 {dimension_numbers = #tpu.dot_dimension_numbers<[1], [0], [0], [1], [0, 0, 1, 1], [], []>} : vector<1x256xf32>, vector<256x512xf32>, vector<1x512xf32> -> vector<1x512xf32>
    %137 = arith.addf %135, %136 : vector<1x512xf32>
    %138 = arith.negf %137 : vector<1x512xf32>
    %139 = math.exp %138 : vector<1x512xf32>
    %cst_41 = arith.constant 1.000000e+00 : f32
    %140 = vector.broadcast %cst_41 : f32 to vector<1x512xf32>
    %141 = arith.addf %140, %139 : vector<1x512xf32>
    %142 = arith.divf %140, %141 : vector<1x512xf32>
    %143 = vector.extract_strided_slice %142 {offsets = [0, 0], sizes = [1, 256], strides = [1, 1]} : vector<1x512xf32> to vector<1x256xf32>
    %144 = vector.extract_strided_slice %142 {offsets = [0, 256], sizes = [1, 256], strides = [1, 1]} : vector<1x512xf32> to vector<1x256xf32>
    %145 = vector.extract_strided_slice %11 {offsets = [6, 0], sizes = [1, 256], strides = [1, 1]} : vector<8x256xf32> to vector<1x256xf32>
    %146 = arith.mulf %143, %134 : vector<1x256xf32>
    %cst_42 = arith.constant dense<0.000000e+00> : vector<1x256xf32>
    %147 = tpu.matmul %146, %13, %cst_42 {dimension_numbers = #tpu.dot_dimension_numbers<[1], [0], [0], [1], [0, 0, 1, 1], [], []>} : vector<1x256xf32>, vector<256x256xf32>, vector<1x256xf32> -> vector<1x256xf32>
    %148 = arith.addf %145, %147 : vector<1x256xf32>
    %149 = math.tanh %148 : vector<1x256xf32>
    %150 = arith.mulf %144, %134 : vector<1x256xf32>
    %cst_43 = arith.constant 1.000000e+00 : f32
    %151 = vector.broadcast %cst_43 : f32 to vector<1x256xf32>
    %152 = arith.subf %151, %144 : vector<1x256xf32>
    %153 = arith.mulf %152, %149 : vector<1x256xf32>
    %154 = arith.addf %150, %153 : vector<1x256xf32>
    %155 = vector.extract_strided_slice %6 {offsets = [7, 0], sizes = [1, 512], strides = [1, 1]} : vector<8x512xf32> to vector<1x512xf32>
    %cst_44 = arith.constant dense<0.000000e+00> : vector<1x512xf32>
    %156 = tpu.matmul %154, %12, %cst_44 {dimension_numbers = #tpu.dot_dimension_numbers<[1], [0], [0], [1], [0, 0, 1, 1], [], []>} : vector<1x256xf32>, vector<256x512xf32>, vector<1x512xf32> -> vector<1x512xf32>
    %157 = arith.addf %155, %156 : vector<1x512xf32>
    %158 = arith.negf %157 : vector<1x512xf32>
    %159 = math.exp %158 : vector<1x512xf32>
    %cst_45 = arith.constant 1.000000e+00 : f32
    %160 = vector.broadcast %cst_45 : f32 to vector<1x512xf32>
    %161 = arith.addf %160, %159 : vector<1x512xf32>
    %162 = arith.divf %160, %161 : vector<1x512xf32>
    %163 = vector.extract_strided_slice %162 {offsets = [0, 0], sizes = [1, 256], strides = [1, 1]} : vector<1x512xf32> to vector<1x256xf32>
    %164 = vector.extract_strided_slice %162 {offsets = [0, 256], sizes = [1, 256], strides = [1, 1]} : vector<1x512xf32> to vector<1x256xf32>
    %165 = vector.extract_strided_slice %11 {offsets = [7, 0], sizes = [1, 256], strides = [1, 1]} : vector<8x256xf32> to vector<1x256xf32>
    %166 = arith.mulf %163, %154 : vector<1x256xf32>
    %cst_46 = arith.constant dense<0.000000e+00> : vector<1x256xf32>
    %167 = tpu.matmul %166, %13, %cst_46 {dimension_numbers = #tpu.dot_dimension_numbers<[1], [0], [0], [1], [0, 0, 1, 1], [], []>} : vector<1x256xf32>, vector<256x256xf32>, vector<1x256xf32> -> vector<1x256xf32>
    %168 = arith.addf %165, %167 : vector<1x256xf32>
    %169 = math.tanh %168 : vector<1x256xf32>
    %170 = arith.mulf %164, %154 : vector<1x256xf32>
    %cst_47 = arith.constant 1.000000e+00 : f32
    %171 = vector.broadcast %cst_47 : f32 to vector<1x256xf32>
    %172 = arith.subf %171, %164 : vector<1x256xf32>
    %173 = arith.mulf %172, %169 : vector<1x256xf32>
    %174 = arith.addf %170, %173 : vector<1x256xf32>
    %c0_48 = arith.constant 0 : index
    %c0_49 = arith.constant 0 : index
    %c0_50 = arith.constant 0 : index
    %175 = vector.load %arg8[%c0_48, %c0_49, %c0_50] : memref<1x1x256xf32, #tpu.memory_space<vmem>>, vector<1x1x256xf32>
    %176 = vector.shape_cast %175 : vector<1x1x256xf32> to vector<1x256xf32>
    %177 = vector.shape_cast %174 : vector<1x256xf32> to vector<1x1x256xf32>
    tpu.vector_store %arg8[%c0_48, %c0_49, %c0_50], %177 {strides = array<i32>} : memref<1x1x256xf32, #tpu.memory_space<vmem>>, vector<1x1x256xf32>,
    return
  }
  func.func @transform_0(%arg0: i32) -> (i32, i32, i32) {
    %c0_i32 = arith.constant 0 : i32
    %c0_i32_0 = arith.constant 0 : i32
    %c0_i32_1 = arith.constant 0 : i32
    return %arg0, %c0_i32, %c0_i32_0 : i32, i32, i32
  }
  func.func @transform_1(%arg0: i32) -> (i32, i32) {
    %c0_i32 = arith.constant 0 : i32
    %c0_i32_0 = arith.constant 0 : i32
    %c0_i32_1 = arith.constant 0 : i32
    return %c0_i32, %c0_i32_0 : i32, i32
  }
  func.func @transform_2(%arg0: i32) -> (i32, i32) {
    %c0_i32 = arith.constant 0 : i32
    %c0_i32_0 = arith.constant 0 : i32
    %c0_i32_1 = arith.constant 0 : i32
    return %c0_i32, %c0_i32_0 : i32, i32
  }
  func.func @transform_3(%arg0: i32) -> (i32, i32) {
    %c0_i32 = arith.constant 0 : i32
    %c0_i32_0 = arith.constant 0 : i32
    %c0_i32_1 = arith.constant 0 : i32
    return %c0_i32, %c0_i32_0 : i32, i32
  }
  func.func @transform_4(%arg0: i32) -> (i32, i32) {
    %c0_i32 = arith.constant 0 : i32
    %c0_i32_0 = arith.constant 0 : i32
    %c0_i32_1 = arith.constant 0 : i32
    return %c0_i32, %c0_i32_0 : i32, i32
  }
  func.func @transform_5(%arg0: i32) -> (i32, i32) {
    %c0_i32 = arith.constant 0 : i32
    %c0_i32_0 = arith.constant 0 : i32
    %c0_i32_1 = arith.constant 0 : i32
    return %c0_i32, %c0_i32_0 : i32, i32
  }
  func.func @transform_6(%arg0: i32) -> (i32, i32) {
    %c0_i32 = arith.constant 0 : i32
    %c0_i32_0 = arith.constant 0 : i32
    %c0_i32_1 = arith.constant 0 : i32
    return %c0_i32, %c0_i32_0 : i32, i32
  }
  func.func @transform_7(%arg0: i32) -> (i32, i32, i32) {
    %c0_i32 = arith.constant 0 : i32
    %c0_i32_0 = arith.constant 0 : i32
    %c0_i32_1 = arith.constant 0 : i32
    return %arg0, %c0_i32, %c0_i32_0 : i32, i32, i32
  }
}

</mosaic_0001>

<llo_original>
// kernel: tpu_custom_call.1
$region0: #{tpu_custom_call.1}
  #allocation0 [shape = 'u32[]', space=smem, size = 0x4, offset = 0x4, fixed_abs, tag = 'smem constant byte address 0x4 - core index']
  #allocation1 [shape = 'u32[144,128]{1,0:T(1,128)}', space=vmem, size = 0x12000, scoped, tag = 'internal scratch']
  %s0 = inlined_call_operand.hbm [shape: f32[2,8,16], index: 0, kind: input, shape index: {}]
  %s1 = inlined_call_operand.hbm [shape: f32[16,512], index: 1, kind: input, shape index: {}]
  %s2 = inlined_call_operand.hbm [shape: f32[16,256], index: 2, kind: input, shape index: {}]
  %s3 = inlined_call_operand.hbm [shape: f32[256,512], index: 3, kind: input, shape index: {}]
  %s4 = inlined_call_operand.hbm [shape: f32[256,256], index: 4, kind: input, shape index: {}]
  %s5 = inlined_call_operand.vmem [shape: f32[1,512], index: 5, kind: input, shape index: {}]
  %s6 = inlined_call_operand.vmem [shape: f32[1,256], index: 6, kind: input, shape index: {}]
  %s7 = inlined_call_operand.hbm [shape: f32[2,1,256], index: 7, kind: output, shape index: {}]
  %s8 = sld [smem:[#allocation0]]
  $region81: #{tpu_custom_call.1} parent=0
    _
  %s10 = ssub.s32 1, %s8
  %s11 = scalar_select 0, %s10, %s8
  $region1: #{tpu_custom_call.1} parent=0
    #allocation2 [shape = 'u8[8192]{0}', space=vmem, size = 0x2000, scoped, tag = 'input window, operand 0']
    #allocation3 [shape = 's32[2]{0}', space=sflag, size = 0x8, scoped, tag = 'scoped memory for tpu_custom_call.1']
    #allocation4 [shape = 's32[2]{0}', space=sflag, size = 0x8, scoped, tag = 'scoped memory for tpu_custom_call.1']
    #allocation5 [shape = 'u8[32768]{0}', space=vmem, size = 0x8000, scoped, tag = 'input window, operand 1, single buffered']
    #allocation6 [shape = 's32[1]{0}', space=sflag, size = 0x4, scoped, tag = 'scoped memory for tpu_custom_call.1']
    #allocation7 [shape = 'u8[16384]{0}', space=vmem, size = 0x4000, scoped, tag = 'input window, operand 2, single buffered']
    #allocation8 [shape = 'u8[524288]{0}', space=vmem, size = 0x80000, scoped, tag = 'input window, operand 3, single buffered']
    #allocation9 [shape = 's32[1]{0}', space=sflag, size = 0x4, scoped, tag = 'scoped memory for tpu_custom_call.1']
    #allocation10 [shape = 'u8[262144]{0}', space=vmem, size = 0x40000, scoped, tag = 'input window, operand 4, single buffered']
    #allocation11 [shape = 'u8[2048]{0}', space=vmem, size = 0x800, scoped, tag = 'output window, operand 0']
    %12 = vsyncpa [#allocation3], 0
    %s13 = scalar_lea.sflag [#allocation3], 1
    %14 = vsyncpa %s13, 0
    %15 = vsyncpa [#allocation6], 0
    %16 = vsyncpa [#allocation9], 0
    %17 = vsyncpa [#allocation4], 0
    %s18 = scalar_lea.sflag [#allocation4], 1
    %19 = vsyncpa %s18, 0
    loop: start=0, step=1, limit=4
    $region2: #{tpu_custom_call.1} parent=1 // loop_pre_header
      _
    $region3: #{tpu_custom_call.1} parent=1 // loop_header
      %s21 = sphi 0, %s25
      %p22 = scmp.ge.s32.totalorder %s21, 4
      %s31 = sphi 0, %s33
      %s34 = sphi 0, %s31
      %s35 = sphi 0, %s34
      %s51 = sphi 0, %s35
      %s55 = sphi 0, %s55
      %s57 = sphi 0, %s55
      %s58 = sphi 0, %s57
      %s72 = sphi 0, %s58
      %s76 = sphi 0, %s76
      %s78 = sphi 0, %s76
      %s79 = sphi 0, %s78
      %s93 = sphi 0, %s79
      %s97 = sphi 0, %s97
      %s99 = sphi 0, %s97
      %s100 = sphi 0, %s99
      %s114 = sphi 0, %s100
      %s118 = sphi 0, %s118
      %s120 = sphi 0, %s118
      %s121 = sphi 0, %s120
      %s135 = sphi 0, %s121
      %s139 = sphi 0, %s139
      %s141 = sphi 0, %s139
      %s142 = sphi 0, %s141
      %s156 = sphi 0, %s142
      %s160 = sphi 0, %s160
      %s162 = sphi 0, %s160
      %s163 = sphi 0, %s162
      %s177 = sphi 0, %s163
      %s183 = sphi 0, %s185
      %s186 = sphi 0, %s183
      %s187 = sphi 0, %s186
      %s203 = sphi 0, %s187
    $region4: #{tpu_custom_call.1} parent=1 // loop_header_branch
      %24 = sbr.rel (%p22) target = $region8
    $region5: #{tpu_custom_call.1} parent=1 // loop_body
      %s26 = ssub.s32 %s21, 1
      %s27 = ssub.s32 %s21, 2
      %s28 = sadd.s32 %s21, 1
      %s29 = ssub.s32 %s21, %s28
      %p30 = scmp.eq.s32.totalorder %s29, 0
      %s32 = sadd.s32 %s31, 1
      %s33 = scalar_select %p30, %s31, %s32
      %p36 = pneg %p30
      %p37 = scmp.eq.s32.totalorder %s21, 1
      %p38 = por %p36, %p37
      %p39 = scmp.ne.s32.totalorder %s31, %s34
      %p40 = scmp.eq.s32.totalorder %s21, 0
      %p41 = por %p39, %p40
      %p42 = scmp.ne.s32.totalorder %s31, %s34
      %p43 = scmp.eq.s32.totalorder %s26, 1
      %p44 = por %p42, %p43
      %p45 = scmp.ne.s32.totalorder %s34, %s35
      %p46 = scmp.eq.s32.totalorder %s26, 0
      %p47 = por %p45, %p46
      %p48 = scmp.ne.s32.totalorder %s34, %s35
      %p49 = scmp.eq.s32.totalorder %s27, 1
      %p50 = por %p48, %p49
      %p52 = scmp.ne.s32.totalorder %s35, %s51
      %p53 = scmp.eq.s32.totalorder %s27, 0
      %p54 = por %p52, %p53
      %s56 = sadd.s32 %s55, 1
      %p59 = scmp.eq.s32.totalorder %s21, 1
      %p60 = scmp.ne.s32.totalorder %s55, %s57
      %p61 = scmp.eq.s32.totalorder %s21, 0
      %p62 = por %p60, %p61
      %p63 = scmp.ne.s32.totalorder %s55, %s57
      %p64 = scmp.eq.s32.totalorder %s26, 1
      %p65 = por %p63, %p64
      %p66 = scmp.ne.s32.totalorder %s57, %s58
      %p67 = scmp.eq.s32.totalorder %s26, 0
      %p68 = por %p66, %p67
      %p69 = scmp.ne.s32.totalorder %s57, %s58
      %p70 = scmp.eq.s32.totalorder %s27, 1
      %p71 = por %p69, %p70
      %p73 = scmp.ne.s32.totalorder %s58, %s72
      %p74 = scmp.eq.s32.totalorder %s27, 0
      %p75 = por %p73, %p74
      %s77 = sadd.s32 %s76, 1
      %p80 = scmp.eq.s32.totalorder %s21, 1
      %p81 = scmp.ne.s32.totalorder %s76, %s78
      %p82 = scmp.eq.s32.totalorder %s21, 0
      %p83 = por %p81, %p82
      %p84 = scmp.ne.s32.totalorder %s76, %s78
      %p85 = scmp.eq.s32.totalorder %s26, 1
      %p86 = por %p84, %p85
      %p87 = scmp.ne.s32.totalorder %s78, %s79
      %p88 = scmp.eq.s32.totalorder %s26, 0
      %p89 = por %p87, %p88
      %p90 = scmp.ne.s32.totalorder %s78, %s79
      %p91 = scmp.eq.s32.totalorder %s27, 1
      %p92 = por %p90, %p91
      %p94 = scmp.ne.s32.totalorder %s79, %s93
      %p95 = scmp.eq.s32.totalorder %s27, 0
      %p96 = por %p94, %p95
      %s98 = sadd.s32 %s97, 1
      %p101 = scmp.eq.s32.totalorder %s21, 1
      %p102 = scmp.ne.s32.totalorder %s97, %s99
      %p103 = scmp.eq.s32.totalorder %s21, 0
      %p104 = por %p102, %p103
      %p105 = scmp.ne.s32.totalorder %s97, %s99
      %p106 = scmp.eq.s32.totalorder %s26, 1
      %p107 = por %p105, %p106
      %p108 = scmp.ne.s32.totalorder %s99, %s100
      %p109 = scmp.eq.s32.totalorder %s26, 0
      %p110 = por %p108, %p109
      %p111 = scmp.ne.s32.totalorder %s99, %s100
      %p112 = scmp.eq.s32.totalorder %s27, 1
      %p113 = por %p111, %p112
      %p115 = scmp.ne.s32.totalorder %s100, %s114
      %p116 = scmp.eq.s32.totalorder %s27, 0
      %p117 = por %p115, %p116
      %s119 = sadd.s32 %s118, 1
      %p122 = scmp.eq.s32.totalorder %s21, 1
      %p123 = scmp.ne.s32.totalorder %s118, %s120
      %p124 = scmp.eq.s32.totalorder %s21, 0
      %p125 = por %p123, %p124
      %p126 = scmp.ne.s32.totalorder %s118, %s120
      %p127 = scmp.eq.s32.totalorder %s26, 1
      %p128 = por %p126, %p127
      %p129 = scmp.ne.s32.totalorder %s120, %s121
      %p130 = scmp.eq.s32.totalorder %s26, 0
      %p131 = por %p129, %p130
      %p132 = scmp.ne.s32.totalorder %s120, %s121
      %p133 = scmp.eq.s32.totalorder %s27, 1
      %p134 = por %p132, %p133
      %p136 = scmp.ne.s32.totalorder %s121, %s135
      %p137 = scmp.eq.s32.totalorder %s27, 0
      %p138 = por %p136, %p137
      %s140 = sadd.s32 %s139, 1
      %p143 = scmp.eq.s32.totalorder %s21, 1
      %p144 = scmp.ne.s32.totalorder %s139, %s141
      %p145 = scmp.eq.s32.totalorder %s21, 0
      %p146 = por %p144, %p145
      %p147 = scmp.ne.s32.totalorder %s139, %s141
      %p148 = scmp.eq.s32.totalorder %s26, 1
      %p149 = por %p147, %p148
      %p150 = scmp.ne.s32.totalorder %s141, %s142
      %p151 = scmp.eq.s32.totalorder %s26, 0
      %p152 = por %p150, %p151
      %p153 = scmp.ne.s32.totalorder %s141, %s142
      %p154 = scmp.eq.s32.totalorder %s27, 1
      %p155 = por %p153, %p154
      %p157 = scmp.ne.s32.totalorder %s142, %s156
      %p158 = scmp.eq.s32.totalorder %s27, 0
      %p159 = por %p157, %p158
      %s161 = sadd.s32 %s160, 1
      %p164 = scmp.eq.s32.totalorder %s21, 1
      %p165 = scmp.ne.s32.totalorder %s160, %s162
      %p166 = scmp.eq.s32.totalorder %s21, 0
      %p167 = por %p165, %p166
      %p168 = scmp.ne.s32.totalorder %s160, %s162
      %p169 = scmp.eq.s32.totalorder %s26, 1
      %p170 = por %p168, %p169
      %p171 = scmp.ne.s32.totalorder %s162, %s163
      %p172 = scmp.eq.s32.totalorder %s26, 0
      %p173 = por %p171, %p172
      %p174 = scmp.ne.s32.totalorder %s162, %s163
      %p175 = scmp.eq.s32.totalorder %s27, 1
      %p176 = por %p174, %p175
      %p178 = scmp.ne.s32.totalorder %s163, %s177
      %p179 = scmp.eq.s32.totalorder %s27, 0
      %p180 = por %p178, %p179
      %s181 = ssub.s32 %s21, %s28
      %p182 = scmp.eq.s32.totalorder %s181, 0
      %s184 = sadd.s32 %s183, 1
      %s185 = scalar_select %p182, %s183, %s184
      %p188 = pneg %p182
      %p189 = scmp.eq.s32.totalorder %s21, 1
      %p190 = por %p188, %p189
      %p191 = scmp.ne.s32.totalorder %s183, %s186
      %p192 = scmp.eq.s32.totalorder %s21, 0
      %p193 = por %p191, %p192
      %p194 = scmp.ne.s32.totalorder %s183, %s186
      %p195 = scmp.eq.s32.totalorder %s26, 1
      %p196 = por %p194, %p195
      %p197 = scmp.ne.s32.totalorder %s186, %s187
      %p198 = scmp.eq.s32.totalorder %s26, 0
      %p199 = por %p197, %p198
      %p200 = scmp.ne.s32.totalorder %s186, %s187
      %p201 = scmp.eq.s32.totalorder %s27, 1
      %p202 = por %p200, %p201
      %p204 = scmp.ne.s32.totalorder %s187, %s203
      %p205 = scmp.eq.s32.totalorder %s27, 0
      %p206 = por %p204, %p205
      %p207 = scmp.le.s32.totalorder 1, %s21
      %p208 = scmp.lt.s32.totalorder %s21, 3
      %p209 = pnand %p207, %p208
      %p210 = pneg %p209
      // Predicated region
      $region9: #{tpu_custom_call.1} parent=5 // pred_check
        _
      $region10: #{tpu_custom_call.1} parent=5 // pred_check_branch
        %212 = sbr.rel (%p209) target = $region12
      $region11: #{tpu_custom_call.1} parent=5 // pred_region
        %s213 = ssub.s32 %s21, 1
        // Predicated region
        $region13: #{tpu_custom_call.1} parent=11 // pred_check
          %p214 = pneg %p68
        $region14: #{tpu_custom_call.1} parent=11 // pred_check_branch
          %216 = sbr.rel (%p214) target = $region16
        $region15: #{tpu_custom_call.1} parent=11 // pred_region
          %s218 = ssub.s32 1024, 1024
          %219 = vsyncadd [#allocation6], %s218
          %s220 = sshll.u32 [#allocation5], 4
          %s221 = int_to_ptr.vmem [resolvable:$true] %s220
          %226 = dma.hbm_to_vmem [thread:$0]  %s1, 1024, %s221, [#allocation6], 512, 512, 32
        $region16: #{tpu_custom_call.1} parent=11 // pred_fallthru
          _
        // Predicated region
        $region17: #{tpu_custom_call.1} parent=11 // pred_check
          %p227 = pneg %p89
        $region18: #{tpu_custom_call.1} parent=11 // pred_check_branch
          %229 = sbr.rel (%p227) target = $region20
        $region19: #{tpu_custom_call.1} parent=11 // pred_region
          %s231 = ssub.s32 512, 512
          %232 = vsyncadd [#allocation6], %s231
          %s233 = sshll.u32 [#allocation7], 4
          %s234 = int_to_ptr.vmem [resolvable:$true] %s233
          %239 = dma.hbm_to_vmem [thread:$0]  %s2, 512, %s234, [#allocation6], 256, 256, 16
        $region20: #{tpu_custom_call.1} parent=11 // pred_fallthru
          _
        // Predicated region
        $region21: #{tpu_custom_call.1} parent=11 // pred_check
          %p240 = pneg %p110
        $region22: #{tpu_custom_call.1} parent=11 // pred_check_branch
          %242 = sbr.rel (%p240) target = $region24
        $region23: #{tpu_custom_call.1} parent=11 // pred_region
          %s244 = ssub.s32 16384, 16384
          %245 = vsyncadd [#allocation9], %s244
          %s246 = sshll.u32 [#allocation8], 4
          %s247 = int_to_ptr.vmem [resolvable:$true] %s246
          %252 = dma.hbm_to_vmem [thread:$0]  %s3, 16384, %s247, [#allocation9], 512, 512, 32
        $region24: #{tpu_custom_call.1} parent=11 // pred_fallthru
          _
        // Predicated region
        $region25: #{tpu_custom_call.1} parent=11 // pred_check
          %p253 = pneg %p131
        $region26: #{tpu_custom_call.1} parent=11 // pred_check_branch
          %255 = sbr.rel (%p253) target = $region28
        $region27: #{tpu_custom_call.1} parent=11 // pred_region
          %s257 = ssub.s32 8192, 8192
          %258 = vsyncadd [#allocation9], %s257
          %s259 = sshll.u32 [#allocation10], 4
          %s260 = int_to_ptr.vmem [resolvable:$true] %s259
          %265 = dma.hbm_to_vmem [thread:$0]  %s4, 8192, %s260, [#allocation9], 256, 256, 16
        $region28: #{tpu_custom_call.1} parent=11 // pred_fallthru
          _
        // Predicated region
        $region29: #{tpu_custom_call.1} parent=11 // pred_check
          %p266 = pneg %p152
        $region30: #{tpu_custom_call.1} parent=11 // pred_check_branch
          %268 = sbr.rel (%p266) target = $region32
        $region31: #{tpu_custom_call.1} parent=11 // pred_region
          _
        $region32: #{tpu_custom_call.1} parent=11 // pred_fallthru
          _
        // Predicated region
        $region33: #{tpu_custom_call.1} parent=11 // pred_check
          %p269 = pneg %p173
        $region34: #{tpu_custom_call.1} parent=11 // pred_check_branch
          %271 = sbr.rel (%p269) target = $region36
        $region35: #{tpu_custom_call.1} parent=11 // pred_region
          _
        $region36: #{tpu_custom_call.1} parent=11 // pred_fallthru
          _
      $region12: #{tpu_custom_call.1} parent=5 // pred_fallthru
        _
      %p272 = scmp.lt.s32.totalorder %s21, 2
      // Predicated region
      $region37: #{tpu_custom_call.1} parent=5 // pred_check
        %p273 = pneg %p272
      $region38: #{tpu_custom_call.1} parent=5 // pred_check_branch
        %275 = sbr.rel (%p273) target = $region40
      $region39: #{tpu_custom_call.1} parent=5 // pred_region
        // Predicated region
        $region41: #{tpu_custom_call.1} parent=39 // pred_check
          %p276 = pneg %p41
        $region42: #{tpu_custom_call.1} parent=39 // pred_check_branch
          %278 = sbr.rel (%p276) target = $region44
        $region43: #{tpu_custom_call.1} parent=39 // pred_region
          %s279 = sand.u32 %s31, 1
          %s280 = scalar_lea.sflag [#allocation3], %s279
          %s281 = sand.u32 %s31, 1
          %s282 = smul.addr %s281, 8
          %s283 = scalar_lea.vmem [#allocation2], %s282
          %s285 = ssub.s32 128, 128
          %286 = vsyncadd %s280, %s285
          %s287 = smul.addr %s21, 128
          %s288 = scalar_lea.hbm %s0, %s287
          %s290 = sshll.u32 %s283, 4
          %s291 = int_to_ptr.vmem [resolvable:$true] %s290
          %293 = dma.hbm_to_vmem [thread:$0]  %s288, 128, %s291, %s280
        $region44: #{tpu_custom_call.1} parent=39 // pred_fallthru
          _
      $region40: #{tpu_custom_call.1} parent=5 // pred_fallthru
        _
      %p294 = scmp.le.s32.totalorder 1, %s21
      %p295 = scmp.lt.s32.totalorder %s21, 3
      %p296 = pnand %p294, %p295
      %p297 = pneg %p296
      // Predicated region
      $region45: #{tpu_custom_call.1} parent=5 // pred_check
        _
      $region46: #{tpu_custom_call.1} parent=5 // pred_check_branch
        %299 = sbr.rel (%p296) target = $region48
      $region47: #{tpu_custom_call.1} parent=5 // pred_region
        %s300 = ssub.s32 %s21, 1
        %s301 = sand.u32 %s34, 1
        %s302 = scalar_lea.sflag [#allocation3], %s301
        %s303 = sand.u32 %s34, 1
        %s304 = smul.addr %s303, 8
        %s305 = scalar_lea.vmem [#allocation2], %s304
        // Predicated region
        $region49: #{tpu_custom_call.1} parent=47 // pred_check
          %p306 = pneg %p47
        $region50: #{tpu_custom_call.1} parent=47 // pred_check_branch
          %308 = sbr.rel (%p306) target = $region52
        $region51: #{tpu_custom_call.1} parent=47 // pred_region
          %309 = dma.done %s302, 128
        $region52: #{tpu_custom_call.1} parent=47 // pred_fallthru
          _
        // Predicated region
        $region53: #{tpu_custom_call.1} parent=47 // pred_check
          %p310 = pneg %p68
        $region54: #{tpu_custom_call.1} parent=47 // pred_check_branch
          %312 = sbr.rel (%p310) target = $region56
        $region55: #{tpu_custom_call.1} parent=47 // pred_region
          %313 = dma.done [#allocation6], 1024
        $region56: #{tpu_custom_call.1} parent=47 // pred_fallthru
          _
        // Predicated region
        $region57: #{tpu_custom_call.1} parent=47 // pred_check
          %p314 = pneg %p89
        $region58: #{tpu_custom_call.1} parent=47 // pred_check_branch
          %316 = sbr.rel (%p314) target = $region60
        $region59: #{tpu_custom_call.1} parent=47 // pred_region
          %317 = dma.done [#allocation6], 512
        $region60: #{tpu_custom_call.1} parent=47 // pred_fallthru
          _
        // Predicated region
        $region61: #{tpu_custom_call.1} parent=47 // pred_check
          %p318 = pneg %p110
        $region62: #{tpu_custom_call.1} parent=47 // pred_check_branch
          %320 = sbr.rel (%p318) target = $region64
        $region63: #{tpu_custom_call.1} parent=47 // pred_region
          %321 = dma.done [#allocation9], 16384
        $region64: #{tpu_custom_call.1} parent=47 // pred_fallthru
          _
        // Predicated region
        $region65: #{tpu_custom_call.1} parent=47 // pred_check
          %p322 = pneg %p131
        $region66: #{tpu_custom_call.1} parent=47 // pred_check_branch
          %324 = sbr.rel (%p322) target = $region68
        $region67: #{tpu_custom_call.1} parent=47 // pred_region
          %325 = dma.done [#allocation9], 8192
        $region68: #{tpu_custom_call.1} parent=47 // pred_fallthru
          _
        %s326 = sand.u32 %s34, 1
        %s327 = scalar_lea.sflag [#allocation3], %s326
        %s328 = sand.u32 %s34, 1
        %s329 = smul.addr %s328, 8
        %s330 = scalar_lea.vmem [#allocation2], %s329
        %p331 = pneg %p47
        %p332 = pneg %p44
        %p333 = pneg %p68
        %p334 = pneg %p65
        %p335 = pneg %p89
        %p336 = pneg %p86
        %p337 = pneg %p110
        %p338 = pneg %p107
        %p339 = pneg %p131
        %p340 = pneg %p128
        %p341 = pneg %p152
        %p342 = pneg %p149
        %p343 = pneg %p173
        %p344 = pneg %p170
        %p345 = pneg %p199
        %p346 = pneg %p196
        %s347 = sand.u32 %s186, 1
        %s348 = scalar_lea.sflag [#allocation4], %s347
        %s349 = sand.u32 %s186, 1
        %s350 = smul.addr %s349, 2
        %s351 = scalar_lea.vmem [#allocation11], %s350
        %v352 = vld [vmem:[%s305] sm:$0xff]
        %v353 = vld [vmem:[#allocation5] sm:$0xff]
        %v354 = vld [vmem:[#allocation5 + $0x8] sm:$0xff]
        %v355 = vld [vmem:[#allocation5 + $0x10] sm:$0xff]
        %v356 = vld [vmem:[#allocation5 + $0x18] sm:$0xff]
        %v357 = vld [vmem:[#allocation5 + $0x20] sm:$0xff]
        %v358 = vld [vmem:[#allocation5 + $0x28] sm:$0xff]
        %v359 = vld [vmem:[#allocation5 + $0x30] sm:$0xff]
        %v360 = vld [vmem:[#allocation5 + $0x38] sm:$0xff]
        %v361 = vld [vmem:[%s5] sm:$0xf]
        %v363 = vlaneseq
        %v364 = vshrl.u32 %v363, 7
        %v365 = vsub.s32 0, %v364
        %v366 = vrot.slane %v361, %v365
        %v367 = vlaneseq
        %v368 = vshrl.u32 %v367, 7
        %v369 = vsub.s32 1, %v368
        %v370 = vrot.slane %v361, %v369
        %v371 = vlaneseq
        %v372 = vshrl.u32 %v371, 7
        %v373 = vsub.s32 2, %v372
        %v374 = vrot.slane %v361, %v373
        %v375 = vlaneseq
        %v376 = vshrl.u32 %v375, 7
        %v377 = vsub.s32 3, %v376
        %v378 = vrot.slane %v361, %v377
        %vm383 = vcmask 130048
        %v385 = vsel %vm383, %v352, 0
        %387 = vmatprep.subr.mxu0 %v354
        %388 = vmatpush1.msra.mxu0 %v353
        %389 = vmatprep.subr.mxu0 %v358
        %390 = vmatpush1.msra.mxu0 %v357
        %391 = vmatprep.subr.mxu0 0.0
        %392 = vmatpush1.msra.mxu0 0.0
        %393 = vmatprep.subr.mxu0 0.0
        %394 = vmatpush1.msra.mxu0 0.0
        %395 = vmatprep.subr.mxu0 0.0
        %396 = vmatpush1.msra.mxu0 0.0
        %397 = vmatprep.subr.mxu0 0.0
        %398 = vmatpush1.msra.mxu0 0.0
        %399 = vmatprep.subr.mxu0 0.0
        %400 = vmatpush1.msra.mxu0 0.0
        %401 = vmatprep.subr.mxu0 0.0
        %402 = vmatpush1.msra.mxu0 0.0
        %403 = vmatprep.subr.mxu0 0.0
        %404 = vmatpush1.msra.mxu0 0.0
        %405 = vmatprep.subr.mxu0 0.0
        %406 = vmatpush1.msra.mxu0 0.0
        %407 = vmatprep.subr.mxu0 0.0
        %408 = vmatpush1.msra.mxu0 0.0
        %409 = vmatprep.subr.mxu0 0.0
        %410 = vmatpush1.msra.mxu0 0.0
        %411 = vmatprep.subr.mxu0 0.0
        %412 = vmatpush1.msra.mxu0 0.0
        %413 = vmatprep.subr.mxu0 0.0
        %414 = vmatpush1.msra.mxu0 0.0
        %415 = vmatprep.subr.mxu0 0.0
        %416 = vmatpush1.msra.mxu0 0.0
        %417 = vmatprep.subr.mxu0 0.0
        %418 = vmatpush1.msra.mxu0 0.0
        %419 = vmatprep.subr.mxu0 0.0
        %420 = vmatpush1.msra.mxu0 0.0
        %421 = vmatprep.subr.mxu0 0.0
        %422 = vmatpush1.msra.mxu0 0.0
        %423 = vmatprep.subr.mxu0 0.0
        %424 = vmatpush1.msra.mxu0 0.0
        %425 = vmatprep.subr.mxu0 0.0
        %426 = vmatpush1.msra.mxu0 0.0
        %427 = vmatprep.subr.mxu0 0.0
        %428 = vmatpush1.msra.mxu0 0.0
        %429 = vmatprep.subr.mxu0 0.0
        %430 = vmatpush1.msra.mxu0 0.0
        %431 = vmatprep.subr.mxu0 0.0
        %432 = vmatpush1.msra.mxu0 0.0
        %433 = vmatprep.subr.mxu0 0.0
        %434 = vmatpush1.msra.mxu0 0.0
        %435 = vmatprep.subr.mxu0 0.0
        %436 = vmatpush1.msra.mxu0 0.0
        %437 = vmatprep.subr.mxu0 0.0
        %438 = vmatpush1.msra.mxu0 0.0
        %439 = vmatprep.subr.mxu0 0.0
        %440 = vmatpush1.msra.mxu0 0.0
        %441 = vmatprep.subr.mxu0 0.0
        %442 = vmatpush1.msra.mxu0 0.0
        %443 = vmatprep.subr.mxu0 0.0
        %444 = vmatpush1.msra.mxu0 0.0
        %445 = vmatprep.subr.mxu0 0.0
        %446 = vmatpush1.msra.mxu0 0.0
        %447 = vmatprep.subr.mxu0 0.0
        %448 = vmatpush1.msra.mxu0 0.0
        %449 = vmatprep.subr.mxu0 0.0
        %450 = vmatpush1.msra.mxu0 0.0
        %451 = vmatprep.mubr.f32.mxu0 0.0
        %452 = vmatmul.mubr.f32.gmra.mrb[0].mxu0 %v385
        %v453 = vpop.f32.mrb[0].mxu0
        %v454 = vadd.f32 %v366, %v453
        %v455 = vpop.f32.mrb[0].mxu0
        %v456 = vadd.f32 %v370, %v455
        %457 = vdwg.mxu0
        %458 = vmatprep.subr.mxu0 %v356
        %459 = vmatpush1.msra.mxu0 %v355
        %460 = vmatprep.subr.mxu0 %v360
        %461 = vmatpush1.msra.mxu0 %v359
        %462 = vmatprep.subr.mxu0 0.0
        %463 = vmatpush1.msra.mxu0 0.0
        %464 = vmatprep.subr.mxu0 0.0
        %465 = vmatpush1.msra.mxu0 0.0
        %466 = vmatprep.subr.mxu0 0.0
        %467 = vmatpush1.msra.mxu0 0.0
        %468 = vmatprep.subr.mxu0 0.0
        %469 = vmatpush1.msra.mxu0 0.0
        %470 = vmatprep.subr.mxu0 0.0
        %471 = vmatpush1.msra.mxu0 0.0
        %472 = vmatprep.subr.mxu0 0.0
        %473 = vmatpush1.msra.mxu0 0.0
        %474 = vmatprep.subr.mxu0 0.0
        %475 = vmatpush1.msra.mxu0 0.0
        %476 = vmatprep.subr.mxu0 0.0
        %477 = vmatpush1.msra.mxu0 0.0
        %478 = vmatprep.subr.mxu0 0.0
        %479 = vmatpush1.msra.mxu0 0.0
        %480 = vmatprep.subr.mxu0 0.0
        %481 = vmatpush1.msra.mxu0 0.0
        %482 = vmatprep.subr.mxu0 0.0
        %483 = vmatpush1.msra.mxu0 0.0
        %484 = vmatprep.subr.mxu0 0.0
        %485 = vmatpush1.msra.mxu0 0.0
        %486 = vmatprep.subr.mxu0 0.0
        %487 = vmatpush1.msra.mxu0 0.0
        %488 = vmatprep.subr.mxu0 0.0
        %489 = vmatpush1.msra.mxu0 0.0
        %490 = vmatprep.subr.mxu0 0.0
        %491 = vmatpush1.msra.mxu0 0.0
        %492 = vmatprep.subr.mxu0 0.0
        %493 = vmatpush1.msra.mxu0 0.0
        %494 = vmatprep.subr.mxu0 0.0
        %495 = vmatpush1.msra.mxu0 0.0
        %496 = vmatprep.subr.mxu0 0.0
        %497 = vmatpush1.msra.mxu0 0.0
        %498 = vmatprep.subr.mxu0 0.0
        %499 = vmatpush1.msra.mxu0 0.0
        %500 = vmatprep.subr.mxu0 0.0
        %501 = vmatpush1.msra.mxu0 0.0
        %502 = vmatprep.subr.mxu0 0.0
        %503 = vmatpush1.msra.mxu0 0.0
        %504 = vmatprep.subr.mxu0 0.0
        %505 = vmatpush1.msra.mxu0 0.0
        %506 = vmatprep.subr.mxu0 0.0
        %507 = vmatpush1.msra.mxu0 0.0
        %508 = vmatprep.subr.mxu0 0.0
        %509 = vmatpush1.msra.mxu0 0.0
        %510 = vmatprep.subr.mxu0 0.0
        %511 = vmatpush1.msra.mxu0 0.0
        %512 = vmatprep.subr.mxu0 0.0
        %513 = vmatpush1.msra.mxu0 0.0
        %514 = vmatprep.subr.mxu0 0.0
        %515 = vmatpush1.msra.mxu0 0.0
        %516 = vmatprep.subr.mxu0 0.0
        %517 = vmatpush1.msra.mxu0 0.0
        %518 = vmatprep.subr.mxu0 0.0
        %519 = vmatpush1.msra.mxu0 0.0
        %520 = vmatprep.subr.mxu0 0.0
        %521 = vmatpush1.msra.mxu0 0.0
        %522 = vmatprep.mubr.f32.mxu0 0.0
        %523 = vmatmul.mubr.f32.gmra.mrb[0].mxu0 %v385
        %v524 = vpop.f32.mrb[0].mxu0
        %v525 = vadd.f32 %v374, %v524
        %v526 = vpop.f32.mrb[0].mxu0
        %v527 = vadd.f32 %v378, %v526
        %528 = vdwg.mxu0
        %v529 = vld [vmem:[#allocation7] sm:$0xff]
        %v530 = vld [vmem:[#allocation7 + $0x8] sm:$0xff]
        %v531 = vld [vmem:[#allocation7 + $0x10] sm:$0xff]
        %v532 = vld [vmem:[#allocation7 + $0x18] sm:$0xff]
        %v533 = vld [vmem:[%s6] sm:$0x3]
        %v535 = vlaneseq
        %v536 = vshrl.u32 %v535, 7
        %v537 = vsub.s32 0, %v536
        %v538 = vrot.slane %v533, %v537
        %v539 = vlaneseq
        %v540 = vshrl.u32 %v539, 7
        %v541 = vsub.s32 1, %v540
        %v542 = vrot.slane %v533, %v541
        %545 = vmatprep.subr.mxu0 %v530
        %546 = vmatpush1.msra.mxu0 %v529
        %547 = vmatprep.subr.mxu0 %v532
        %548 = vmatpush1.msra.mxu0 %v531
        %549 = vmatprep.subr.mxu0 0.0
        %550 = vmatpush1.msra.mxu0 0.0
        %551 = vmatprep.subr.mxu0 0.0
        %552 = vmatpush1.msra.mxu0 0.0
        %553 = vmatprep.subr.mxu0 0.0
        %554 = vmatpush1.msra.mxu0 0.0
        %555 = vmatprep.subr.mxu0 0.0
        %556 = vmatpush1.msra.mxu0 0.0
        %557 = vmatprep.subr.mxu0 0.0
        %558 = vmatpush1.msra.mxu0 0.0
        %559 = vmatprep.subr.mxu0 0.0
        %560 = vmatpush1.msra.mxu0 0.0
        %561 = vmatprep.subr.mxu0 0.0
        %562 = vmatpush1.msra.mxu0 0.0
        %563 = vmatprep.subr.mxu0 0.0
        %564 = vmatpush1.msra.mxu0 0.0
        %565 = vmatprep.subr.mxu0 0.0
        %566 = vmatpush1.msra.mxu0 0.0
        %567 = vmatprep.subr.mxu0 0.0
        %568 = vmatpush1.msra.mxu0 0.0
        %569 = vmatprep.subr.mxu0 0.0
        %570 = vmatpush1.msra.mxu0 0.0
        %571 = vmatprep.subr.mxu0 0.0
        %572 = vmatpush1.msra.mxu0 0.0
        %573 = vmatprep.subr.mxu0 0.0
        %574 = vmatpush1.msra.mxu0 0.0
        %575 = vmatprep.subr.mxu0 0.0
        %576 = vmatpush1.msra.mxu0 0.0
        %577 = vmatprep.subr.mxu0 0.0
        %578 = vmatpush1.msra.mxu0 0.0
        %579 = vmatprep.subr.mxu0 0.0
        %580 = vmatpush1.msra.mxu0 0.0
        %581 = vmatprep.subr.mxu0 0.0
        %582 = vmatpush1.msra.mxu0 0.0
        %583 = vmatprep.subr.mxu0 0.0
        %584 = vmatpush1.msra.mxu0 0.0
        %585 = vmatprep.subr.mxu0 0.0
        %586 = vmatpush1.msra.mxu0 0.0
        %587 = vmatprep.subr.mxu0 0.0
        %588 = vmatpush1.msra.mxu0 0.0
        %589 = vmatprep.subr.mxu0 0.0
        %590 = vmatpush1.msra.mxu0 0.0
        %591 = vmatprep.subr.mxu0 0.0
        %592 = vmatpush1.msra.mxu0 0.0
        %593 = vmatprep.subr.mxu0 0.0
        %594 = vmatpush1.msra.mxu0 0.0
        %595 = vmatprep.subr.mxu0 0.0
        %596 = vmatpush1.msra.mxu0 0.0
        %597 = vmatprep.subr.mxu0 0.0
        %598 = vmatpush1.msra.mxu0 0.0
        %599 = vmatprep.subr.mxu0 0.0
        %600 = vmatpush1.msra.mxu0 0.0
        %601 = vmatprep.subr.mxu0 0.0
        %602 = vmatpush1.msra.mxu0 0.0
        %603 = vmatprep.subr.mxu0 0.0
        %604 = vmatpush1.msra.mxu0 0.0
        %605 = vmatprep.subr.mxu0 0.0
        %606 = vmatpush1.msra.mxu0 0.0
        %607 = vmatprep.subr.mxu0 0.0
        %608 = vmatpush1.msra.mxu0 0.0
        %609 = vmatprep.mubr.f32.mxu0 0.0
        %610 = vmatmul.mubr.f32.gmra.mrb[0].mxu0 %v385
        %v611 = vpop.f32.mrb[0].mxu0
        %v612 = vadd.f32 %v538, %v611
        %v613 = vpop.f32.mrb[0].mxu0
        %v614 = vadd.f32 %v542, %v613
        %615 = vdwg.mxu0
        %v616 = vld [vmem:[#allocation8] sm:$0xff]
        %v617 = vld [vmem:[#allocation8 + $0x8] sm:$0xff]
        %v618 = vld [vmem:[#allocation8 + $0x10] sm:$0xff]
        %v619 = vld [vmem:[#allocation8 + $0x18] sm:$0xff]
        %v620 = vld [vmem:[#allocation8 + $0x20] sm:$0xff]
        %v621 = vld [vmem:[#allocation8 + $0x28] sm:$0xff]
        %v622 = vld [vmem:[#allocation8 + $0x30] sm:$0xff]
        %v623 = vld [vmem:[#allocation8 + $0x38] sm:$0xff]
        %v624 = vld [vmem:[#allocation8 + $0x40] sm:$0xff]
        %v625 = vld [vmem:[#allocation8 + $0x48] sm:$0xff]
        %v626 = vld [vmem:[#allocation8 + $0x50] sm:$0xff]
        %v627 = vld [vmem:[#allocation8 + $0x58] sm:$0xff]
        %v628 = vld [vmem:[#allocation8 + $0x60] sm:$0xff]
        %v629 = vld [vmem:[#allocation8 + $0x68] sm:$0xff]
        %v630 = vld [vmem:[#allocation8 + $0x70] sm:$0xff]
        %v631 = vld [vmem:[#allocation8 + $0x78] sm:$0xff]
        %v632 = vld [vmem:[#allocation8 + $0x80] sm:$0xff]
        %v633 = vld [vmem:[#allocation8 + $0x88] sm:$0xff]
        %v634 = vld [vmem:[#allocation8 + $0x90] sm:$0xff]
        %v635 = vld [vmem:[#allocation8 + $0x98] sm:$0xff]
        %v636 = vld [vmem:[#allocation8 + $0xa0] sm:$0xff]
        %v637 = vld [vmem:[#allocation8 + $0xa8] sm:$0xff]
        %v638 = vld [vmem:[#allocation8 + $0xb0] sm:$0xff]
        %v639 = vld [vmem:[#allocation8 + $0xb8] sm:$0xff]
        %v640 = vld [vmem:[#allocation8 + $0xc0] sm:$0xff]
        %v641 = vld [vmem:[#allocation8 + $0xc8] sm:$0xff]
        %v642 = vld [vmem:[#allocation8 + $0xd0] sm:$0xff]
        %v643 = vld [vmem:[#allocation8 + $0xd8] sm:$0xff]
        %v644 = vld [vmem:[#allocation8 + $0xe0] sm:$0xff]
        %v645 = vld [vmem:[#allocation8 + $0xe8] sm:$0xff]
        %v646 = vld [vmem:[#allocation8 + $0xf0] sm:$0xff]
        %v647 = vld [vmem:[#allocation8 + $0xf8] sm:$0xff]
        %v648 = vld [vmem:[#allocation8 + $0x100] sm:$0xff]
        %v649 = vld [vmem:[#allocation8 + $0x108] sm:$0xff]
        %v650 = vld [vmem:[#allocation8 + $0x110] sm:$0xff]
        %v651 = vld [vmem:[#allocation8 + $0x118] sm:$0xff]
        %v652 = vld [vmem:[#allocation8 + $0x120] sm:$0xff]
        %v653 = vld [vmem:[#allocation8 + $0x128] sm:$0xff]
        %v654 = vld [vmem:[#allocation8 + $0x130] sm:$0xff]
        %v655 = vld [vmem:[#allocation8 + $0x138] sm:$0xff]
        %v656 = vld [vmem:[#allocation8 + $0x140] sm:$0xff]
        %v657 = vld [vmem:[#allocation8 + $0x148] sm:$0xff]
        %v658 = vld [vmem:[#allocation8 + $0x150] sm:$0xff]
        %v659 = vld [vmem:[#allocation8 + $0x158] sm:$0xff]
        %v660 = vld [vmem:[#allocation8 + $0x160] sm:$0xff]
        %v661 = vld [vmem:[#allocation8 + $0x168] sm:$0xff]
        %v662 = vld [vmem:[#allocation8 + $0x170] sm:$0xff]
        %v663 = vld [vmem:[#allocation8 + $0x178] sm:$0xff]
        %v664 = vld [vmem:[#allocation8 + $0x180] sm:$0xff]
        %v665 = vld [vmem:[#allocation8 + $0x188] sm:$0xff]
        %v666 = vld [vmem:[#allocation8 + $0x190] sm:$0xff]
        %v667 = vld [vmem:[#allocation8 + $0x198] sm:$0xff]
        %v668 = vld [vmem:[#allocation8 + $0x1a0] sm:$0xff]
        %v669 = vld [vmem:[#allocation8 + $0x1a8] sm:$0xff]
        %v670 = vld [vmem:[#allocation8 + $0x1b0] sm:$0xff]
        %v671 = vld [vmem:[#allocation8 + $0x1b8] sm:$0xff]
        %v672 = vld [vmem:[#allocation8 + $0x1c0] sm:$0xff]
        %v673 = vld [vmem:[#allocation8 + $0x1c8] sm:$0xff]
        %v674 = vld [vmem:[#allocation8 + $0x1d0] sm:$0xff]
        %v675 = vld [vmem:[#allocation8 + $0x1d8] sm:$0xff]
        %v676 = vld [vmem:[#allocation8 + $0x1e0] sm:$0xff]
        %v677 = vld [vmem:[#allocation8 + $0x1e8] sm:$0xff]
        %v678 = vld [vmem:[#allocation8 + $0x1f0] sm:$0xff]
        %v679 = vld [vmem:[#allocation8 + $0x1f8] sm:$0xff]
        %v680 = vld [vmem:[#allocation8 + $0x200] sm:$0xff]
        %v681 = vld [vmem:[#allocation8 + $0x208] sm:$0xff]
        %v682 = vld [vmem:[#allocation8 + $0x210] sm:$0xff]
        %v683 = vld [vmem:[#allocation8 + $0x218] sm:$0xff]
        %v684 = vld [vmem:[#allocation8 + $0x220] sm:$0xff]
        %v685 = vld [vmem:[#allocation8 + $0x228] sm:$0xff]
        %v686 = vld [vmem:[#allocation8 + $0x230] sm:$0xff]
        %v687 = vld [vmem:[#allocation8 + $0x238] sm:$0xff]
        %v688 = vld [vmem:[#allocation8 + $0x240] sm:$0xff]
        %v689 = vld [vmem:[#allocation8 + $0x248] sm:$0xff]
        %v690 = vld [vmem:[#allocation8 + $0x250] sm:$0xff]
        %v691 = vld [vmem:[#allocation8 + $0x258] sm:$0xff]
        %v692 = vld [vmem:[#allocation8 + $0x260] sm:$0xff]
        %v693 = vld [vmem:[#allocation8 + $0x268] sm:$0xff]
        %v694 = vld [vmem:[#allocation8 + $0x270] sm:$0xff]
        %v695 = vld [vmem:[#allocation8 + $0x278] sm:$0xff]
        %v696 = vld [vmem:[#allocation8 + $0x280] sm:$0xff]
        %v697 = vld [vmem:[#allocation8 + $0x288] sm:$0xff]
        %v698 = vld [vmem:[#allocation8 + $0x290] sm:$0xff]
        %v699 = vld [vmem:[#allocation8 + $0x298] sm:$0xff]
        %v700 = vld [vmem:[#allocation8 + $0x2a0] sm:$0xff]
        %v701 = vld [vmem:[#allocation8 + $0x2a8] sm:$0xff]
        %v702 = vld [vmem:[#allocation8 + $0x2b0] sm:$0xff]
        %v703 = vld [vmem:[#allocation8 + $0x2b8] sm:$0xff]
        %v704 = vld [vmem:[#allocation8 + $0x2c0] sm:$0xff]
        %v705 = vld [vmem:[#allocation8 + $0x2c8] sm:$0xff]
        %v706 = vld [vmem:[#allocation8 + $0x2d0] sm:$0xff]
        %v707 = vld [vmem:[#allocation8 + $0x2d8] sm:$0xff]
        %v708 = vld [vmem:[#allocation8 + $0x2e0] sm:$0xff]
        %v709 = vld [vmem:[#allocation8 + $0x2e8] sm:$0xff]
        %v710 = vld [vmem:[#allocation8 + $0x2f0] sm:$0xff]
        %v711 = vld [vmem:[#allocation8 + $0x2f8] sm:$0xff]
        %v712 = vld [vmem:[#allocation8 + $0x300] sm:$0xff]
        %v713 = vld [vmem:[#allocation8 + $0x308] sm:$0xff]
        %v714 = vld [vmem:[#allocation8 + $0x310] sm:$0xff]
        %v715 = vld [vmem:[#allocation8 + $0x318] sm:$0xff]
        %v716 = vld [vmem:[#allocation8 + $0x320] sm:$0xff]
        %v717 = vld [vmem:[#allocation8 + $0x328] sm:$0xff]
        %v718 = vld [vmem:[#allocation8 + $0x330] sm:$0xff]
        %v719 = vld [vmem:[#allocation8 + $0x338] sm:$0xff]
        %v720 = vld [vmem:[#allocation8 + $0x340] sm:$0xff]
        %v721 = vld [vmem:[#allocation8 + $0x348] sm:$0xff]
        %v722 = vld [vmem:[#allocation8 + $0x350] sm:$0xff]
        %v723 = vld [vmem:[#allocation8 + $0x358] sm:$0xff]
        %v724 = vld [vmem:[#allocation8 + $0x360] sm:$0xff]
        %v725 = vld [vmem:[#allocation8 + $0x368] sm:$0xff]
        %v726 = vld [vmem:[#allocation8 + $0x370] sm:$0xff]
        %v727 = vld [vmem:[#allocation8 + $0x378] sm:$0xff]
        %v728 = vld [vmem:[#allocation8 + $0x380] sm:$0xff]
        %v729 = vld [vmem:[#allocation8 + $0x388] sm:$0xff]
        %v730 = vld [vmem:[#allocation8 + $0x390] sm:$0xff]
        %v731 = vld [vmem:[#allocation8 + $0x398] sm:$0xff]
        %v732 = vld [vmem:[#allocation8 + $0x3a0] sm:$0xff]
        %v733 = vld [vmem:[#allocation8 + $0x3a8] sm:$0xff]
        %v734 = vld [vmem:[#allocation8 + $0x3b0] sm:$0xff]
        %v735 = vld [vmem:[#allocation8 + $0x3b8] sm:$0xff]
        %v736 = vld [vmem:[#allocation8 + $0x3c0] sm:$0xff]
        %v737 = vld [vmem:[#allocation8 + $0x3c8] sm:$0xff]
        %v738 = vld [vmem:[#allocation8 + $0x3d0] sm:$0xff]
        %v739 = vld [vmem:[#allocation8 + $0x3d8] sm:$0xff]
        %v740 = vld [vmem:[#allocation8 + $0x3e0] sm:$0xff]
        %v741 = vld [vmem:[#allocation8 + $0x3e8] sm:$0xff]
        %v742 = vld [vmem:[#allocation8 + $0x3f0] sm:$0xff]
        %v743 = vld [vmem:[#allocation8 + $0x3f8] sm:$0xff]
        %v744 = vld [vmem:[#allocation10] sm:$0xff]
        %v745 = vld [vmem:[#allocation10 + $0x8] sm:$0xff]
        %v746 = vld [vmem:[#allocation10 + $0x10] sm:$0xff]
        %v747 = vld [vmem:[#allocation10 + $0x18] sm:$0xff]
        %v748 = vld [vmem:[#allocation10 + $0x20] sm:$0xff]
        %v749 = vld [vmem:[#allocation10 + $0x28] sm:$0xff]
        %v750 = vld [vmem:[#allocation10 + $0x30] sm:$0xff]
        %v751 = vld [vmem:[#allocation10 + $0x38] sm:$0xff]
        %v752 = vld [vmem:[#allocation10 + $0x40] sm:$0xff]
        %v753 = vld [vmem:[#allocation10 + $0x48] sm:$0xff]
        %v754 = vld [vmem:[#allocation10 + $0x50] sm:$0xff]
        %v755 = vld [vmem:[#allocation10 + $0x58] sm:$0xff]
        %v756 = vld [vmem:[#allocation10 + $0x60] sm:$0xff]
        %v757 = vld [vmem:[#allocation10 + $0x68] sm:$0xff]
        %v758 = vld [vmem:[#allocation10 + $0x70] sm:$0xff]
        %v759 = vld [vmem:[#allocation10 + $0x78] sm:$0xff]
        %v760 = vld [vmem:[#allocation10 + $0x80] sm:$0xff]
        %v761 = vld [vmem:[#allocation10 + $0x88] sm:$0xff]
        %v762 = vld [vmem:[#allocation10 + $0x90] sm:$0xff]
        %v763 = vld [vmem:[#allocation10 + $0x98] sm:$0xff]
        %v764 = vld [vmem:[#allocation10 + $0xa0] sm:$0xff]
        %v765 = vld [vmem:[#allocation10 + $0xa8] sm:$0xff]
        %v766 = vld [vmem:[#allocation10 + $0xb0] sm:$0xff]
        %v767 = vld [vmem:[#allocation10 + $0xb8] sm:$0xff]
        %v768 = vld [vmem:[#allocation10 + $0xc0] sm:$0xff]
        %v769 = vld [vmem:[#allocation10 + $0xc8] sm:$0xff]
        %v770 = vld [vmem:[#allocation10 + $0xd0] sm:$0xff]
        %v771 = vld [vmem:[#allocation10 + $0xd8] sm:$0xff]
        %v772 = vld [vmem:[#allocation10 + $0xe0] sm:$0xff]
        %v773 = vld [vmem:[#allocation10 + $0xe8] sm:$0xff]
        %v774 = vld [vmem:[#allocation10 + $0xf0] sm:$0xff]
        %v775 = vld [vmem:[#allocation10 + $0xf8] sm:$0xff]
        %v776 = vld [vmem:[#allocation10 + $0x100] sm:$0xff]
        %v777 = vld [vmem:[#allocation10 + $0x108] sm:$0xff]
        %v778 = vld [vmem:[#allocation10 + $0x110] sm:$0xff]
        %v779 = vld [vmem:[#allocation10 + $0x118] sm:$0xff]
        %v780 = vld [vmem:[#allocation10 + $0x120] sm:$0xff]
        %v781 = vld [vmem:[#allocation10 + $0x128] sm:$0xff]
        %v782 = vld [vmem:[#allocation10 + $0x130] sm:$0xff]
        %v783 = vld [vmem:[#allocation10 + $0x138] sm:$0xff]
        %v784 = vld [vmem:[#allocation10 + $0x140] sm:$0xff]
        %v785 = vld [vmem:[#allocation10 + $0x148] sm:$0xff]
        %v786 = vld [vmem:[#allocation10 + $0x150] sm:$0xff]
        %v787 = vld [vmem:[#allocation10 + $0x158] sm:$0xff]
        %v788 = vld [vmem:[#allocation10 + $0x160] sm:$0xff]
        %v789 = vld [vmem:[#allocation10 + $0x168] sm:$0xff]
        %v790 = vld [vmem:[#allocation10 + $0x170] sm:$0xff]
        %v791 = vld [vmem:[#allocation10 + $0x178] sm:$0xff]
        %v792 = vld [vmem:[#allocation10 + $0x180] sm:$0xff]
        %v793 = vld [vmem:[#allocation10 + $0x188] sm:$0xff]
        %v794 = vld [vmem:[#allocation10 + $0x190] sm:$0xff]
        %v795 = vld [vmem:[#allocation10 + $0x198] sm:$0xff]
        %v796 = vld [vmem:[#allocation10 + $0x1a0] sm:$0xff]
        %v797 = vld [vmem:[#allocation10 + $0x1a8] sm:$0xff]
        %v798 = vld [vmem:[#allocation10 + $0x1b0] sm:$0xff]
        %v799 = vld [vmem:[#allocation10 + $0x1b8] sm:$0xff]
        %v800 = vld [vmem:[#allocation10 + $0x1c0] sm:$0xff]
        %v801 = vld [vmem:[#allocation10 + $0x1c8] sm:$0xff]
        %v802 = vld [vmem:[#allocation10 + $0x1d0] sm:$0xff]
        %v803 = vld [vmem:[#allocation10 + $0x1d8] sm:$0xff]
        %v804 = vld [vmem:[#allocation10 + $0x1e0] sm:$0xff]
        %v805 = vld [vmem:[#allocation10 + $0x1e8] sm:$0xff]
        %v806 = vld [vmem:[#allocation10 + $0x1f0] sm:$0xff]
        %v807 = vld [vmem:[#allocation10 + $0x1f8] sm:$0xff]
        %808 = vmatprep.subr.mxu0 %v617
        %809 = vmatpush1.msra.mxu0 %v616
        %810 = vmatprep.subr.mxu0 %v621
        %811 = vmatpush1.msra.mxu0 %v620
        %812 = vmatprep.subr.mxu0 %v625
        %813 = vmatpush1.msra.mxu0 %v624
        %814 = vmatprep.subr.mxu0 %v629
        %815 = vmatpush1.msra.mxu0 %v628
        %816 = vmatprep.subr.mxu0 %v633
        %817 = vmatpush1.msra.mxu0 %v632
        %818 = vmatprep.subr.mxu0 %v637
        %819 = vmatpush1.msra.mxu0 %v636
        %820 = vmatprep.subr.mxu0 %v641
        %821 = vmatpush1.msra.mxu0 %v640
        %822 = vmatprep.subr.mxu0 %v645
        %823 = vmatpush1.msra.mxu0 %v644
        %824 = vmatprep.subr.mxu0 %v649
        %825 = vmatpush1.msra.mxu0 %v648
        %826 = vmatprep.subr.mxu0 %v653
        %827 = vmatpush1.msra.mxu0 %v652
        %828 = vmatprep.subr.mxu0 %v657
        %829 = vmatpush1.msra.mxu0 %v656
        %830 = vmatprep.subr.mxu0 %v661
        %831 = vmatpush1.msra.mxu0 %v660
        %832 = vmatprep.subr.mxu0 %v665
        %833 = vmatpush1.msra.mxu0 %v664
        %834 = vmatprep.subr.mxu0 %v669
        %835 = vmatpush1.msra.mxu0 %v668
        %836 = vmatprep.subr.mxu0 %v673
        %837 = vmatpush1.msra.mxu0 %v672
        %838 = vmatprep.subr.mxu0 %v677
        %839 = vmatpush1.msra.mxu0 %v676
        %840 = vmatprep.subr.mxu0 %v681
        %841 = vmatpush1.msra.mxu0 %v680
        %842 = vmatprep.subr.mxu0 %v685
        %843 = vmatpush1.msra.mxu0 %v684
        %844 = vmatprep.subr.mxu0 %v689
        %845 = vmatpush1.msra.mxu0 %v688
        %846 = vmatprep.subr.mxu0 %v693
        %847 = vmatpush1.msra.mxu0 %v692
        %848 = vmatprep.subr.mxu0 %v697
        %849 = vmatpush1.msra.mxu0 %v696
        %850 = vmatprep.subr.mxu0 %v701
        %851 = vmatpush1.msra.mxu0 %v700
        %852 = vmatprep.subr.mxu0 %v705
        %853 = vmatpush1.msra.mxu0 %v704
        %854 = vmatprep.subr.mxu0 %v709
        %855 = vmatpush1.msra.mxu0 %v708
        %856 = vmatprep.subr.mxu0 %v713
        %857 = vmatpush1.msra.mxu0 %v712
        %858 = vmatprep.subr.mxu0 %v717
        %859 = vmatpush1.msra.mxu0 %v716
        %860 = vmatprep.subr.mxu0 %v721
        %861 = vmatpush1.msra.mxu0 %v720
        %862 = vmatprep.subr.mxu0 %v725
        %863 = vmatpush1.msra.mxu0 %v724
        %864 = vmatprep.subr.mxu0 %v729
        %865 = vmatpush1.msra.mxu0 %v728
        %866 = vmatprep.subr.mxu0 %v733
        %867 = vmatpush1.msra.mxu0 %v732
        %868 = vmatprep.subr.mxu0 %v737
        %869 = vmatpush1.msra.mxu0 %v736
        %870 = vmatprep.subr.mxu0 %v741
        %871 = vmatpush1.msra.mxu0 %v740
        %872 = vmatprep.mubr.f32.mxu0 0.0
        %873 = vmatmul.mubr.f32.gmra.mrb[0].mxu0 0.0
        %v874 = vpop.f32.mrb[0].mxu0
        %v875 = vadd.f32 0.0, %v874
        %v876 = vpop.f32.mrb[0].mxu0
        %v877 = vadd.f32 0.0, %v876
        %878 = vdwg.mxu0
        %879 = vmatprep.subr.mxu0 %v619
        %880 = vmatpush1.msra.mxu0 %v618
        %881 = vmatprep.subr.mxu0 %v623
        %882 = vmatpush1.msra.mxu0 %v622
        %883 = vmatprep.subr.mxu0 %v627
        %884 = vmatpush1.msra.mxu0 %v626
        %885 = vmatprep.subr.mxu0 %v631
        %886 = vmatpush1.msra.mxu0 %v630
        %887 = vmatprep.subr.mxu0 %v635
        %888 = vmatpush1.msra.mxu0 %v634
        %889 = vmatprep.subr.mxu0 %v639
        %890 = vmatpush1.msra.mxu0 %v638
        %891 = vmatprep.subr.mxu0 %v643
        %892 = vmatpush1.msra.mxu0 %v642
        %893 = vmatprep.subr.mxu0 %v647
        %894 = vmatpush1.msra.mxu0 %v646
        %895 = vmatprep.subr.mxu0 %v651
        %896 = vmatpush1.msra.mxu0 %v650
        %897 = vmatprep.subr.mxu0 %v655
        %898 = vmatpush1.msra.mxu0 %v654
        %899 = vmatprep.subr.mxu0 %v659
        %900 = vmatpush1.msra.mxu0 %v658
        %901 = vmatprep.subr.mxu0 %v663
        %902 = vmatpush1.msra.mxu0 %v662
        %903 = vmatprep.subr.mxu0 %v667
        %904 = vmatpush1.msra.mxu0 %v666
        %905 = vmatprep.subr.mxu0 %v671
        %906 = vmatpush1.msra.mxu0 %v670
        %907 = vmatprep.subr.mxu0 %v675
        %908 = vmatpush1.msra.mxu0 %v674
        %909 = vmatprep.subr.mxu0 %v679
        %910 = vmatpush1.msra.mxu0 %v678
        %911 = vmatprep.subr.mxu0 %v683
        %912 = vmatpush1.msra.mxu0 %v682
        %913 = vmatprep.subr.mxu0 %v687
        %914 = vmatpush1.msra.mxu0 %v686
        %915 = vmatprep.subr.mxu0 %v691
        %916 = vmatpush1.msra.mxu0 %v690
        %917 = vmatprep.subr.mxu0 %v695
        %918 = vmatpush1.msra.mxu0 %v694
        %919 = vmatprep.subr.mxu0 %v699
        %920 = vmatpush1.msra.mxu0 %v698
        %921 = vmatprep.subr.mxu0 %v703
        %922 = vmatpush1.msra.mxu0 %v702
        %923 = vmatprep.subr.mxu0 %v707
        %924 = vmatpush1.msra.mxu0 %v706
        %925 = vmatprep.subr.mxu0 %v711
        %926 = vmatpush1.msra.mxu0 %v710
        %927 = vmatprep.subr.mxu0 %v715
        %928 = vmatpush1.msra.mxu0 %v714
        %929 = vmatprep.subr.mxu0 %v719
        %930 = vmatpush1.msra.mxu0 %v718
        %931 = vmatprep.subr.mxu0 %v723
        %932 = vmatpush1.msra.mxu0 %v722
        %933 = vmatprep.subr.mxu0 %v727
        %934 = vmatpush1.msra.mxu0 %v726
        %935 = vmatprep.subr.mxu0 %v731
        %936 = vmatpush1.msra.mxu0 %v730
        %937 = vmatprep.subr.mxu0 %v735
        %938 = vmatpush1.msra.mxu0 %v734
        %939 = vmatprep.subr.mxu0 %v739
        %940 = vmatpush1.msra.mxu0 %v738
        %941 = vmatprep.subr.mxu0 %v743
        %942 = vmatpush1.msra.mxu0 %v742
        %943 = vmatprep.mubr.f32.mxu0 0.0
        %944 = vmatmul.mubr.f32.gmra.mrb[0].mxu0 0.0
        %v945 = vpop.f32.mrb[0].mxu0
        %v946 = vadd.f32 0.0, %v945
        %v947 = vpop.f32.mrb[0].mxu0
        %v948 = vadd.f32 0.0, %v947
        %949 = vdwg.mxu0
        %v950 = vadd.f32 %v454, %v875
        %v951 = vadd.f32 %v456, %v877
        %v952 = vadd.f32 %v525, %v946
        %v953 = vadd.f32 %v527, %v948
        %v954 = vxor.u32 %v950, 2147483648
        %v955 = vxor.u32 %v951, 2147483648
        %v956 = vxor.u32 %v952, 2147483648
        %v957 = vxor.u32 %v953, 2147483648
        %v958 = vmul.f32 %v954, 1.442695
        %v959 = vpow.pop %v958
        %v960 = vmul.f32 %v955, 1.442695
        %v961 = vpow.pop %v960
        %v962 = vmul.f32 %v956, 1.442695
        %v963 = vpow.pop %v962
        %v964 = vmul.f32 %v957, 1.442695
        %v965 = vpow.pop %v964
        %v966 = vadd.f32 %v959, 1.0
        %v967 = vadd.f32 %v961, 1.0
        %v968 = vadd.f32 %v963, 1.0
        %v969 = vadd.f32 %v965, 1.0
        %v970 = vrcp.pop %v966
        %v971 = vmul.f32 1.0, %v970
        %v972 = vrcp.pop %v967
        %v973 = vmul.f32 1.0, %v972
        %v974 = vrcp.pop %v968
        %v975 = vmul.f32 1.0, %v974
        %v976 = vrcp.pop %v969
        %v977 = vmul.f32 1.0, %v976
        %v978 = vmul.f32 %v971, 0.0
        %v979 = vmul.f32 %v973, 0.0
        %980 = vmatprep.subr.mxu0 %v745
        %981 = vmatpush1.msra.mxu0 %v744
        %982 = vmatprep.subr.mxu0 %v747
        %983 = vmatpush1.msra.mxu0 %v746
        %984 = vmatprep.subr.mxu0 %v749
        %985 = vmatpush1.msra.mxu0 %v748
        %986 = vmatprep.subr.mxu0 %v751
        %987 = vmatpush1.msra.mxu0 %v750
        %988 = vmatprep.subr.mxu0 %v753
        %989 = vmatpush1.msra.mxu0 %v752
        %990 = vmatprep.subr.mxu0 %v755
        %991 = vmatpush1.msra.mxu0 %v754
        %992 = vmatprep.subr.mxu0 %v757
        %993 = vmatpush1.msra.mxu0 %v756
        %994 = vmatprep.subr.mxu0 %v759
        %995 = vmatpush1.msra.mxu0 %v758
        %996 = vmatprep.subr.mxu0 %v761
        %997 = vmatpush1.msra.mxu0 %v760
        %998 = vmatprep.subr.mxu0 %v763
        %999 = vmatpush1.msra.mxu0 %v762
        %1000 = vmatprep.subr.mxu0 %v765
        %1001 = vmatpush1.msra.mxu0 %v764
        %1002 = vmatprep.subr.mxu0 %v767
        %1003 = vmatpush1.msra.mxu0 %v766
        %1004 = vmatprep.subr.mxu0 %v769
        %1005 = vmatpush1.msra.mxu0 %v768
        %1006 = vmatprep.subr.mxu0 %v771
        %1007 = vmatpush1.msra.mxu0 %v770
        %1008 = vmatprep.subr.mxu0 %v773
        %1009 = vmatpush1.msra.mxu0 %v772
        %1010 = vmatprep.subr.mxu0 %v775
        %1011 = vmatpush1.msra.mxu0 %v774
        %1012 = vmatprep.subr.mxu0 %v777
        %1013 = vmatpush1.msra.mxu0 %v776
        %1014 = vmatprep.subr.mxu0 %v779
        %1015 = vmatpush1.msra.mxu0 %v778
        %1016 = vmatprep.subr.mxu0 %v781
        %1017 = vmatpush1.msra.mxu0 %v780
        %1018 = vmatprep.subr.mxu0 %v783
        %1019 = vmatpush1.msra.mxu0 %v782
        %1020 = vmatprep.subr.mxu0 %v785
        %1021 = vmatpush1.msra.mxu0 %v784
        %1022 = vmatprep.subr.mxu0 %v787
        %1023 = vmatpush1.msra.mxu0 %v786
        %1024 = vmatprep.subr.mxu0 %v789
        %1025 = vmatpush1.msra.mxu0 %v788
        %1026 = vmatprep.subr.mxu0 %v791
        %1027 = vmatpush1.msra.mxu0 %v790
        %1028 = vmatprep.subr.mxu0 %v793
        %1029 = vmatpush1.msra.mxu0 %v792
        %1030 = vmatprep.subr.mxu0 %v795
        %1031 = vmatpush1.msra.mxu0 %v794
        %1032 = vmatprep.subr.mxu0 %v797
        %1033 = vmatpush1.msra.mxu0 %v796
        %1034 = vmatprep.subr.mxu0 %v799
        %1035 = vmatpush1.msra.mxu0 %v798
        %1036 = vmatprep.subr.mxu0 %v801
        %1037 = vmatpush1.msra.mxu0 %v800
        %1038 = vmatprep.subr.mxu0 %v803
        %1039 = vmatpush1.msra.mxu0 %v802
        %1040 = vmatprep.subr.mxu0 %v805
        %1041 = vmatpush1.msra.mxu0 %v804
        %1042 = vmatprep.subr.mxu0 %v807
        %1043 = vmatpush1.msra.mxu0 %v806
        %1044 = vmatprep.mubr.f32.mxu0 %v979
        %1045 = vmatmul.mubr.f32.gmra.mrb[0].mxu0 %v978
        %v1046 = vpop.f32.mrb[0].mxu0
        %v1047 = vadd.f32 0.0, %v1046
        %v1048 = vpop.f32.mrb[0].mxu0
        %v1049 = vadd.f32 0.0, %v1048
        %1050 = vdwg.mxu0
        %v1051 = vadd.f32 %v612, %v1047
        %v1052 = vadd.f32 %v614, %v1049
        %v1053 = vtanh.pop %v1051
        %v1054 = vtanh.pop %v1052
        %v1055 = vmul.f32 %v975, 0.0
        %v1056 = vmul.f32 %v977, 0.0
        %v1057 = vsub.f32 1.0, %v975
        %v1058 = vsub.f32 1.0, %v977
        %v1059 = vmul.f32 %v1057, %v1053
        %v1060 = vmul.f32 %v1058, %v1054
        %v1061 = vadd.f32 %v1055, %v1059
        %v1062 = vadd.f32 %v1056, %v1060
        %1063 = vmatprep.subr.mxu0 %v617
        %1064 = vmatpush1.msra.mxu0 %v616
        %1065 = vmatprep.subr.mxu0 %v621
        %1066 = vmatpush1.msra.mxu0 %v620
        %1067 = vmatprep.subr.mxu0 %v625
        %1068 = vmatpush1.msra.mxu0 %v624
        %1069 = vmatprep.subr.mxu0 %v629
        %1070 = vmatpush1.msra.mxu0 %v628
        %1071 = vmatprep.subr.mxu0 %v633
        %1072 = vmatpush1.msra.mxu0 %v632
        %1073 = vmatprep.subr.mxu0 %v637
        %1074 = vmatpush1.msra.mxu0 %v636
        %1075 = vmatprep.subr.mxu0 %v641
        %1076 = vmatpush1.msra.mxu0 %v640
        %1077 = vmatprep.subr.mxu0 %v645
        %1078 = vmatpush1.msra.mxu0 %v644
        %1079 = vmatprep.subr.mxu0 %v649
        %1080 = vmatpush1.msra.mxu0 %v648
        %1081 = vmatprep.subr.mxu0 %v653
        %1082 = vmatpush1.msra.mxu0 %v652
        %1083 = vmatprep.subr.mxu0 %v657
        %1084 = vmatpush1.msra.mxu0 %v656
        %1085 = vmatprep.subr.mxu0 %v661
        %1086 = vmatpush1.msra.mxu0 %v660
        %1087 = vmatprep.subr.mxu0 %v665
        %1088 = vmatpush1.msra.mxu0 %v664
        %1089 = vmatprep.subr.mxu0 %v669
        %1090 = vmatpush1.msra.mxu0 %v668
        %1091 = vmatprep.subr.mxu0 %v673
        %1092 = vmatpush1.msra.mxu0 %v672
        %1093 = vmatprep.subr.mxu0 %v677
        %1094 = vmatpush1.msra.mxu0 %v676
        %1095 = vmatprep.subr.mxu0 %v681
        %1096 = vmatpush1.msra.mxu0 %v680
        %1097 = vmatprep.subr.mxu0 %v685
        %1098 = vmatpush1.msra.mxu0 %v684
        %1099 = vmatprep.subr.mxu0 %v689
        %1100 = vmatpush1.msra.mxu0 %v688
        %1101 = vmatprep.subr.mxu0 %v693
        %1102 = vmatpush1.msra.mxu0 %v692
        %1103 = vmatprep.subr.mxu0 %v697
        %1104 = vmatpush1.msra.mxu0 %v696
        %1105 = vmatprep.subr.mxu0 %v701
        %1106 = vmatpush1.msra.mxu0 %v700
        %1107 = vmatprep.subr.mxu0 %v705
        %1108 = vmatpush1.msra.mxu0 %v704
        %1109 = vmatprep.subr.mxu0 %v709
        %1110 = vmatpush1.msra.mxu0 %v708
        %1111 = vmatprep.subr.mxu0 %v713
        %1112 = vmatpush1.msra.mxu0 %v712
        %1113 = vmatprep.subr.mxu0 %v717
        %1114 = vmatpush1.msra.mxu0 %v716
        %1115 = vmatprep.subr.mxu0 %v721
        %1116 = vmatpush1.msra.mxu0 %v720
        %1117 = vmatprep.subr.mxu0 %v725
        %1118 = vmatpush1.msra.mxu0 %v724
        %1119 = vmatprep.subr.mxu0 %v729
        %1120 = vmatpush1.msra.mxu0 %v728
        %1121 = vmatprep.subr.mxu0 %v733
        %1122 = vmatpush1.msra.mxu0 %v732
        %1123 = vmatprep.subr.mxu0 %v737
        %1124 = vmatpush1.msra.mxu0 %v736
        %1125 = vmatprep.subr.mxu0 %v741
        %1126 = vmatpush1.msra.mxu0 %v740
        %1127 = vmatprep.mubr.f32.mxu0 %v1062
        %1128 = vmatmul.mubr.f32.gmra.mrb[0].mxu0 %v1061
        %v1129 = vpop.f32.mrb[0].mxu0
        %v1130 = vadd.f32 0.0, %v1129
        %v1131 = vpop.f32.mrb[0].mxu0
        %v1132 = vadd.f32 0.0, %v1131
        %1133 = vdwg.mxu0
        %1134 = vmatprep.subr.mxu0 %v619
        %1135 = vmatpush1.msra.mxu0 %v618
        %1136 = vmatprep.subr.mxu0 %v623
        %1137 = vmatpush1.msra.mxu0 %v622
        %1138 = vmatprep.subr.mxu0 %v627
        %1139 = vmatpush1.msra.mxu0 %v626
        %1140 = vmatprep.subr.mxu0 %v631
        %1141 = vmatpush1.msra.mxu0 %v630
        %1142 = vmatprep.subr.mxu0 %v635
        %1143 = vmatpush1.msra.mxu0 %v634
        %1144 = vmatprep.subr.mxu0 %v639
        %1145 = vmatpush1.msra.mxu0 %v638
        %1146 = vmatprep.subr.mxu0 %v643
        %1147 = vmatpush1.msra.mxu0 %v642
        %1148 = vmatprep.subr.mxu0 %v647
        %1149 = vmatpush1.msra.mxu0 %v646
        %1150 = vmatprep.subr.mxu0 %v651
        %1151 = vmatpush1.msra.mxu0 %v650
        %1152 = vmatprep.subr.mxu0 %v655
        %1153 = vmatpush1.msra.mxu0 %v654
        %1154 = vmatprep.subr.mxu0 %v659
        %1155 = vmatpush1.msra.mxu0 %v658
        %1156 = vmatprep.subr.mxu0 %v663
        %1157 = vmatpush1.msra.mxu0 %v662
        %1158 = vmatprep.subr.mxu0 %v667
        %1159 = vmatpush1.msra.mxu0 %v666
        %1160 = vmatprep.subr.mxu0 %v671
        %1161 = vmatpush1.msra.mxu0 %v670
        %1162 = vmatprep.subr.mxu0 %v675
        %1163 = vmatpush1.msra.mxu0 %v674
        %1164 = vmatprep.subr.mxu0 %v679
        %1165 = vmatpush1.msra.mxu0 %v678
        %1166 = vmatprep.subr.mxu0 %v683
        %1167 = vmatpush1.msra.mxu0 %v682
        %1168 = vmatprep.subr.mxu0 %v687
        %1169 = vmatpush1.msra.mxu0 %v686
        %1170 = vmatprep.subr.mxu0 %v691
        %1171 = vmatpush1.msra.mxu0 %v690
        %1172 = vmatprep.subr.mxu0 %v695
        %1173 = vmatpush1.msra.mxu0 %v694
        %1174 = vmatprep.subr.mxu0 %v699
        %1175 = vmatpush1.msra.mxu0 %v698
        %1176 = vmatprep.subr.mxu0 %v703
        %1177 = vmatpush1.msra.mxu0 %v702
        %1178 = vmatprep.subr.mxu0 %v707
        %1179 = vmatpush1.msra.mxu0 %v706
        %1180 = vmatprep.subr.mxu0 %v711
        %1181 = vmatpush1.msra.mxu0 %v710
        %1182 = vmatprep.subr.mxu0 %v715
        %1183 = vmatpush1.msra.mxu0 %v714
        %1184 = vmatprep.subr.mxu0 %v719
        %1185 = vmatpush1.msra.mxu0 %v718
        %1186 = vmatprep.subr.mxu0 %v723
        %1187 = vmatpush1.msra.mxu0 %v722
        %1188 = vmatprep.subr.mxu0 %v727
        %1189 = vmatpush1.msra.mxu0 %v726
        %1190 = vmatprep.subr.mxu0 %v731
        %1191 = vmatpush1.msra.mxu0 %v730
        %1192 = vmatprep.subr.mxu0 %v735
        %1193 = vmatpush1.msra.mxu0 %v734
        %1194 = vmatprep.subr.mxu0 %v739
        %1195 = vmatpush1.msra.mxu0 %v738
        %1196 = vmatprep.subr.mxu0 %v743
        %1197 = vmatpush1.msra.mxu0 %v742
        %1198 = vmatprep.mubr.f32.mxu0 %v1062
        %1199 = vmatmul.mubr.f32.gmra.mrb[0].mxu0 %v1061
        %v1200 = vpop.f32.mrb[0].mxu0
        %v1201 = vadd.f32 0.0, %v1200
        %v1202 = vpop.f32.mrb[0].mxu0
        %v1203 = vadd.f32 0.0, %v1202
        %1204 = vdwg.mxu0
        %v1209 = vrot.slane %v1130, 7
        %v1210 = vrot.slane %v1132, 7
        %v1211 = vrot.slane %v1201, 7
        %v1212 = vrot.slane %v1203, 7
        %v1217 = vadd.f32 %v454, %v1209
        %v1218 = vadd.f32 %v456, %v1210
        %v1219 = vadd.f32 %v525, %v1211
        %v1220 = vadd.f32 %v527, %v1212
        %v1221 = vxor.u32 %v1217, 2147483648
        %v1222 = vxor.u32 %v1218, 2147483648
        %v1223 = vxor.u32 %v1219, 2147483648
        %v1224 = vxor.u32 %v1220, 2147483648
        %v1225 = vmul.f32 %v1221, 1.442695
        %v1226 = vpow.pop %v1225
        %v1227 = vmul.f32 %v1222, 1.442695
        %v1228 = vpow.pop %v1227
        %v1229 = vmul.f32 %v1223, 1.442695
        %v1230 = vpow.pop %v1229
        %v1231 = vmul.f32 %v1224, 1.442695
        %v1232 = vpow.pop %v1231
        %v1233 = vadd.f32 %v1226, 1.0
        %v1234 = vadd.f32 %v1228, 1.0
        %v1235 = vadd.f32 %v1230, 1.0
        %v1236 = vadd.f32 %v1232, 1.0
        %v1237 = vrcp.pop %v1233
        %v1238 = vmul.f32 1.0, %v1237
        %v1239 = vrcp.pop %v1234
        %v1240 = vmul.f32 1.0, %v1239
        %v1241 = vrcp.pop %v1235
        %v1242 = vmul.f32 1.0, %v1241
        %v1243 = vrcp.pop %v1236
        %v1244 = vmul.f32 1.0, %v1243
        %v1247 = vrot.slane %v1061, 7
        %v1248 = vrot.slane %v1062, 7
        %v1251 = vmul.f32 %v1238, %v1247
        %v1252 = vmul.f32 %v1240, %v1248
        %v1255 = vrot.slane %v1251, 1
        %v1256 = vrot.slane %v1252, 1
        %1259 = vmatprep.subr.mxu0 %v745
        %1260 = vmatpush1.msra.mxu0 %v744
        %1261 = vmatprep.subr.mxu0 %v747
        %1262 = vmatpush1.msra.mxu0 %v746
        %1263 = vmatprep.subr.mxu0 %v749
        %1264 = vmatpush1.msra.mxu0 %v748
        %1265 = vmatprep.subr.mxu0 %v751
        %1266 = vmatpush1.msra.mxu0 %v750
        %1267 = vmatprep.subr.mxu0 %v753
        %1268 = vmatpush1.msra.mxu0 %v752
        %1269 = vmatprep.subr.mxu0 %v755
        %1270 = vmatpush1.msra.mxu0 %v754
        %1271 = vmatprep.subr.mxu0 %v757
        %1272 = vmatpush1.msra.mxu0 %v756
        %1273 = vmatprep.subr.mxu0 %v759
        %1274 = vmatpush1.msra.mxu0 %v758
        %1275 = vmatprep.subr.mxu0 %v761
        %1276 = vmatpush1.msra.mxu0 %v760
        %1277 = vmatprep.subr.mxu0 %v763
        %1278 = vmatpush1.msra.mxu0 %v762
        %1279 = vmatprep.subr.mxu0 %v765
        %1280 = vmatpush1.msra.mxu0 %v764
        %1281 = vmatprep.subr.mxu0 %v767
        %1282 = vmatpush1.msra.mxu0 %v766
        %1283 = vmatprep.subr.mxu0 %v769
        %1284 = vmatpush1.msra.mxu0 %v768
        %1285 = vmatprep.subr.mxu0 %v771
        %1286 = vmatpush1.msra.mxu0 %v770
        %1287 = vmatprep.subr.mxu0 %v773
        %1288 = vmatpush1.msra.mxu0 %v772
        %1289 = vmatprep.subr.mxu0 %v775
        %1290 = vmatpush1.msra.mxu0 %v774
        %1291 = vmatprep.subr.mxu0 %v777
        %1292 = vmatpush1.msra.mxu0 %v776
        %1293 = vmatprep.subr.mxu0 %v779
        %1294 = vmatpush1.msra.mxu0 %v778
        %1295 = vmatprep.subr.mxu0 %v781
        %1296 = vmatpush1.msra.mxu0 %v780
        %1297 = vmatprep.subr.mxu0 %v783
        %1298 = vmatpush1.msra.mxu0 %v782
        %1299 = vmatprep.subr.mxu0 %v785
        %1300 = vmatpush1.msra.mxu0 %v784
        %1301 = vmatprep.subr.mxu0 %v787
        %1302 = vmatpush1.msra.mxu0 %v786
        %1303 = vmatprep.subr.mxu0 %v789
        %1304 = vmatpush1.msra.mxu0 %v788
        %1305 = vmatprep.subr.mxu0 %v791
        %1306 = vmatpush1.msra.mxu0 %v790
        %1307 = vmatprep.subr.mxu0 %v793
        %1308 = vmatpush1.msra.mxu0 %v792
        %1309 = vmatprep.subr.mxu0 %v795
        %1310 = vmatpush1.msra.mxu0 %v794
        %1311 = vmatprep.subr.mxu0 %v797
        %1312 = vmatpush1.msra.mxu0 %v796
        %1313 = vmatprep.subr.mxu0 %v799
        %1314 = vmatpush1.msra.mxu0 %v798
        %1315 = vmatprep.subr.mxu0 %v801
        %1316 = vmatpush1.msra.mxu0 %v800
        %1317 = vmatprep.subr.mxu0 %v803
        %1318 = vmatpush1.msra.mxu0 %v802
        %1319 = vmatprep.subr.mxu0 %v805
        %1320 = vmatpush1.msra.mxu0 %v804
        %1321 = vmatprep.subr.mxu0 %v807
        %1322 = vmatpush1.msra.mxu0 %v806
        %1323 = vmatprep.mubr.f32.mxu0 %v1256
        %1324 = vmatmul.mubr.f32.gmra.mrb[0].mxu0 %v1255
        %v1325 = vpop.f32.mrb[0].mxu0
        %v1326 = vadd.f32 0.0, %v1325
        %v1327 = vpop.f32.mrb[0].mxu0
        %v1328 = vadd.f32 0.0, %v1327
        %1329 = vdwg.mxu0
        %v1332 = vrot.slane %v1326, 7
        %v1333 = vrot.slane %v1328, 7
        %v1336 = vadd.f32 %v612, %v1332
        %v1337 = vadd.f32 %v614, %v1333
        %v1338 = vtanh.pop %v1336
        %v1339 = vtanh.pop %v1337
        %v1340 = vmul.f32 %v1242, %v1247
        %v1341 = vmul.f32 %v1244, %v1248
        %v1342 = vsub.f32 1.0, %v1242
        %v1343 = vsub.f32 1.0, %v1244
        %v1344 = vmul.f32 %v1342, %v1338
        %v1345 = vmul.f32 %v1343, %v1339
        %v1346 = vadd.f32 %v1340, %v1344
        %v1347 = vadd.f32 %v1341, %v1345
        %v1350 = vrot.slane %v1346, 1
        %v1351 = vrot.slane %v1347, 1
        %1354 = vmatprep.subr.mxu0 %v617
        %1355 = vmatpush1.msra.mxu0 %v616
        %1356 = vmatprep.subr.mxu0 %v621
        %1357 = vmatpush1.msra.mxu0 %v620
        %1358 = vmatprep.subr.mxu0 %v625
        %1359 = vmatpush1.msra.mxu0 %v624
        %1360 = vmatprep.subr.mxu0 %v629
        %1361 = vmatpush1.msra.mxu0 %v628
        %1362 = vmatprep.subr.mxu0 %v633
        %1363 = vmatpush1.msra.mxu0 %v632
        %1364 = vmatprep.subr.mxu0 %v637
        %1365 = vmatpush1.msra.mxu0 %v636
        %1366 = vmatprep.subr.mxu0 %v641
        %1367 = vmatpush1.msra.mxu0 %v640
        %1368 = vmatprep.subr.mxu0 %v645
        %1369 = vmatpush1.msra.mxu0 %v644
        %1370 = vmatprep.subr.mxu0 %v649
        %1371 = vmatpush1.msra.mxu0 %v648
        %1372 = vmatprep.subr.mxu0 %v653
        %1373 = vmatpush1.msra.mxu0 %v652
        %1374 = vmatprep.subr.mxu0 %v657
        %1375 = vmatpush1.msra.mxu0 %v656
        %1376 = vmatprep.subr.mxu0 %v661
        %1377 = vmatpush1.msra.mxu0 %v660
        %1378 = vmatprep.subr.mxu0 %v665
        %1379 = vmatpush1.msra.mxu0 %v664
        %1380 = vmatprep.subr.mxu0 %v669
        %1381 = vmatpush1.msra.mxu0 %v668
        %1382 = vmatprep.subr.mxu0 %v673
        %1383 = vmatpush1.msra.mxu0 %v672
        %1384 = vmatprep.subr.mxu0 %v677
        %1385 = vmatpush1.msra.mxu0 %v676
        %1386 = vmatprep.subr.mxu0 %v681
        %1387 = vmatpush1.msra.mxu0 %v680
        %1388 = vmatprep.subr.mxu0 %v685
        %1389 = vmatpush1.msra.mxu0 %v684
        %1390 = vmatprep.subr.mxu0 %v689
        %1391 = vmatpush1.msra.mxu0 %v688
        %1392 = vmatprep.subr.mxu0 %v693
        %1393 = vmatpush1.msra.mxu0 %v692
        %1394 = vmatprep.subr.mxu0 %v697
        %1395 = vmatpush1.msra.mxu0 %v696
        %1396 = vmatprep.subr.mxu0 %v701
        %1397 = vmatpush1.msra.mxu0 %v700
        %1398 = vmatprep.subr.mxu0 %v705
        %1399 = vmatpush1.msra.mxu0 %v704
        %1400 = vmatprep.subr.mxu0 %v709
        %1401 = vmatpush1.msra.mxu0 %v708
        %1402 = vmatprep.subr.mxu0 %v713
        %1403 = vmatpush1.msra.mxu0 %v712
        %1404 = vmatprep.subr.mxu0 %v717
        %1405 = vmatpush1.msra.mxu0 %v716
        %1406 = vmatprep.subr.mxu0 %v721
        %1407 = vmatpush1.msra.mxu0 %v720
        %1408 = vmatprep.subr.mxu0 %v725
        %1409 = vmatpush1.msra.mxu0 %v724
        %1410 = vmatprep.subr.mxu0 %v729
        %1411 = vmatpush1.msra.mxu0 %v728
        %1412 = vmatprep.subr.mxu0 %v733
        %1413 = vmatpush1.msra.mxu0 %v732
        %1414 = vmatprep.subr.mxu0 %v737
        %1415 = vmatpush1.msra.mxu0 %v736
        %1416 = vmatprep.subr.mxu0 %v741
        %1417 = vmatpush1.msra.mxu0 %v740
        %1418 = vmatprep.mubr.f32.mxu0 %v1351
        %1419 = vmatmul.mubr.f32.gmra.mrb[0].mxu0 %v1350
        %v1420 = vpop.f32.mrb[0].mxu0
        %v1421 = vadd.f32 0.0, %v1420
        %v1422 = vpop.f32.mrb[0].mxu0
        %v1423 = vadd.f32 0.0, %v1422
        %1424 = vdwg.mxu0
        %1425 = vmatprep.subr.mxu0 %v619
        %1426 = vmatpush1.msra.mxu0 %v618
        %1427 = vmatprep.subr.mxu0 %v623
        %1428 = vmatpush1.msra.mxu0 %v622
        %1429 = vmatprep.subr.mxu0 %v627
        %1430 = vmatpush1.msra.mxu0 %v626
        %1431 = vmatprep.subr.mxu0 %v631
        %1432 = vmatpush1.msra.mxu0 %v630
        %1433 = vmatprep.subr.mxu0 %v635
        %1434 = vmatpush1.msra.mxu0 %v634
        %1435 = vmatprep.subr.mxu0 %v639
        %1436 = vmatpush1.msra.mxu0 %v638
        %1437 = vmatprep.subr.mxu0 %v643
        %1438 = vmatpush1.msra.mxu0 %v642
        %1439 = vmatprep.subr.mxu0 %v647
        %1440 = vmatpush1.msra.mxu0 %v646
        %1441 = vmatprep.subr.mxu0 %v651
        %1442 = vmatpush1.msra.mxu0 %v650
        %1443 = vmatprep.subr.mxu0 %v655
        %1444 = vmatpush1.msra.mxu0 %v654
        %1445 = vmatprep.subr.mxu0 %v659
        %1446 = vmatpush1.msra.mxu0 %v658
        %1447 = vmatprep.subr.mxu0 %v663
        %1448 = vmatpush1.msra.mxu0 %v662
        %1449 = vmatprep.subr.mxu0 %v667
        %1450 = vmatpush1.msra.mxu0 %v666
        %1451 = vmatprep.subr.mxu0 %v671
        %1452 = vmatpush1.msra.mxu0 %v670
        %1453 = vmatprep.subr.mxu0 %v675
        %1454 = vmatpush1.msra.mxu0 %v674
        %1455 = vmatprep.subr.mxu0 %v679
        %1456 = vmatpush1.msra.mxu0 %v678
        %1457 = vmatprep.subr.mxu0 %v683
        %1458 = vmatpush1.msra.mxu0 %v682
        %1459 = vmatprep.subr.mxu0 %v687
        %1460 = vmatpush1.msra.mxu0 %v686
        %1461 = vmatprep.subr.mxu0 %v691
        %1462 = vmatpush1.msra.mxu0 %v690
        %1463 = vmatprep.subr.mxu0 %v695
        %1464 = vmatpush1.msra.mxu0 %v694
        %1465 = vmatprep.subr.mxu0 %v699
        %1466 = vmatpush1.msra.mxu0 %v698
        %1467 = vmatprep.subr.mxu0 %v703
        %1468 = vmatpush1.msra.mxu0 %v702
        %1469 = vmatprep.subr.mxu0 %v707
        %1470 = vmatpush1.msra.mxu0 %v706
        %1471 = vmatprep.subr.mxu0 %v711
        %1472 = vmatpush1.msra.mxu0 %v710
        %1473 = vmatprep.subr.mxu0 %v715
        %1474 = vmatpush1.msra.mxu0 %v714
        %1475 = vmatprep.subr.mxu0 %v719
        %1476 = vmatpush1.msra.mxu0 %v718
        %1477 = vmatprep.subr.mxu0 %v723
        %1478 = vmatpush1.msra.mxu0 %v722
        %1479 = vmatprep.subr.mxu0 %v727
        %1480 = vmatpush1.msra.mxu0 %v726
        %1481 = vmatprep.subr.mxu0 %v731
        %1482 = vmatpush1.msra.mxu0 %v730
        %1483 = vmatprep.subr.mxu0 %v735
        %1484 = vmatpush1.msra.mxu0 %v734
        %1485 = vmatprep.subr.mxu0 %v739
        %1486 = vmatpush1.msra.mxu0 %v738
        %1487 = vmatprep.subr.mxu0 %v743
        %1488 = vmatpush1.msra.mxu0 %v742
        %1489 = vmatprep.mubr.f32.mxu0 %v1351
        %1490 = vmatmul.mubr.f32.gmra.mrb[0].mxu0 %v1350
        %v1491 = vpop.f32.mrb[0].mxu0
        %v1492 = vadd.f32 0.0, %v1491
        %v1493 = vpop.f32.mrb[0].mxu0
        %v1494 = vadd.f32 0.0, %v1493
        %1495 = vdwg.mxu0
        %v1500 = vrot.slane %v1421, 6
        %v1501 = vrot.slane %v1423, 6
        %v1502 = vrot.slane %v1492, 6
        %v1503 = vrot.slane %v1494, 6
        %v1508 = vadd.f32 %v454, %v1500
        %v1509 = vadd.f32 %v456, %v1501
        %v1510 = vadd.f32 %v525, %v1502
        %v1511 = vadd.f32 %v527, %v1503
        %v1512 = vxor.u32 %v1508, 2147483648
        %v1513 = vxor.u32 %v1509, 2147483648
        %v1514 = vxor.u32 %v1510, 2147483648
        %v1515 = vxor.u32 %v1511, 2147483648
        %v1516 = vmul.f32 %v1512, 1.442695
        %v1517 = vpow.pop %v1516
        %v1518 = vmul.f32 %v1513, 1.442695
        %v1519 = vpow.pop %v1518
        %v1520 = vmul.f32 %v1514, 1.442695
        %v1521 = vpow.pop %v1520
        %v1522 = vmul.f32 %v1515, 1.442695
        %v1523 = vpow.pop %v1522
        %v1524 = vadd.f32 %v1517, 1.0
        %v1525 = vadd.f32 %v1519, 1.0
        %v1526 = vadd.f32 %v1521, 1.0
        %v1527 = vadd.f32 %v1523, 1.0
        %v1528 = vrcp.pop %v1524
        %v1529 = vmul.f32 1.0, %v1528
        %v1530 = vrcp.pop %v1525
        %v1531 = vmul.f32 1.0, %v1530
        %v1532 = vrcp.pop %v1526
        %v1533 = vmul.f32 1.0, %v1532
        %v1534 = vrcp.pop %v1527
        %v1535 = vmul.f32 1.0, %v1534
        %v1536 = vrot.slane %v1346, 7
        %v1537 = vrot.slane %v1347, 7
        %v1540 = vmul.f32 %v1529, %v1536
        %v1541 = vmul.f32 %v1531, %v1537
        %v1544 = vrot.slane %v1540, 2
        %v1545 = vrot.slane %v1541, 2
        %1548 = vmatprep.subr.mxu0 %v745
        %1549 = vmatpush1.msra.mxu0 %v744
        %1550 = vmatprep.subr.mxu0 %v747
        %1551 = vmatpush1.msra.mxu0 %v746
        %1552 = vmatprep.subr.mxu0 %v749
        %1553 = vmatpush1.msra.mxu0 %v748
        %1554 = vmatprep.subr.mxu0 %v751
        %1555 = vmatpush1.msra.mxu0 %v750
        %1556 = vmatprep.subr.mxu0 %v753
        %1557 = vmatpush1.msra.mxu0 %v752
        %1558 = vmatprep.subr.mxu0 %v755
        %1559 = vmatpush1.msra.mxu0 %v754
        %1560 = vmatprep.subr.mxu0 %v757
        %1561 = vmatpush1.msra.mxu0 %v756
        %1562 = vmatprep.subr.mxu0 %v759
        %1563 = vmatpush1.msra.mxu0 %v758
        %1564 = vmatprep.subr.mxu0 %v761
        %1565 = vmatpush1.msra.mxu0 %v760
        %1566 = vmatprep.subr.mxu0 %v763
        %1567 = vmatpush1.msra.mxu0 %v762
        %1568 = vmatprep.subr.mxu0 %v765
        %1569 = vmatpush1.msra.mxu0 %v764
        %1570 = vmatprep.subr.mxu0 %v767
        %1571 = vmatpush1.msra.mxu0 %v766
        %1572 = vmatprep.subr.mxu0 %v769
        %1573 = vmatpush1.msra.mxu0 %v768
        %1574 = vmatprep.subr.mxu0 %v771
        %1575 = vmatpush1.msra.mxu0 %v770
        %1576 = vmatprep.subr.mxu0 %v773
        %1577 = vmatpush1.msra.mxu0 %v772
        %1578 = vmatprep.subr.mxu0 %v775
        %1579 = vmatpush1.msra.mxu0 %v774
        %1580 = vmatprep.subr.mxu0 %v777
        %1581 = vmatpush1.msra.mxu0 %v776
        %1582 = vmatprep.subr.mxu0 %v779
        %1583 = vmatpush1.msra.mxu0 %v778
        %1584 = vmatprep.subr.mxu0 %v781
        %1585 = vmatpush1.msra.mxu0 %v780
        %1586 = vmatprep.subr.mxu0 %v783
        %1587 = vmatpush1.msra.mxu0 %v782
        %1588 = vmatprep.subr.mxu0 %v785
        %1589 = vmatpush1.msra.mxu0 %v784
        %1590 = vmatprep.subr.mxu0 %v787
        %1591 = vmatpush1.msra.mxu0 %v786
        %1592 = vmatprep.subr.mxu0 %v789
        %1593 = vmatpush1.msra.mxu0 %v788
        %1594 = vmatprep.subr.mxu0 %v791
        %1595 = vmatpush1.msra.mxu0 %v790
        %1596 = vmatprep.subr.mxu0 %v793
        %1597 = vmatpush1.msra.mxu0 %v792
        %1598 = vmatprep.subr.mxu0 %v795
        %1599 = vmatpush1.msra.mxu0 %v794
        %1600 = vmatprep.subr.mxu0 %v797
        %1601 = vmatpush1.msra.mxu0 %v796
        %1602 = vmatprep.subr.mxu0 %v799
        %1603 = vmatpush1.msra.mxu0 %v798
        %1604 = vmatprep.subr.mxu0 %v801
        %1605 = vmatpush1.msra.mxu0 %v800
        %1606 = vmatprep.subr.mxu0 %v803
        %1607 = vmatpush1.msra.mxu0 %v802
        %1608 = vmatprep.subr.mxu0 %v805
        %1609 = vmatpush1.msra.mxu0 %v804
        %1610 = vmatprep.subr.mxu0 %v807
        %1611 = vmatpush1.msra.mxu0 %v806
        %1612 = vmatprep.mubr.f32.mxu0 %v1545
        %1613 = vmatmul.mubr.f32.gmra.mrb[0].mxu0 %v1544
        %v1614 = vpop.f32.mrb[0].mxu0
        %v1615 = vadd.f32 0.0, %v1614
        %v1616 = vpop.f32.mrb[0].mxu0
        %v1617 = vadd.f32 0.0, %v1616
        %1618 = vdwg.mxu0
        %v1621 = vrot.slane %v1615, 6
        %v1622 = vrot.slane %v1617, 6
        %v1625 = vadd.f32 %v612, %v1621
        %v1626 = vadd.f32 %v614, %v1622
        %v1627 = vtanh.pop %v1625
        %v1628 = vtanh.pop %v1626
        %v1629 = vmul.f32 %v1533, %v1536
        %v1630 = vmul.f32 %v1535, %v1537
        %v1631 = vsub.f32 1.0, %v1533
        %v1632 = vsub.f32 1.0, %v1535
        %v1633 = vmul.f32 %v1631, %v1627
        %v1634 = vmul.f32 %v1632, %v1628
        %v1635 = vadd.f32 %v1629, %v1633
        %v1636 = vadd.f32 %v1630, %v1634
        %v1639 = vrot.slane %v1635, 2
        %v1640 = vrot.slane %v1636, 2
        %1643 = vmatprep.subr.mxu0 %v617
        %1644 = vmatpush1.msra.mxu0 %v616
        %1645 = vmatprep.subr.mxu0 %v621
        %1646 = vmatpush1.msra.mxu0 %v620
        %1647 = vmatprep.subr.mxu0 %v625
        %1648 = vmatpush1.msra.mxu0 %v624
        %1649 = vmatprep.subr.mxu0 %v629
        %1650 = vmatpush1.msra.mxu0 %v628
        %1651 = vmatprep.subr.mxu0 %v633
        %1652 = vmatpush1.msra.mxu0 %v632
        %1653 = vmatprep.subr.mxu0 %v637
        %1654 = vmatpush1.msra.mxu0 %v636
        %1655 = vmatprep.subr.mxu0 %v641
        %1656 = vmatpush1.msra.mxu0 %v640
        %1657 = vmatprep.subr.mxu0 %v645
        %1658 = vmatpush1.msra.mxu0 %v644
        %1659 = vmatprep.subr.mxu0 %v649
        %1660 = vmatpush1.msra.mxu0 %v648
        %1661 = vmatprep.subr.mxu0 %v653
        %1662 = vmatpush1.msra.mxu0 %v652
        %1663 = vmatprep.subr.mxu0 %v657
        %1664 = vmatpush1.msra.mxu0 %v656
        %1665 = vmatprep.subr.mxu0 %v661
        %1666 = vmatpush1.msra.mxu0 %v660
        %1667 = vmatprep.subr.mxu0 %v665
        %1668 = vmatpush1.msra.mxu0 %v664
        %1669 = vmatprep.subr.mxu0 %v669
        %1670 = vmatpush1.msra.mxu0 %v668
        %1671 = vmatprep.subr.mxu0 %v673
        %1672 = vmatpush1.msra.mxu0 %v672
        %1673 = vmatprep.subr.mxu0 %v677
        %1674 = vmatpush1.msra.mxu0 %v676
        %1675 = vmatprep.subr.mxu0 %v681
        %1676 = vmatpush1.msra.mxu0 %v680
        %1677 = vmatprep.subr.mxu0 %v685
        %1678 = vmatpush1.msra.mxu0 %v684
        %1679 = vmatprep.subr.mxu0 %v689
        %1680 = vmatpush1.msra.mxu0 %v688
        %1681 = vmatprep.subr.mxu0 %v693
        %1682 = vmatpush1.msra.mxu0 %v692
        %1683 = vmatprep.subr.mxu0 %v697
        %1684 = vmatpush1.msra.mxu0 %v696
        %1685 = vmatprep.subr.mxu0 %v701
        %1686 = vmatpush1.msra.mxu0 %v700
        %1687 = vmatprep.subr.mxu0 %v705
        %1688 = vmatpush1.msra.mxu0 %v704
        %1689 = vmatprep.subr.mxu0 %v709
        %1690 = vmatpush1.msra.mxu0 %v708
        %1691 = vmatprep.subr.mxu0 %v713
        %1692 = vmatpush1.msra.mxu0 %v712
        %1693 = vmatprep.subr.mxu0 %v717
        %1694 = vmatpush1.msra.mxu0 %v716
        %1695 = vmatprep.subr.mxu0 %v721
        %1696 = vmatpush1.msra.mxu0 %v720
        %1697 = vmatprep.subr.mxu0 %v725
        %1698 = vmatpush1.msra.mxu0 %v724
        %1699 = vmatprep.subr.mxu0 %v729
        %1700 = vmatpush1.msra.mxu0 %v728
        %1701 = vmatprep.subr.mxu0 %v733
        %1702 = vmatpush1.msra.mxu0 %v732
        %1703 = vmatprep.subr.mxu0 %v737
        %1704 = vmatpush1.msra.mxu0 %v736
        %1705 = vmatprep.subr.mxu0 %v741
        %1706 = vmatpush1.msra.mxu0 %v740
        %1707 = vmatprep.mubr.f32.mxu0 %v1640
        %1708 = vmatmul.mubr.f32.gmra.mrb[0].mxu0 %v1639
        %v1709 = vpop.f32.mrb[0].mxu0
        %v1710 = vadd.f32 0.0, %v1709
        %v1711 = vpop.f32.mrb[0].mxu0
        %v1712 = vadd.f32 0.0, %v1711
        %1713 = vdwg.mxu0
        %1714 = vmatprep.subr.mxu0 %v619
        %1715 = vmatpush1.msra.mxu0 %v618
        %1716 = vmatprep.subr.mxu0 %v623
        %1717 = vmatpush1.msra.mxu0 %v622
        %1718 = vmatprep.subr.mxu0 %v627
        %1719 = vmatpush1.msra.mxu0 %v626
        %1720 = vmatprep.subr.mxu0 %v631
        %1721 = vmatpush1.msra.mxu0 %v630
        %1722 = vmatprep.subr.mxu0 %v635
        %1723 = vmatpush1.msra.mxu0 %v634
        %1724 = vmatprep.subr.mxu0 %v639
        %1725 = vmatpush1.msra.mxu0 %v638
        %1726 = vmatprep.subr.mxu0 %v643
        %1727 = vmatpush1.msra.mxu0 %v642
        %1728 = vmatprep.subr.mxu0 %v647
        %1729 = vmatpush1.msra.mxu0 %v646
        %1730 = vmatprep.subr.mxu0 %v651
        %1731 = vmatpush1.msra.mxu0 %v650
        %1732 = vmatprep.subr.mxu0 %v655
        %1733 = vmatpush1.msra.mxu0 %v654
        %1734 = vmatprep.subr.mxu0 %v659
        %1735 = vmatpush1.msra.mxu0 %v658
        %1736 = vmatprep.subr.mxu0 %v663
        %1737 = vmatpush1.msra.mxu0 %v662
        %1738 = vmatprep.subr.mxu0 %v667
        %1739 = vmatpush1.msra.mxu0 %v666
        %1740 = vmatprep.subr.mxu0 %v671
        %1741 = vmatpush1.msra.mxu0 %v670
        %1742 = vmatprep.subr.mxu0 %v675
        %1743 = vmatpush1.msra.mxu0 %v674
        %1744 = vmatprep.subr.mxu0 %v679
        %1745 = vmatpush1.msra.mxu0 %v678
        %1746 = vmatprep.subr.mxu0 %v683
        %1747 = vmatpush1.msra.mxu0 %v682
        %1748 = vmatprep.subr.mxu0 %v687
        %1749 = vmatpush1.msra.mxu0 %v686
        %1750 = vmatprep.subr.mxu0 %v691
        %1751 = vmatpush1.msra.mxu0 %v690
        %1752 = vmatprep.subr.mxu0 %v695
        %1753 = vmatpush1.msra.mxu0 %v694
        %1754 = vmatprep.subr.mxu0 %v699
        %1755 = vmatpush1.msra.mxu0 %v698
        %1756 = vmatprep.subr.mxu0 %v703
        %1757 = vmatpush1.msra.mxu0 %v702
        %1758 = vmatprep.subr.mxu0 %v707
        %1759 = vmatpush1.msra.mxu0 %v706
        %1760 = vmatprep.subr.mxu0 %v711
        %1761 = vmatpush1.msra.mxu0 %v710
        %1762 = vmatprep.subr.mxu0 %v715
        %1763 = vmatpush1.msra.mxu0 %v714
        %1764 = vmatprep.subr.mxu0 %v719
        %1765 = vmatpush1.msra.mxu0 %v718
        %1766 = vmatprep.subr.mxu0 %v723
        %1767 = vmatpush1.msra.mxu0 %v722
        %1768 = vmatprep.subr.mxu0 %v727
        %1769 = vmatpush1.msra.mxu0 %v726
        %1770 = vmatprep.subr.mxu0 %v731
        %1771 = vmatpush1.msra.mxu0 %v730
        %1772 = vmatprep.subr.mxu0 %v735
        %1773 = vmatpush1.msra.mxu0 %v734
        %1774 = vmatprep.subr.mxu0 %v739
        %1775 = vmatpush1.msra.mxu0 %v738
        %1776 = vmatprep.subr.mxu0 %v743
        %1777 = vmatpush1.msra.mxu0 %v742
        %1778 = vmatprep.mubr.f32.mxu0 %v1640
        %1779 = vmatmul.mubr.f32.gmra.mrb[0].mxu0 %v1639
        %v1780 = vpop.f32.mrb[0].mxu0
        %v1781 = vadd.f32 0.0, %v1780
        %v1782 = vpop.f32.mrb[0].mxu0
        %v1783 = vadd.f32 0.0, %v1782
        %1784 = vdwg.mxu0
        %v1789 = vrot.slane %v1710, 5
        %v1790 = vrot.slane %v1712, 5
        %v1791 = vrot.slane %v1781, 5
        %v1792 = vrot.slane %v1783, 5
        %v1797 = vadd.f32 %v454, %v1789
        %v1798 = vadd.f32 %v456, %v1790
        %v1799 = vadd.f32 %v525, %v1791
        %v1800 = vadd.f32 %v527, %v1792
        %v1801 = vxor.u32 %v1797, 2147483648
        %v1802 = vxor.u32 %v1798, 2147483648
        %v1803 = vxor.u32 %v1799, 2147483648
        %v1804 = vxor.u32 %v1800, 2147483648
        %v1805 = vmul.f32 %v1801, 1.442695
        %v1806 = vpow.pop %v1805
        %v1807 = vmul.f32 %v1802, 1.442695
        %v1808 = vpow.pop %v1807
        %v1809 = vmul.f32 %v1803, 1.442695
        %v1810 = vpow.pop %v1809
        %v1811 = vmul.f32 %v1804, 1.442695
        %v1812 = vpow.pop %v1811
        %v1813 = vadd.f32 %v1806, 1.0
        %v1814 = vadd.f32 %v1808, 1.0
        %v1815 = vadd.f32 %v1810, 1.0
        %v1816 = vadd.f32 %v1812, 1.0
        %v1817 = vrcp.pop %v1813
        %v1818 = vmul.f32 1.0, %v1817
        %v1819 = vrcp.pop %v1814
        %v1820 = vmul.f32 1.0, %v1819
        %v1821 = vrcp.pop %v1815
        %v1822 = vmul.f32 1.0, %v1821
        %v1823 = vrcp.pop %v1816
        %v1824 = vmul.f32 1.0, %v1823
        %v1825 = vrot.slane %v1635, 7
        %v1826 = vrot.slane %v1636, 7
        %v1829 = vmul.f32 %v1818, %v1825
        %v1830 = vmul.f32 %v1820, %v1826
        %v1833 = vrot.slane %v1829, 3
        %v1834 = vrot.slane %v1830, 3
        %1837 = vmatprep.subr.mxu0 %v745
        %1838 = vmatpush1.msra.mxu0 %v744
        %1839 = vmatprep.subr.mxu0 %v747
        %1840 = vmatpush1.msra.mxu0 %v746
        %1841 = vmatprep.subr.mxu0 %v749
        %1842 = vmatpush1.msra.mxu0 %v748
        %1843 = vmatprep.subr.mxu0 %v751
        %1844 = vmatpush1.msra.mxu0 %v750
        %1845 = vmatprep.subr.mxu0 %v753
        %1846 = vmatpush1.msra.mxu0 %v752
        %1847 = vmatprep.subr.mxu0 %v755
        %1848 = vmatpush1.msra.mxu0 %v754
        %1849 = vmatprep.subr.mxu0 %v757
        %1850 = vmatpush1.msra.mxu0 %v756
        %1851 = vmatprep.subr.mxu0 %v759
        %1852 = vmatpush1.msra.mxu0 %v758
        %1853 = vmatprep.subr.mxu0 %v761
        %1854 = vmatpush1.msra.mxu0 %v760
        %1855 = vmatprep.subr.mxu0 %v763
        %1856 = vmatpush1.msra.mxu0 %v762
        %1857 = vmatprep.subr.mxu0 %v765
        %1858 = vmatpush1.msra.mxu0 %v764
        %1859 = vmatprep.subr.mxu0 %v767
        %1860 = vmatpush1.msra.mxu0 %v766
        %1861 = vmatprep.subr.mxu0 %v769
        %1862 = vmatpush1.msra.mxu0 %v768
        %1863 = vmatprep.subr.mxu0 %v771
        %1864 = vmatpush1.msra.mxu0 %v770
        %1865 = vmatprep.subr.mxu0 %v773
        %1866 = vmatpush1.msra.mxu0 %v772
        %1867 = vmatprep.subr.mxu0 %v775
        %1868 = vmatpush1.msra.mxu0 %v774
        %1869 = vmatprep.subr.mxu0 %v777
        %1870 = vmatpush1.msra.mxu0 %v776
        %1871 = vmatprep.subr.mxu0 %v779
        %1872 = vmatpush1.msra.mxu0 %v778
        %1873 = vmatprep.subr.mxu0 %v781
        %1874 = vmatpush1.msra.mxu0 %v780
        %1875 = vmatprep.subr.mxu0 %v783
        %1876 = vmatpush1.msra.mxu0 %v782
        %1877 = vmatprep.subr.mxu0 %v785
        %1878 = vmatpush1.msra.mxu0 %v784
        %1879 = vmatprep.subr.mxu0 %v787
        %1880 = vmatpush1.msra.mxu0 %v786
        %1881 = vmatprep.subr.mxu0 %v789
        %1882 = vmatpush1.msra.mxu0 %v788
        %1883 = vmatprep.subr.mxu0 %v791
        %1884 = vmatpush1.msra.mxu0 %v790
        %1885 = vmatprep.subr.mxu0 %v793
        %1886 = vmatpush1.msra.mxu0 %v792
        %1887 = vmatprep.subr.mxu0 %v795
        %1888 = vmatpush1.msra.mxu0 %v794
        %1889 = vmatprep.subr.mxu0 %v797
        %1890 = vmatpush1.msra.mxu0 %v796
        %1891 = vmatprep.subr.mxu0 %v799
        %1892 = vmatpush1.msra.mxu0 %v798
        %1893 = vmatprep.subr.mxu0 %v801
        %1894 = vmatpush1.msra.mxu0 %v800
        %1895 = vmatprep.subr.mxu0 %v803
        %1896 = vmatpush1.msra.mxu0 %v802
        %1897 = vmatprep.subr.mxu0 %v805
        %1898 = vmatpush1.msra.mxu0 %v804
        %1899 = vmatprep.subr.mxu0 %v807
        %1900 = vmatpush1.msra.mxu0 %v806
        %1901 = vmatprep.mubr.f32.mxu0 %v1834
        %1902 = vmatmul.mubr.f32.gmra.mrb[0].mxu0 %v1833
        %v1903 = vpop.f32.mrb[0].mxu0
        %v1904 = vadd.f32 0.0, %v1903
        %v1905 = vpop.f32.mrb[0].mxu0
        %v1906 = vadd.f32 0.0, %v1905
        %1907 = vdwg.mxu0
        %v1910 = vrot.slane %v1904, 5
        %v1911 = vrot.slane %v1906, 5
        %v1914 = vadd.f32 %v612, %v1910
        %v1915 = vadd.f32 %v614, %v1911
        %v1916 = vtanh.pop %v1914
        %v1917 = vtanh.pop %v1915
        %v1918 = vmul.f32 %v1822, %v1825
        %v1919 = vmul.f32 %v1824, %v1826
        %v1920 = vsub.f32 1.0, %v1822
        %v1921 = vsub.f32 1.0, %v1824
        %v1922 = vmul.f32 %v1920, %v1916
        %v1923 = vmul.f32 %v1921, %v1917
        %v1924 = vadd.f32 %v1918, %v1922
        %v1925 = vadd.f32 %v1919, %v1923
        %v1928 = vrot.slane %v1924, 3
        %v1929 = vrot.slane %v1925, 3
        %1932 = vmatprep.subr.mxu0 %v617
        %1933 = vmatpush1.msra.mxu0 %v616
        %1934 = vmatprep.subr.mxu0 %v621
        %1935 = vmatpush1.msra.mxu0 %v620
        %1936 = vmatprep.subr.mxu0 %v625
        %1937 = vmatpush1.msra.mxu0 %v624
        %1938 = vmatprep.subr.mxu0 %v629
        %1939 = vmatpush1.msra.mxu0 %v628
        %1940 = vmatprep.subr.mxu0 %v633
        %1941 = vmatpush1.msra.mxu0 %v632
        %1942 = vmatprep.subr.mxu0 %v637
        %1943 = vmatpush1.msra.mxu0 %v636
        %1944 = vmatprep.subr.mxu0 %v641
        %1945 = vmatpush1.msra.mxu0 %v640
        %1946 = vmatprep.subr.mxu0 %v645
        %1947 = vmatpush1.msra.mxu0 %v644
        %1948 = vmatprep.subr.mxu0 %v649
        %1949 = vmatpush1.msra.mxu0 %v648
        %1950 = vmatprep.subr.mxu0 %v653
        %1951 = vmatpush1.msra.mxu0 %v652
        %1952 = vmatprep.subr.mxu0 %v657
        %1953 = vmatpush1.msra.mxu0 %v656
        %1954 = vmatprep.subr.mxu0 %v661
        %1955 = vmatpush1.msra.mxu0 %v660
        %1956 = vmatprep.subr.mxu0 %v665
        %1957 = vmatpush1.msra.mxu0 %v664
        %1958 = vmatprep.subr.mxu0 %v669
        %1959 = vmatpush1.msra.mxu0 %v668
        %1960 = vmatprep.subr.mxu0 %v673
        %1961 = vmatpush1.msra.mxu0 %v672
        %1962 = vmatprep.subr.mxu0 %v677
        %1963 = vmatpush1.msra.mxu0 %v676
        %1964 = vmatprep.subr.mxu0 %v681
        %1965 = vmatpush1.msra.mxu0 %v680
        %1966 = vmatprep.subr.mxu0 %v685
        %1967 = vmatpush1.msra.mxu0 %v684
        %1968 = vmatprep.subr.mxu0 %v689
        %1969 = vmatpush1.msra.mxu0 %v688
        %1970 = vmatprep.subr.mxu0 %v693
        %1971 = vmatpush1.msra.mxu0 %v692
        %1972 = vmatprep.subr.mxu0 %v697
        %1973 = vmatpush1.msra.mxu0 %v696
        %1974 = vmatprep.subr.mxu0 %v701
        %1975 = vmatpush1.msra.mxu0 %v700
        %1976 = vmatprep.subr.mxu0 %v705
        %1977 = vmatpush1.msra.mxu0 %v704
        %1978 = vmatprep.subr.mxu0 %v709
        %1979 = vmatpush1.msra.mxu0 %v708
        %1980 = vmatprep.subr.mxu0 %v713
        %1981 = vmatpush1.msra.mxu0 %v712
        %1982 = vmatprep.subr.mxu0 %v717
        %1983 = vmatpush1.msra.mxu0 %v716
        %1984 = vmatprep.subr.mxu0 %v721
        %1985 = vmatpush1.msra.mxu0 %v720
        %1986 = vmatprep.subr.mxu0 %v725
        %1987 = vmatpush1.msra.mxu0 %v724
        %1988 = vmatprep.subr.mxu0 %v729
        %1989 = vmatpush1.msra.mxu0 %v728
        %1990 = vmatprep.subr.mxu0 %v733
        %1991 = vmatpush1.msra.mxu0 %v732
        %1992 = vmatprep.subr.mxu0 %v737
        %1993 = vmatpush1.msra.mxu0 %v736
        %1994 = vmatprep.subr.mxu0 %v741
        %1995 = vmatpush1.msra.mxu0 %v740
        %1996 = vmatprep.mubr.f32.mxu0 %v1929
        %1997 = vmatmul.mubr.f32.gmra.mrb[0].mxu0 %v1928
        %v1998 = vpop.f32.mrb[0].mxu0
        %v1999 = vadd.f32 0.0, %v1998
        %v2000 = vpop.f32.mrb[0].mxu0
        %v2001 = vadd.f32 0.0, %v2000
        %2002 = vdwg.mxu0
        %2003 = vmatprep.subr.mxu0 %v619
        %2004 = vmatpush1.msra.mxu0 %v618
        %2005 = vmatprep.subr.mxu0 %v623
        %2006 = vmatpush1.msra.mxu0 %v622
        %2007 = vmatprep.subr.mxu0 %v627
        %2008 = vmatpush1.msra.mxu0 %v626
        %2009 = vmatprep.subr.mxu0 %v631
        %2010 = vmatpush1.msra.mxu0 %v630
        %2011 = vmatprep.subr.mxu0 %v635
        %2012 = vmatpush1.msra.mxu0 %v634
        %2013 = vmatprep.subr.mxu0 %v639
        %2014 = vmatpush1.msra.mxu0 %v638
        %2015 = vmatprep.subr.mxu0 %v643
        %2016 = vmatpush1.msra.mxu0 %v642
        %2017 = vmatprep.subr.mxu0 %v647
        %2018 = vmatpush1.msra.mxu0 %v646
        %2019 = vmatprep.subr.mxu0 %v651
        %2020 = vmatpush1.msra.mxu0 %v650
        %2021 = vmatprep.subr.mxu0 %v655
        %2022 = vmatpush1.msra.mxu0 %v654
        %2023 = vmatprep.subr.mxu0 %v659
        %2024 = vmatpush1.msra.mxu0 %v658
        %2025 = vmatprep.subr.mxu0 %v663
        %2026 = vmatpush1.msra.mxu0 %v662
        %2027 = vmatprep.subr.mxu0 %v667
        %2028 = vmatpush1.msra.mxu0 %v666
        %2029 = vmatprep.subr.mxu0 %v671
        %2030 = vmatpush1.msra.mxu0 %v670
        %2031 = vmatprep.subr.mxu0 %v675
        %2032 = vmatpush1.msra.mxu0 %v674
        %2033 = vmatprep.subr.mxu0 %v679
        %2034 = vmatpush1.msra.mxu0 %v678
        %2035 = vmatprep.subr.mxu0 %v683
        %2036 = vmatpush1.msra.mxu0 %v682
        %2037 = vmatprep.subr.mxu0 %v687
        %2038 = vmatpush1.msra.mxu0 %v686
        %2039 = vmatprep.subr.mxu0 %v691
        %2040 = vmatpush1.msra.mxu0 %v690
        %2041 = vmatprep.subr.mxu0 %v695
        %2042 = vmatpush1.msra.mxu0 %v694
        %2043 = vmatprep.subr.mxu0 %v699
        %2044 = vmatpush1.msra.mxu0 %v698
        %2045 = vmatprep.subr.mxu0 %v703
        %2046 = vmatpush1.msra.mxu0 %v702
        %2047 = vmatprep.subr.mxu0 %v707
        %2048 = vmatpush1.msra.mxu0 %v706
        %2049 = vmatprep.subr.mxu0 %v711
        %2050 = vmatpush1.msra.mxu0 %v710
        %2051 = vmatprep.subr.mxu0 %v715
        %2052 = vmatpush1.msra.mxu0 %v714
        %2053 = vmatprep.subr.mxu0 %v719
        %2054 = vmatpush1.msra.mxu0 %v718
        %2055 = vmatprep.subr.mxu0 %v723
        %2056 = vmatpush1.msra.mxu0 %v722
        %2057 = vmatprep.subr.mxu0 %v727
        %2058 = vmatpush1.msra.mxu0 %v726
        %2059 = vmatprep.subr.mxu0 %v731
        %2060 = vmatpush1.msra.mxu0 %v730
        %2061 = vmatprep.subr.mxu0 %v735
        %2062 = vmatpush1.msra.mxu0 %v734
        %2063 = vmatprep.subr.mxu0 %v739
        %2064 = vmatpush1.msra.mxu0 %v738
        %2065 = vmatprep.subr.mxu0 %v743
        %2066 = vmatpush1.msra.mxu0 %v742
        %2067 = vmatprep.mubr.f32.mxu0 %v1929
        %2068 = vmatmul.mubr.f32.gmra.mrb[0].mxu0 %v1928
        %v2069 = vpop.f32.mrb[0].mxu0
        %v2070 = vadd.f32 0.0, %v2069
        %v2071 = vpop.f32.mrb[0].mxu0
        %v2072 = vadd.f32 0.0, %v2071
        %2073 = vdwg.mxu0
        %v2078 = vrot.slane %v1999, 4
        %v2079 = vrot.slane %v2001, 4
        %v2080 = vrot.slane %v2070, 4
        %v2081 = vrot.slane %v2072, 4
        %v2086 = vadd.f32 %v454, %v2078
        %v2087 = vadd.f32 %v456, %v2079
        %v2088 = vadd.f32 %v525, %v2080
        %v2089 = vadd.f32 %v527, %v2081
        %v2090 = vxor.u32 %v2086, 2147483648
        %v2091 = vxor.u32 %v2087, 2147483648
        %v2092 = vxor.u32 %v2088, 2147483648
        %v2093 = vxor.u32 %v2089, 2147483648
        %v2094 = vmul.f32 %v2090, 1.442695
        %v2095 = vpow.pop %v2094
        %v2096 = vmul.f32 %v2091, 1.442695
        %v2097 = vpow.pop %v2096
        %v2098 = vmul.f32 %v2092, 1.442695
        %v2099 = vpow.pop %v2098
        %v2100 = vmul.f32 %v2093, 1.442695
        %v2101 = vpow.pop %v2100
        %v2102 = vadd.f32 %v2095, 1.0
        %v2103 = vadd.f32 %v2097, 1.0
        %v2104 = vadd.f32 %v2099, 1.0
        %v2105 = vadd.f32 %v2101, 1.0
        %v2106 = vrcp.pop %v2102
        %v2107 = vmul.f32 1.0, %v2106
        %v2108 = vrcp.pop %v2103
        %v2109 = vmul.f32 1.0, %v2108
        %v2110 = vrcp.pop %v2104
        %v2111 = vmul.f32 1.0, %v2110
        %v2112 = vrcp.pop %v2105
        %v2113 = vmul.f32 1.0, %v2112
        %v2114 = vrot.slane %v1924, 7
        %v2115 = vrot.slane %v1925, 7
        %v2118 = vmul.f32 %v2107, %v2114
        %v2119 = vmul.f32 %v2109, %v2115
        %v2122 = vrot.slane %v2118, 4
        %v2123 = vrot.slane %v2119, 4
        %2126 = vmatprep.subr.mxu0 %v745
        %2127 = vmatpush1.msra.mxu0 %v744
        %2128 = vmatprep.subr.mxu0 %v747
        %2129 = vmatpush1.msra.mxu0 %v746
        %2130 = vmatprep.subr.mxu0 %v749
        %2131 = vmatpush1.msra.mxu0 %v748
        %2132 = vmatprep.subr.mxu0 %v751
        %2133 = vmatpush1.msra.mxu0 %v750
        %2134 = vmatprep.subr.mxu0 %v753
        %2135 = vmatpush1.msra.mxu0 %v752
        %2136 = vmatprep.subr.mxu0 %v755
        %2137 = vmatpush1.msra.mxu0 %v754
        %2138 = vmatprep.subr.mxu0 %v757
        %2139 = vmatpush1.msra.mxu0 %v756
        %2140 = vmatprep.subr.mxu0 %v759
        %2141 = vmatpush1.msra.mxu0 %v758
        %2142 = vmatprep.subr.mxu0 %v761
        %2143 = vmatpush1.msra.mxu0 %v760
        %2144 = vmatprep.subr.mxu0 %v763
        %2145 = vmatpush1.msra.mxu0 %v762
        %2146 = vmatprep.subr.mxu0 %v765
        %2147 = vmatpush1.msra.mxu0 %v764
        %2148 = vmatprep.subr.mxu0 %v767
        %2149 = vmatpush1.msra.mxu0 %v766
        %2150 = vmatprep.subr.mxu0 %v769
        %2151 = vmatpush1.msra.mxu0 %v768
        %2152 = vmatprep.subr.mxu0 %v771
        %2153 = vmatpush1.msra.mxu0 %v770
        %2154 = vmatprep.subr.mxu0 %v773
        %2155 = vmatpush1.msra.mxu0 %v772
        %2156 = vmatprep.subr.mxu0 %v775
        %2157 = vmatpush1.msra.mxu0 %v774
        %2158 = vmatprep.subr.mxu0 %v777
        %2159 = vmatpush1.msra.mxu0 %v776
        %2160 = vmatprep.subr.mxu0 %v779
        %2161 = vmatpush1.msra.mxu0 %v778
        %2162 = vmatprep.subr.mxu0 %v781
        %2163 = vmatpush1.msra.mxu0 %v780
        %2164 = vmatprep.subr.mxu0 %v783
        %2165 = vmatpush1.msra.mxu0 %v782
        %2166 = vmatprep.subr.mxu0 %v785
        %2167 = vmatpush1.msra.mxu0 %v784
        %2168 = vmatprep.subr.mxu0 %v787
        %2169 = vmatpush1.msra.mxu0 %v786
        %2170 = vmatprep.subr.mxu0 %v789
        %2171 = vmatpush1.msra.mxu0 %v788
        %2172 = vmatprep.subr.mxu0 %v791
        %2173 = vmatpush1.msra.mxu0 %v790
        %2174 = vmatprep.subr.mxu0 %v793
        %2175 = vmatpush1.msra.mxu0 %v792
        %2176 = vmatprep.subr.mxu0 %v795
        %2177 = vmatpush1.msra.mxu0 %v794
        %2178 = vmatprep.subr.mxu0 %v797
        %2179 = vmatpush1.msra.mxu0 %v796
        %2180 = vmatprep.subr.mxu0 %v799
        %2181 = vmatpush1.msra.mxu0 %v798
        %2182 = vmatprep.subr.mxu0 %v801
        %2183 = vmatpush1.msra.mxu0 %v800
        %2184 = vmatprep.subr.mxu0 %v803
        %2185 = vmatpush1.msra.mxu0 %v802
        %2186 = vmatprep.subr.mxu0 %v805
        %2187 = vmatpush1.msra.mxu0 %v804
        %2188 = vmatprep.subr.mxu0 %v807
        %2189 = vmatpush1.msra.mxu0 %v806
        %2190 = vmatprep.mubr.f32.mxu0 %v2123
        %2191 = vmatmul.mubr.f32.gmra.mrb[0].mxu0 %v2122
        %v2192 = vpop.f32.mrb[0].mxu0
        %v2193 = vadd.f32 0.0, %v2192
        %v2194 = vpop.f32.mrb[0].mxu0
        %v2195 = vadd.f32 0.0, %v2194
        %2196 = vdwg.mxu0
        %v2199 = vrot.slane %v2193, 4
        %v2200 = vrot.slane %v2195, 4
        %v2203 = vadd.f32 %v612, %v2199
        %v2204 = vadd.f32 %v614, %v2200
        %v2205 = vtanh.pop %v2203
        %v2206 = vtanh.pop %v2204
        %v2207 = vmul.f32 %v2111, %v2114
        %v2208 = vmul.f32 %v2113, %v2115
        %v2209 = vsub.f32 1.0, %v2111
        %v2210 = vsub.f32 1.0, %v2113
        %v2211 = vmul.f32 %v2209, %v2205
        %v2212 = vmul.f32 %v2210, %v2206
        %v2213 = vadd.f32 %v2207, %v2211
        %v2214 = vadd.f32 %v2208, %v2212
        %v2217 = vrot.slane %v2213, 4
        %v2218 = vrot.slane %v2214, 4
        %2221 = vmatprep.subr.mxu0 %v617
        %2222 = vmatpush1.msra.mxu0 %v616
        %2223 = vmatprep.subr.mxu0 %v621
        %2224 = vmatpush1.msra.mxu0 %v620
        %2225 = vmatprep.subr.mxu0 %v625
        %2226 = vmatpush1.msra.mxu0 %v624
        %2227 = vmatprep.subr.mxu0 %v629
        %2228 = vmatpush1.msra.mxu0 %v628
        %2229 = vmatprep.subr.mxu0 %v633
        %2230 = vmatpush1.msra.mxu0 %v632
        %2231 = vmatprep.subr.mxu0 %v637
        %2232 = vmatpush1.msra.mxu0 %v636
        %2233 = vmatprep.subr.mxu0 %v641
        %2234 = vmatpush1.msra.mxu0 %v640
        %2235 = vmatprep.subr.mxu0 %v645
        %2236 = vmatpush1.msra.mxu0 %v644
        %2237 = vmatprep.subr.mxu0 %v649
        %2238 = vmatpush1.msra.mxu0 %v648
        %2239 = vmatprep.subr.mxu0 %v653
        %2240 = vmatpush1.msra.mxu0 %v652
        %2241 = vmatprep.subr.mxu0 %v657
        %2242 = vmatpush1.msra.mxu0 %v656
        %2243 = vmatprep.subr.mxu0 %v661
        %2244 = vmatpush1.msra.mxu0 %v660
        %2245 = vmatprep.subr.mxu0 %v665
        %2246 = vmatpush1.msra.mxu0 %v664
        %2247 = vmatprep.subr.mxu0 %v669
        %2248 = vmatpush1.msra.mxu0 %v668
        %2249 = vmatprep.subr.mxu0 %v673
        %2250 = vmatpush1.msra.mxu0 %v672
        %2251 = vmatprep.subr.mxu0 %v677
        %2252 = vmatpush1.msra.mxu0 %v676
        %2253 = vmatprep.subr.mxu0 %v681
        %2254 = vmatpush1.msra.mxu0 %v680
        %2255 = vmatprep.subr.mxu0 %v685
        %2256 = vmatpush1.msra.mxu0 %v684
        %2257 = vmatprep.subr.mxu0 %v689
        %2258 = vmatpush1.msra.mxu0 %v688
        %2259 = vmatprep.subr.mxu0 %v693
        %2260 = vmatpush1.msra.mxu0 %v692
        %2261 = vmatprep.subr.mxu0 %v697
        %2262 = vmatpush1.msra.mxu0 %v696
        %2263 = vmatprep.subr.mxu0 %v701
        %2264 = vmatpush1.msra.mxu0 %v700
        %2265 = vmatprep.subr.mxu0 %v705
        %2266 = vmatpush1.msra.mxu0 %v704
        %2267 = vmatprep.subr.mxu0 %v709
        %2268 = vmatpush1.msra.mxu0 %v708
        %2269 = vmatprep.subr.mxu0 %v713
        %2270 = vmatpush1.msra.mxu0 %v712
        %2271 = vmatprep.subr.mxu0 %v717
        %2272 = vmatpush1.msra.mxu0 %v716
        %2273 = vmatprep.subr.mxu0 %v721
        %2274 = vmatpush1.msra.mxu0 %v720
        %2275 = vmatprep.subr.mxu0 %v725
        %2276 = vmatpush1.msra.mxu0 %v724
        %2277 = vmatprep.subr.mxu0 %v729
        %2278 = vmatpush1.msra.mxu0 %v728
        %2279 = vmatprep.subr.mxu0 %v733
        %2280 = vmatpush1.msra.mxu0 %v732
        %2281 = vmatprep.subr.mxu0 %v737
        %2282 = vmatpush1.msra.mxu0 %v736
        %2283 = vmatprep.subr.mxu0 %v741
        %2284 = vmatpush1.msra.mxu0 %v740
        %2285 = vmatprep.mubr.f32.mxu0 %v2218
        %2286 = vmatmul.mubr.f32.gmra.mrb[0].mxu0 %v2217
        %v2287 = vpop.f32.mrb[0].mxu0
        %v2288 = vadd.f32 0.0, %v2287
        %v2289 = vpop.f32.mrb[0].mxu0
        %v2290 = vadd.f32 0.0, %v2289
        %2291 = vdwg.mxu0
        %2292 = vmatprep.subr.mxu0 %v619
        %2293 = vmatpush1.msra.mxu0 %v618
        %2294 = vmatprep.subr.mxu0 %v623
        %2295 = vmatpush1.msra.mxu0 %v622
        %2296 = vmatprep.subr.mxu0 %v627
        %2297 = vmatpush1.msra.mxu0 %v626
        %2298 = vmatprep.subr.mxu0 %v631
        %2299 = vmatpush1.msra.mxu0 %v630
        %2300 = vmatprep.subr.mxu0 %v635
        %2301 = vmatpush1.msra.mxu0 %v634
        %2302 = vmatprep.subr.mxu0 %v639
        %2303 = vmatpush1.msra.mxu0 %v638
        %2304 = vmatprep.subr.mxu0 %v643
        %2305 = vmatpush1.msra.mxu0 %v642
        %2306 = vmatprep.subr.mxu0 %v647
        %2307 = vmatpush1.msra.mxu0 %v646
        %2308 = vmatprep.subr.mxu0 %v651
        %2309 = vmatpush1.msra.mxu0 %v650
        %2310 = vmatprep.subr.mxu0 %v655
        %2311 = vmatpush1.msra.mxu0 %v654
        %2312 = vmatprep.subr.mxu0 %v659
        %2313 = vmatpush1.msra.mxu0 %v658
        %2314 = vmatprep.subr.mxu0 %v663
        %2315 = vmatpush1.msra.mxu0 %v662
        %2316 = vmatprep.subr.mxu0 %v667
        %2317 = vmatpush1.msra.mxu0 %v666
        %2318 = vmatprep.subr.mxu0 %v671
        %2319 = vmatpush1.msra.mxu0 %v670
        %2320 = vmatprep.subr.mxu0 %v675
        %2321 = vmatpush1.msra.mxu0 %v674
        %2322 = vmatprep.subr.mxu0 %v679
        %2323 = vmatpush1.msra.mxu0 %v678
        %2324 = vmatprep.subr.mxu0 %v683
        %2325 = vmatpush1.msra.mxu0 %v682
        %2326 = vmatprep.subr.mxu0 %v687
        %2327 = vmatpush1.msra.mxu0 %v686
        %2328 = vmatprep.subr.mxu0 %v691
        %2329 = vmatpush1.msra.mxu0 %v690
        %2330 = vmatprep.subr.mxu0 %v695
        %2331 = vmatpush1.msra.mxu0 %v694
        %2332 = vmatprep.subr.mxu0 %v699
        %2333 = vmatpush1.msra.mxu0 %v698
        %2334 = vmatprep.subr.mxu0 %v703
        %2335 = vmatpush1.msra.mxu0 %v702
        %2336 = vmatprep.subr.mxu0 %v707
        %2337 = vmatpush1.msra.mxu0 %v706
        %2338 = vmatprep.subr.mxu0 %v711
        %2339 = vmatpush1.msra.mxu0 %v710
        %2340 = vmatprep.subr.mxu0 %v715
        %2341 = vmatpush1.msra.mxu0 %v714
        %2342 = vmatprep.subr.mxu0 %v719
        %2343 = vmatpush1.msra.mxu0 %v718
        %2344 = vmatprep.subr.mxu0 %v723
        %2345 = vmatpush1.msra.mxu0 %v722
        %2346 = vmatprep.subr.mxu0 %v727
        %2347 = vmatpush1.msra.mxu0 %v726
        %2348 = vmatprep.subr.mxu0 %v731
        %2349 = vmatpush1.msra.mxu0 %v730
        %2350 = vmatprep.subr.mxu0 %v735
        %2351 = vmatpush1.msra.mxu0 %v734
        %2352 = vmatprep.subr.mxu0 %v739
        %2353 = vmatpush1.msra.mxu0 %v738
        %2354 = vmatprep.subr.mxu0 %v743
        %2355 = vmatpush1.msra.mxu0 %v742
        %2356 = vmatprep.mubr.f32.mxu0 %v2218
        %2357 = vmatmul.mubr.f32.gmra.mrb[0].mxu0 %v2217
        %v2358 = vpop.f32.mrb[0].mxu0
        %v2359 = vadd.f32 0.0, %v2358
        %v2360 = vpop.f32.mrb[0].mxu0
        %v2361 = vadd.f32 0.0, %v2360
        %2362 = vdwg.mxu0
        %v2367 = vrot.slane %v2288, 3
        %v2368 = vrot.slane %v2290, 3
        %v2369 = vrot.slane %v2359, 3
        %v2370 = vrot.slane %v2361, 3
        %v2375 = vadd.f32 %v454, %v2367
        %v2376 = vadd.f32 %v456, %v2368
        %v2377 = vadd.f32 %v525, %v2369
        %v2378 = vadd.f32 %v527, %v2370
        %v2379 = vxor.u32 %v2375, 2147483648
        %v2380 = vxor.u32 %v2376, 2147483648
        %v2381 = vxor.u32 %v2377, 2147483648
        %v2382 = vxor.u32 %v2378, 2147483648
        %v2383 = vmul.f32 %v2379, 1.442695
        %v2384 = vpow.pop %v2383
        %v2385 = vmul.f32 %v2380, 1.442695
        %v2386 = vpow.pop %v2385
        %v2387 = vmul.f32 %v2381, 1.442695
        %v2388 = vpow.pop %v2387
        %v2389 = vmul.f32 %v2382, 1.442695
        %v2390 = vpow.pop %v2389
        %v2391 = vadd.f32 %v2384, 1.0
        %v2392 = vadd.f32 %v2386, 1.0
        %v2393 = vadd.f32 %v2388, 1.0
        %v2394 = vadd.f32 %v2390, 1.0
        %v2395 = vrcp.pop %v2391
        %v2396 = vmul.f32 1.0, %v2395
        %v2397 = vrcp.pop %v2392
        %v2398 = vmul.f32 1.0, %v2397
        %v2399 = vrcp.pop %v2393
        %v2400 = vmul.f32 1.0, %v2399
        %v2401 = vrcp.pop %v2394
        %v2402 = vmul.f32 1.0, %v2401
        %v2403 = vrot.slane %v2213, 7
        %v2404 = vrot.slane %v2214, 7
        %v2407 = vmul.f32 %v2396, %v2403
        %v2408 = vmul.f32 %v2398, %v2404
        %v2411 = vrot.slane %v2407, 5
        %v2412 = vrot.slane %v2408, 5
        %2415 = vmatprep.subr.mxu0 %v745
        %2416 = vmatpush1.msra.mxu0 %v744
        %2417 = vmatprep.subr.mxu0 %v747
        %2418 = vmatpush1.msra.mxu0 %v746
        %2419 = vmatprep.subr.mxu0 %v749
        %2420 = vmatpush1.msra.mxu0 %v748
        %2421 = vmatprep.subr.mxu0 %v751
        %2422 = vmatpush1.msra.mxu0 %v750
        %2423 = vmatprep.subr.mxu0 %v753
        %2424 = vmatpush1.msra.mxu0 %v752
        %2425 = vmatprep.subr.mxu0 %v755
        %2426 = vmatpush1.msra.mxu0 %v754
        %2427 = vmatprep.subr.mxu0 %v757
        %2428 = vmatpush1.msra.mxu0 %v756
        %2429 = vmatprep.subr.mxu0 %v759
        %2430 = vmatpush1.msra.mxu0 %v758
        %2431 = vmatprep.subr.mxu0 %v761
        %2432 = vmatpush1.msra.mxu0 %v760
        %2433 = vmatprep.subr.mxu0 %v763
        %2434 = vmatpush1.msra.mxu0 %v762
        %2435 = vmatprep.subr.mxu0 %v765
        %2436 = vmatpush1.msra.mxu0 %v764
        %2437 = vmatprep.subr.mxu0 %v767
        %2438 = vmatpush1.msra.mxu0 %v766
        %2439 = vmatprep.subr.mxu0 %v769
        %2440 = vmatpush1.msra.mxu0 %v768
        %2441 = vmatprep.subr.mxu0 %v771
        %2442 = vmatpush1.msra.mxu0 %v770
        %2443 = vmatprep.subr.mxu0 %v773
        %2444 = vmatpush1.msra.mxu0 %v772
        %2445 = vmatprep.subr.mxu0 %v775
        %2446 = vmatpush1.msra.mxu0 %v774
        %2447 = vmatprep.subr.mxu0 %v777
        %2448 = vmatpush1.msra.mxu0 %v776
        %2449 = vmatprep.subr.mxu0 %v779
        %2450 = vmatpush1.msra.mxu0 %v778
        %2451 = vmatprep.subr.mxu0 %v781
        %2452 = vmatpush1.msra.mxu0 %v780
        %2453 = vmatprep.subr.mxu0 %v783
        %2454 = vmatpush1.msra.mxu0 %v782
        %2455 = vmatprep.subr.mxu0 %v785
        %2456 = vmatpush1.msra.mxu0 %v784
        %2457 = vmatprep.subr.mxu0 %v787
        %2458 = vmatpush1.msra.mxu0 %v786
        %2459 = vmatprep.subr.mxu0 %v789
        %2460 = vmatpush1.msra.mxu0 %v788
        %2461 = vmatprep.subr.mxu0 %v791
        %2462 = vmatpush1.msra.mxu0 %v790
        %2463 = vmatprep.subr.mxu0 %v793
        %2464 = vmatpush1.msra.mxu0 %v792
        %2465 = vmatprep.subr.mxu0 %v795
        %2466 = vmatpush1.msra.mxu0 %v794
        %2467 = vmatprep.subr.mxu0 %v797
        %2468 = vmatpush1.msra.mxu0 %v796
        %2469 = vmatprep.subr.mxu0 %v799
        %2470 = vmatpush1.msra.mxu0 %v798
        %2471 = vmatprep.subr.mxu0 %v801
        %2472 = vmatpush1.msra.mxu0 %v800
        %2473 = vmatprep.subr.mxu0 %v803
        %2474 = vmatpush1.msra.mxu0 %v802
        %2475 = vmatprep.subr.mxu0 %v805
        %2476 = vmatpush1.msra.mxu0 %v804
        %2477 = vmatprep.subr.mxu0 %v807
        %2478 = vmatpush1.msra.mxu0 %v806
        %2479 = vmatprep.mubr.f32.mxu0 %v2412
        %2480 = vmatmul.mubr.f32.gmra.mrb[0].mxu0 %v2411
        %v2481 = vpop.f32.mrb[0].mxu0
        %v2482 = vadd.f32 0.0, %v2481
        %v2483 = vpop.f32.mrb[0].mxu0
        %v2484 = vadd.f32 0.0, %v2483
        %2485 = vdwg.mxu0
        %v2488 = vrot.slane %v2482, 3
        %v2489 = vrot.slane %v2484, 3
        %v2492 = vadd.f32 %v612, %v2488
        %v2493 = vadd.f32 %v614, %v2489
        %v2494 = vtanh.pop %v2492
        %v2495 = vtanh.pop %v2493
        %v2496 = vmul.f32 %v2400, %v2403
        %v2497 = vmul.f32 %v2402, %v2404
        %v2498 = vsub.f32 1.0, %v2400
        %v2499 = vsub.f32 1.0, %v2402
        %v2500 = vmul.f32 %v2498, %v2494
        %v2501 = vmul.f32 %v2499, %v2495
        %v2502 = vadd.f32 %v2496, %v2500
        %v2503 = vadd.f32 %v2497, %v2501
        %v2506 = vrot.slane %v2502, 5
        %v2507 = vrot.slane %v2503, 5
        %2510 = vmatprep.subr.mxu0 %v617
        %2511 = vmatpush1.msra.mxu0 %v616
        %2512 = vmatprep.subr.mxu0 %v621
        %2513 = vmatpush1.msra.mxu0 %v620
        %2514 = vmatprep.subr.mxu0 %v625
        %2515 = vmatpush1.msra.mxu0 %v624
        %2516 = vmatprep.subr.mxu0 %v629
        %2517 = vmatpush1.msra.mxu0 %v628
        %2518 = vmatprep.subr.mxu0 %v633
        %2519 = vmatpush1.msra.mxu0 %v632
        %2520 = vmatprep.subr.mxu0 %v637
        %2521 = vmatpush1.msra.mxu0 %v636
        %2522 = vmatprep.subr.mxu0 %v641
        %2523 = vmatpush1.msra.mxu0 %v640
        %2524 = vmatprep.subr.mxu0 %v645
        %2525 = vmatpush1.msra.mxu0 %v644
        %2526 = vmatprep.subr.mxu0 %v649
        %2527 = vmatpush1.msra.mxu0 %v648
        %2528 = vmatprep.subr.mxu0 %v653
        %2529 = vmatpush1.msra.mxu0 %v652
        %2530 = vmatprep.subr.mxu0 %v657
        %2531 = vmatpush1.msra.mxu0 %v656
        %2532 = vmatprep.subr.mxu0 %v661
        %2533 = vmatpush1.msra.mxu0 %v660
        %2534 = vmatprep.subr.mxu0 %v665
        %2535 = vmatpush1.msra.mxu0 %v664
        %2536 = vmatprep.subr.mxu0 %v669
        %2537 = vmatpush1.msra.mxu0 %v668
        %2538 = vmatprep.subr.mxu0 %v673
        %2539 = vmatpush1.msra.mxu0 %v672
        %2540 = vmatprep.subr.mxu0 %v677
        %2541 = vmatpush1.msra.mxu0 %v676
        %2542 = vmatprep.subr.mxu0 %v681
        %2543 = vmatpush1.msra.mxu0 %v680
        %2544 = vmatprep.subr.mxu0 %v685
        %2545 = vmatpush1.msra.mxu0 %v684
        %2546 = vmatprep.subr.mxu0 %v689
        %2547 = vmatpush1.msra.mxu0 %v688
        %2548 = vmatprep.subr.mxu0 %v693
        %2549 = vmatpush1.msra.mxu0 %v692
        %2550 = vmatprep.subr.mxu0 %v697
        %2551 = vmatpush1.msra.mxu0 %v696
        %2552 = vmatprep.subr.mxu0 %v701
        %2553 = vmatpush1.msra.mxu0 %v700
        %2554 = vmatprep.subr.mxu0 %v705
        %2555 = vmatpush1.msra.mxu0 %v704
        %2556 = vmatprep.subr.mxu0 %v709
        %2557 = vmatpush1.msra.mxu0 %v708
        %2558 = vmatprep.subr.mxu0 %v713
        %2559 = vmatpush1.msra.mxu0 %v712
        %2560 = vmatprep.subr.mxu0 %v717
        %2561 = vmatpush1.msra.mxu0 %v716
        %2562 = vmatprep.subr.mxu0 %v721
        %2563 = vmatpush1.msra.mxu0 %v720
        %2564 = vmatprep.subr.mxu0 %v725
        %2565 = vmatpush1.msra.mxu0 %v724
        %2566 = vmatprep.subr.mxu0 %v729
        %2567 = vmatpush1.msra.mxu0 %v728
        %2568 = vmatprep.subr.mxu0 %v733
        %2569 = vmatpush1.msra.mxu0 %v732
        %2570 = vmatprep.subr.mxu0 %v737
        %2571 = vmatpush1.msra.mxu0 %v736
        %2572 = vmatprep.subr.mxu0 %v741
        %2573 = vmatpush1.msra.mxu0 %v740
        %2574 = vmatprep.mubr.f32.mxu0 %v2507
        %2575 = vmatmul.mubr.f32.gmra.mrb[0].mxu0 %v2506
        %v2576 = vpop.f32.mrb[0].mxu0
        %v2577 = vadd.f32 0.0, %v2576
        %v2578 = vpop.f32.mrb[0].mxu0
        %v2579 = vadd.f32 0.0, %v2578
        %2580 = vdwg.mxu0
        %2581 = vmatprep.subr.mxu0 %v619
        %2582 = vmatpush1.msra.mxu0 %v618
        %2583 = vmatprep.subr.mxu0 %v623
        %2584 = vmatpush1.msra.mxu0 %v622
        %2585 = vmatprep.subr.mxu0 %v627
        %2586 = vmatpush1.msra.mxu0 %v626
        %2587 = vmatprep.subr.mxu0 %v631
        %2588 = vmatpush1.msra.mxu0 %v630
        %2589 = vmatprep.subr.mxu0 %v635
        %2590 = vmatpush1.msra.mxu0 %v634
        %2591 = vmatprep.subr.mxu0 %v639
        %2592 = vmatpush1.msra.mxu0 %v638
        %2593 = vmatprep.subr.mxu0 %v643
        %2594 = vmatpush1.msra.mxu0 %v642
        %2595 = vmatprep.subr.mxu0 %v647
        %2596 = vmatpush1.msra.mxu0 %v646
        %2597 = vmatprep.subr.mxu0 %v651
        %2598 = vmatpush1.msra.mxu0 %v650
        %2599 = vmatprep.subr.mxu0 %v655
        %2600 = vmatpush1.msra.mxu0 %v654
        %2601 = vmatprep.subr.mxu0 %v659
        %2602 = vmatpush1.msra.mxu0 %v658
        %2603 = vmatprep.subr.mxu0 %v663
        %2604 = vmatpush1.msra.mxu0 %v662
        %2605 = vmatprep.subr.mxu0 %v667
        %2606 = vmatpush1.msra.mxu0 %v666
        %2607 = vmatprep.subr.mxu0 %v671
        %2608 = vmatpush1.msra.mxu0 %v670
        %2609 = vmatprep.subr.mxu0 %v675
        %2610 = vmatpush1.msra.mxu0 %v674
        %2611 = vmatprep.subr.mxu0 %v679
        %2612 = vmatpush1.msra.mxu0 %v678
        %2613 = vmatprep.subr.mxu0 %v683
        %2614 = vmatpush1.msra.mxu0 %v682
        %2615 = vmatprep.subr.mxu0 %v687
        %2616 = vmatpush1.msra.mxu0 %v686
        %2617 = vmatprep.subr.mxu0 %v691
        %2618 = vmatpush1.msra.mxu0 %v690
        %2619 = vmatprep.subr.mxu0 %v695
        %2620 = vmatpush1.msra.mxu0 %v694
        %2621 = vmatprep.subr.mxu0 %v699
        %2622 = vmatpush1.msra.mxu0 %v698
        %2623 = vmatprep.subr.mxu0 %v703
        %2624 = vmatpush1.msra.mxu0 %v702
        %2625 = vmatprep.subr.mxu0 %v707
        %2626 = vmatpush1.msra.mxu0 %v706
        %2627 = vmatprep.subr.mxu0 %v711
        %2628 = vmatpush1.msra.mxu0 %v710
        %2629 = vmatprep.subr.mxu0 %v715
        %2630 = vmatpush1.msra.mxu0 %v714
        %2631 = vmatprep.subr.mxu0 %v719
        %2632 = vmatpush1.msra.mxu0 %v718
        %2633 = vmatprep.subr.mxu0 %v723
        %2634 = vmatpush1.msra.mxu0 %v722
        %2635 = vmatprep.subr.mxu0 %v727
        %2636 = vmatpush1.msra.mxu0 %v726
        %2637 = vmatprep.subr.mxu0 %v731
        %2638 = vmatpush1.msra.mxu0 %v730
        %2639 = vmatprep.subr.mxu0 %v735
        %2640 = vmatpush1.msra.mxu0 %v734
        %2641 = vmatprep.subr.mxu0 %v739
        %2642 = vmatpush1.msra.mxu0 %v738
        %2643 = vmatprep.subr.mxu0 %v743
        %2644 = vmatpush1.msra.mxu0 %v742
        %2645 = vmatprep.mubr.f32.mxu0 %v2507
        %2646 = vmatmul.mubr.f32.gmra.mrb[0].mxu0 %v2506
        %v2647 = vpop.f32.mrb[0].mxu0
        %v2648 = vadd.f32 0.0, %v2647
        %v2649 = vpop.f32.mrb[0].mxu0
        %v2650 = vadd.f32 0.0, %v2649
        %2651 = vdwg.mxu0
        %v2656 = vrot.slane %v2577, 2
        %v2657 = vrot.slane %v2579, 2
        %v2658 = vrot.slane %v2648, 2
        %v2659 = vrot.slane %v2650, 2
        %v2664 = vadd.f32 %v454, %v2656
        %v2665 = vadd.f32 %v456, %v2657
        %v2666 = vadd.f32 %v525, %v2658
        %v2667 = vadd.f32 %v527, %v2659
        %v2668 = vxor.u32 %v2664, 2147483648
        %v2669 = vxor.u32 %v2665, 2147483648
        %v2670 = vxor.u32 %v2666, 2147483648
        %v2671 = vxor.u32 %v2667, 2147483648
        %v2672 = vmul.f32 %v2668, 1.442695
        %v2673 = vpow.pop %v2672
        %v2674 = vmul.f32 %v2669, 1.442695
        %v2675 = vpow.pop %v2674
        %v2676 = vmul.f32 %v2670, 1.442695
        %v2677 = vpow.pop %v2676
        %v2678 = vmul.f32 %v2671, 1.442695
        %v2679 = vpow.pop %v2678
        %v2680 = vadd.f32 %v2673, 1.0
        %v2681 = vadd.f32 %v2675, 1.0
        %v2682 = vadd.f32 %v2677, 1.0
        %v2683 = vadd.f32 %v2679, 1.0
        %v2684 = vrcp.pop %v2680
        %v2685 = vmul.f32 1.0, %v2684
        %v2686 = vrcp.pop %v2681
        %v2687 = vmul.f32 1.0, %v2686
        %v2688 = vrcp.pop %v2682
        %v2689 = vmul.f32 1.0, %v2688
        %v2690 = vrcp.pop %v2683
        %v2691 = vmul.f32 1.0, %v2690
        %v2692 = vrot.slane %v2502, 7
        %v2693 = vrot.slane %v2503, 7
        %v2696 = vmul.f32 %v2685, %v2692
        %v2697 = vmul.f32 %v2687, %v2693
        %v2700 = vrot.slane %v2696, 6
        %v2701 = vrot.slane %v2697, 6
        %2704 = vmatprep.subr.mxu0 %v745
        %2705 = vmatpush1.msra.mxu0 %v744
        %2706 = vmatprep.subr.mxu0 %v747
        %2707 = vmatpush1.msra.mxu0 %v746
        %2708 = vmatprep.subr.mxu0 %v749
        %2709 = vmatpush1.msra.mxu0 %v748
        %2710 = vmatprep.subr.mxu0 %v751
        %2711 = vmatpush1.msra.mxu0 %v750
        %2712 = vmatprep.subr.mxu0 %v753
        %2713 = vmatpush1.msra.mxu0 %v752
        %2714 = vmatprep.subr.mxu0 %v755
        %2715 = vmatpush1.msra.mxu0 %v754
        %2716 = vmatprep.subr.mxu0 %v757
        %2717 = vmatpush1.msra.mxu0 %v756
        %2718 = vmatprep.subr.mxu0 %v759
        %2719 = vmatpush1.msra.mxu0 %v758
        %2720 = vmatprep.subr.mxu0 %v761
        %2721 = vmatpush1.msra.mxu0 %v760
        %2722 = vmatprep.subr.mxu0 %v763
        %2723 = vmatpush1.msra.mxu0 %v762
        %2724 = vmatprep.subr.mxu0 %v765
        %2725 = vmatpush1.msra.mxu0 %v764
        %2726 = vmatprep.subr.mxu0 %v767
        %2727 = vmatpush1.msra.mxu0 %v766
        %2728 = vmatprep.subr.mxu0 %v769
        %2729 = vmatpush1.msra.mxu0 %v768
        %2730 = vmatprep.subr.mxu0 %v771
        %2731 = vmatpush1.msra.mxu0 %v770
        %2732 = vmatprep.subr.mxu0 %v773
        %2733 = vmatpush1.msra.mxu0 %v772
        %2734 = vmatprep.subr.mxu0 %v775
        %2735 = vmatpush1.msra.mxu0 %v774
        %2736 = vmatprep.subr.mxu0 %v777
        %2737 = vmatpush1.msra.mxu0 %v776
        %2738 = vmatprep.subr.mxu0 %v779
        %2739 = vmatpush1.msra.mxu0 %v778
        %2740 = vmatprep.subr.mxu0 %v781
        %2741 = vmatpush1.msra.mxu0 %v780
        %2742 = vmatprep.subr.mxu0 %v783
        %2743 = vmatpush1.msra.mxu0 %v782
        %2744 = vmatprep.subr.mxu0 %v785
        %2745 = vmatpush1.msra.mxu0 %v784
        %2746 = vmatprep.subr.mxu0 %v787
        %2747 = vmatpush1.msra.mxu0 %v786
        %2748 = vmatprep.subr.mxu0 %v789
        %2749 = vmatpush1.msra.mxu0 %v788
        %2750 = vmatprep.subr.mxu0 %v791
        %2751 = vmatpush1.msra.mxu0 %v790
        %2752 = vmatprep.subr.mxu0 %v793
        %2753 = vmatpush1.msra.mxu0 %v792
        %2754 = vmatprep.subr.mxu0 %v795
        %2755 = vmatpush1.msra.mxu0 %v794
        %2756 = vmatprep.subr.mxu0 %v797
        %2757 = vmatpush1.msra.mxu0 %v796
        %2758 = vmatprep.subr.mxu0 %v799
        %2759 = vmatpush1.msra.mxu0 %v798
        %2760 = vmatprep.subr.mxu0 %v801
        %2761 = vmatpush1.msra.mxu0 %v800
        %2762 = vmatprep.subr.mxu0 %v803
        %2763 = vmatpush1.msra.mxu0 %v802
        %2764 = vmatprep.subr.mxu0 %v805
        %2765 = vmatpush1.msra.mxu0 %v804
        %2766 = vmatprep.subr.mxu0 %v807
        %2767 = vmatpush1.msra.mxu0 %v806
        %2768 = vmatprep.mubr.f32.mxu0 %v2701
        %2769 = vmatmul.mubr.f32.gmra.mrb[0].mxu0 %v2700
        %v2770 = vpop.f32.mrb[0].mxu0
        %v2771 = vadd.f32 0.0, %v2770
        %v2772 = vpop.f32.mrb[0].mxu0
        %v2773 = vadd.f32 0.0, %v2772
        %2774 = vdwg.mxu0
        %v2777 = vrot.slane %v2771, 2
        %v2778 = vrot.slane %v2773, 2
        %v2781 = vadd.f32 %v612, %v2777
        %v2782 = vadd.f32 %v614, %v2778
        %v2783 = vtanh.pop %v2781
        %v2784 = vtanh.pop %v2782
        %v2785 = vmul.f32 %v2689, %v2692
        %v2786 = vmul.f32 %v2691, %v2693
        %v2787 = vsub.f32 1.0, %v2689
        %v2788 = vsub.f32 1.0, %v2691
        %v2789 = vmul.f32 %v2787, %v2783
        %v2790 = vmul.f32 %v2788, %v2784
        %v2791 = vadd.f32 %v2785, %v2789
        %v2792 = vadd.f32 %v2786, %v2790
        %v2795 = vrot.slane %v2791, 6
        %v2796 = vrot.slane %v2792, 6
        %2799 = vmatprep.subr.mxu0 %v617
        %2800 = vmatpush1.msra.mxu0 %v616
        %2801 = vmatprep.subr.mxu0 %v621
        %2802 = vmatpush1.msra.mxu0 %v620
        %2803 = vmatprep.subr.mxu0 %v625
        %2804 = vmatpush1.msra.mxu0 %v624
        %2805 = vmatprep.subr.mxu0 %v629
        %2806 = vmatpush1.msra.mxu0 %v628
        %2807 = vmatprep.subr.mxu0 %v633
        %2808 = vmatpush1.msra.mxu0 %v632
        %2809 = vmatprep.subr.mxu0 %v637
        %2810 = vmatpush1.msra.mxu0 %v636
        %2811 = vmatprep.subr.mxu0 %v641
        %2812 = vmatpush1.msra.mxu0 %v640
        %2813 = vmatprep.subr.mxu0 %v645
        %2814 = vmatpush1.msra.mxu0 %v644
        %2815 = vmatprep.subr.mxu0 %v649
        %2816 = vmatpush1.msra.mxu0 %v648
        %2817 = vmatprep.subr.mxu0 %v653
        %2818 = vmatpush1.msra.mxu0 %v652
        %2819 = vmatprep.subr.mxu0 %v657
        %2820 = vmatpush1.msra.mxu0 %v656
        %2821 = vmatprep.subr.mxu0 %v661
        %2822 = vmatpush1.msra.mxu0 %v660
        %2823 = vmatprep.subr.mxu0 %v665
        %2824 = vmatpush1.msra.mxu0 %v664
        %2825 = vmatprep.subr.mxu0 %v669
        %2826 = vmatpush1.msra.mxu0 %v668
        %2827 = vmatprep.subr.mxu0 %v673
        %2828 = vmatpush1.msra.mxu0 %v672
        %2829 = vmatprep.subr.mxu0 %v677
        %2830 = vmatpush1.msra.mxu0 %v676
        %2831 = vmatprep.subr.mxu0 %v681
        %2832 = vmatpush1.msra.mxu0 %v680
        %2833 = vmatprep.subr.mxu0 %v685
        %2834 = vmatpush1.msra.mxu0 %v684
        %2835 = vmatprep.subr.mxu0 %v689
        %2836 = vmatpush1.msra.mxu0 %v688
        %2837 = vmatprep.subr.mxu0 %v693
        %2838 = vmatpush1.msra.mxu0 %v692
        %2839 = vmatprep.subr.mxu0 %v697
        %2840 = vmatpush1.msra.mxu0 %v696
        %2841 = vmatprep.subr.mxu0 %v701
        %2842 = vmatpush1.msra.mxu0 %v700
        %2843 = vmatprep.subr.mxu0 %v705
        %2844 = vmatpush1.msra.mxu0 %v704
        %2845 = vmatprep.subr.mxu0 %v709
        %2846 = vmatpush1.msra.mxu0 %v708
        %2847 = vmatprep.subr.mxu0 %v713
        %2848 = vmatpush1.msra.mxu0 %v712
        %2849 = vmatprep.subr.mxu0 %v717
        %2850 = vmatpush1.msra.mxu0 %v716
        %2851 = vmatprep.subr.mxu0 %v721
        %2852 = vmatpush1.msra.mxu0 %v720
        %2853 = vmatprep.subr.mxu0 %v725
        %2854 = vmatpush1.msra.mxu0 %v724
        %2855 = vmatprep.subr.mxu0 %v729
        %2856 = vmatpush1.msra.mxu0 %v728
        %2857 = vmatprep.subr.mxu0 %v733
        %2858 = vmatpush1.msra.mxu0 %v732
        %2859 = vmatprep.subr.mxu0 %v737
        %2860 = vmatpush1.msra.mxu0 %v736
        %2861 = vmatprep.subr.mxu0 %v741
        %2862 = vmatpush1.msra.mxu0 %v740
        %2863 = vmatprep.mubr.f32.mxu0 %v2796
        %2864 = vmatmul.mubr.f32.gmra.mrb[0].mxu0 %v2795
        %v2865 = vpop.f32.mrb[0].mxu0
        %v2866 = vadd.f32 0.0, %v2865
        %v2867 = vpop.f32.mrb[0].mxu0
        %v2868 = vadd.f32 0.0, %v2867
        %2869 = vdwg.mxu0
        %2870 = vmatprep.subr.mxu0 %v619
        %2871 = vmatpush1.msra.mxu0 %v618
        %2872 = vmatprep.subr.mxu0 %v623
        %2873 = vmatpush1.msra.mxu0 %v622
        %2874 = vmatprep.subr.mxu0 %v627
        %2875 = vmatpush1.msra.mxu0 %v626
        %2876 = vmatprep.subr.mxu0 %v631
        %2877 = vmatpush1.msra.mxu0 %v630
        %2878 = vmatprep.subr.mxu0 %v635
        %2879 = vmatpush1.msra.mxu0 %v634
        %2880 = vmatprep.subr.mxu0 %v639
        %2881 = vmatpush1.msra.mxu0 %v638
        %2882 = vmatprep.subr.mxu0 %v643
        %2883 = vmatpush1.msra.mxu0 %v642
        %2884 = vmatprep.subr.mxu0 %v647
        %2885 = vmatpush1.msra.mxu0 %v646
        %2886 = vmatprep.subr.mxu0 %v651
        %2887 = vmatpush1.msra.mxu0 %v650
        %2888 = vmatprep.subr.mxu0 %v655
        %2889 = vmatpush1.msra.mxu0 %v654
        %2890 = vmatprep.subr.mxu0 %v659
        %2891 = vmatpush1.msra.mxu0 %v658
        %2892 = vmatprep.subr.mxu0 %v663
        %2893 = vmatpush1.msra.mxu0 %v662
        %2894 = vmatprep.subr.mxu0 %v667
        %2895 = vmatpush1.msra.mxu0 %v666
        %2896 = vmatprep.subr.mxu0 %v671
        %2897 = vmatpush1.msra.mxu0 %v670
        %2898 = vmatprep.subr.mxu0 %v675
        %2899 = vmatpush1.msra.mxu0 %v674
        %2900 = vmatprep.subr.mxu0 %v679
        %2901 = vmatpush1.msra.mxu0 %v678
        %2902 = vmatprep.subr.mxu0 %v683
        %2903 = vmatpush1.msra.mxu0 %v682
        %2904 = vmatprep.subr.mxu0 %v687
        %2905 = vmatpush1.msra.mxu0 %v686
        %2906 = vmatprep.subr.mxu0 %v691
        %2907 = vmatpush1.msra.mxu0 %v690
        %2908 = vmatprep.subr.mxu0 %v695
        %2909 = vmatpush1.msra.mxu0 %v694
        %2910 = vmatprep.subr.mxu0 %v699
        %2911 = vmatpush1.msra.mxu0 %v698
        %2912 = vmatprep.subr.mxu0 %v703
        %2913 = vmatpush1.msra.mxu0 %v702
        %2914 = vmatprep.subr.mxu0 %v707
        %2915 = vmatpush1.msra.mxu0 %v706
        %2916 = vmatprep.subr.mxu0 %v711
        %2917 = vmatpush1.msra.mxu0 %v710
        %2918 = vmatprep.subr.mxu0 %v715
        %2919 = vmatpush1.msra.mxu0 %v714
        %2920 = vmatprep.subr.mxu0 %v719
        %2921 = vmatpush1.msra.mxu0 %v718
        %2922 = vmatprep.subr.mxu0 %v723
        %2923 = vmatpush1.msra.mxu0 %v722
        %2924 = vmatprep.subr.mxu0 %v727
        %2925 = vmatpush1.msra.mxu0 %v726
        %2926 = vmatprep.subr.mxu0 %v731
        %2927 = vmatpush1.msra.mxu0 %v730
        %2928 = vmatprep.subr.mxu0 %v735
        %2929 = vmatpush1.msra.mxu0 %v734
        %2930 = vmatprep.subr.mxu0 %v739
        %2931 = vmatpush1.msra.mxu0 %v738
        %2932 = vmatprep.subr.mxu0 %v743
        %2933 = vmatpush1.msra.mxu0 %v742
        %2934 = vmatprep.mubr.f32.mxu0 %v2796
        %2935 = vmatmul.mubr.f32.gmra.mrb[0].mxu0 %v2795
        %v2936 = vpop.f32.mrb[0].mxu0
        %v2937 = vadd.f32 0.0, %v2936
        %v2938 = vpop.f32.mrb[0].mxu0
        %v2939 = vadd.f32 0.0, %v2938
        %2940 = vdwg.mxu0
        %v2945 = vrot.slane %v2866, 1
        %v2946 = vrot.slane %v2868, 1
        %v2947 = vrot.slane %v2937, 1
        %v2948 = vrot.slane %v2939, 1
        %v2953 = vadd.f32 %v454, %v2945
        %v2954 = vadd.f32 %v456, %v2946
        %v2955 = vadd.f32 %v525, %v2947
        %v2956 = vadd.f32 %v527, %v2948
        %v2957 = vxor.u32 %v2953, 2147483648
        %v2958 = vxor.u32 %v2954, 2147483648
        %v2959 = vxor.u32 %v2955, 2147483648
        %v2960 = vxor.u32 %v2956, 2147483648
        %v2961 = vmul.f32 %v2957, 1.442695
        %v2962 = vpow.pop %v2961
        %v2963 = vmul.f32 %v2958, 1.442695
        %v2964 = vpow.pop %v2963
        %v2965 = vmul.f32 %v2959, 1.442695
        %v2966 = vpow.pop %v2965
        %v2967 = vmul.f32 %v2960, 1.442695
        %v2968 = vpow.pop %v2967
        %v2969 = vadd.f32 %v2962, 1.0
        %v2970 = vadd.f32 %v2964, 1.0
        %v2971 = vadd.f32 %v2966, 1.0
        %v2972 = vadd.f32 %v2968, 1.0
        %v2973 = vrcp.pop %v2969
        %v2974 = vmul.f32 1.0, %v2973
        %v2975 = vrcp.pop %v2970
        %v2976 = vmul.f32 1.0, %v2975
        %v2977 = vrcp.pop %v2971
        %v2978 = vmul.f32 1.0, %v2977
        %v2979 = vrcp.pop %v2972
        %v2980 = vmul.f32 1.0, %v2979
        %v2981 = vrot.slane %v2791, 7
        %v2982 = vrot.slane %v2792, 7
        %v2985 = vmul.f32 %v2974, %v2981
        %v2986 = vmul.f32 %v2976, %v2982
        %v2989 = vrot.slane %v2985, 7
        %v2990 = vrot.slane %v2986, 7
        %2993 = vmatprep.subr.mxu0 %v745
        %2994 = vmatpush1.msra.mxu0 %v744
        %2995 = vmatprep.subr.mxu0 %v747
        %2996 = vmatpush1.msra.mxu0 %v746
        %2997 = vmatprep.subr.mxu0 %v749
        %2998 = vmatpush1.msra.mxu0 %v748
        %2999 = vmatprep.subr.mxu0 %v751
        %3000 = vmatpush1.msra.mxu0 %v750
        %3001 = vmatprep.subr.mxu0 %v753
        %3002 = vmatpush1.msra.mxu0 %v752
        %3003 = vmatprep.subr.mxu0 %v755
        %3004 = vmatpush1.msra.mxu0 %v754
        %3005 = vmatprep.subr.mxu0 %v757
        %3006 = vmatpush1.msra.mxu0 %v756
        %3007 = vmatprep.subr.mxu0 %v759
        %3008 = vmatpush1.msra.mxu0 %v758
        %3009 = vmatprep.subr.mxu0 %v761
        %3010 = vmatpush1.msra.mxu0 %v760
        %3011 = vmatprep.subr.mxu0 %v763
        %3012 = vmatpush1.msra.mxu0 %v762
        %3013 = vmatprep.subr.mxu0 %v765
        %3014 = vmatpush1.msra.mxu0 %v764
        %3015 = vmatprep.subr.mxu0 %v767
        %3016 = vmatpush1.msra.mxu0 %v766
        %3017 = vmatprep.subr.mxu0 %v769
        %3018 = vmatpush1.msra.mxu0 %v768
        %3019 = vmatprep.subr.mxu0 %v771
        %3020 = vmatpush1.msra.mxu0 %v770
        %3021 = vmatprep.subr.mxu0 %v773
        %3022 = vmatpush1.msra.mxu0 %v772
        %3023 = vmatprep.subr.mxu0 %v775
        %3024 = vmatpush1.msra.mxu0 %v774
        %3025 = vmatprep.subr.mxu0 %v777
        %3026 = vmatpush1.msra.mxu0 %v776
        %3027 = vmatprep.subr.mxu0 %v779
        %3028 = vmatpush1.msra.mxu0 %v778
        %3029 = vmatprep.subr.mxu0 %v781
        %3030 = vmatpush1.msra.mxu0 %v780
        %3031 = vmatprep.subr.mxu0 %v783
        %3032 = vmatpush1.msra.mxu0 %v782
        %3033 = vmatprep.subr.mxu0 %v785
        %3034 = vmatpush1.msra.mxu0 %v784
        %3035 = vmatprep.subr.mxu0 %v787
        %3036 = vmatpush1.msra.mxu0 %v786
        %3037 = vmatprep.subr.mxu0 %v789
        %3038 = vmatpush1.msra.mxu0 %v788
        %3039 = vmatprep.subr.mxu0 %v791
        %3040 = vmatpush1.msra.mxu0 %v790
        %3041 = vmatprep.subr.mxu0 %v793
        %3042 = vmatpush1.msra.mxu0 %v792
        %3043 = vmatprep.subr.mxu0 %v795
        %3044 = vmatpush1.msra.mxu0 %v794
        %3045 = vmatprep.subr.mxu0 %v797
        %3046 = vmatpush1.msra.mxu0 %v796
        %3047 = vmatprep.subr.mxu0 %v799
        %3048 = vmatpush1.msra.mxu0 %v798
        %3049 = vmatprep.subr.mxu0 %v801
        %3050 = vmatpush1.msra.mxu0 %v800
        %3051 = vmatprep.subr.mxu0 %v803
        %3052 = vmatpush1.msra.mxu0 %v802
        %3053 = vmatprep.subr.mxu0 %v805
        %3054 = vmatpush1.msra.mxu0 %v804
        %3055 = vmatprep.subr.mxu0 %v807
        %3056 = vmatpush1.msra.mxu0 %v806
        %3057 = vmatprep.mubr.f32.mxu0 %v2990
        %3058 = vmatmul.mubr.f32.gmra.mrb[0].mxu0 %v2989
        %v3059 = vpop.f32.mrb[0].mxu0
        %v3060 = vadd.f32 0.0, %v3059
        %v3061 = vpop.f32.mrb[0].mxu0
        %v3062 = vadd.f32 0.0, %v3061
        %3063 = vdwg.mxu0
        %v3066 = vrot.slane %v3060, 1
        %v3067 = vrot.slane %v3062, 1
        %v3070 = vadd.f32 %v612, %v3066
        %v3071 = vadd.f32 %v614, %v3067
        %v3072 = vtanh.pop %v3070
        %v3073 = vtanh.pop %v3071
        %v3074 = vmul.f32 %v2978, %v2981
        %v3075 = vmul.f32 %v2980, %v2982
        %v3076 = vsub.f32 1.0, %v2978
        %v3077 = vsub.f32 1.0, %v2980
        %v3078 = vmul.f32 %v3076, %v3072
        %v3079 = vmul.f32 %v3077, %v3073
        %v3080 = vadd.f32 %v3074, %v3078
        %v3081 = vadd.f32 %v3075, %v3079
        %v3084 = vcombine.high %v3080, %v3081
        %v3086 = vunpack.c.l.s4 1966171168
        %v3087 = vunpack.c.0.s8 %v3086
        %v3088 = vlaneseq
        %v3089 = vshrl.u32 %v3088, 7
        %v3090 = vsub.s32 %v3087, %v3089
        %v3091 = vrot.slane %v3084, %v3090
        %v3092 = vcombine.high %v3091, %v3091
        %v3094 = vunpack.c.l.s4 1966171168
        %v3095 = vunpack.c.0.s8 %v3094
        %v3096 = vlaneseq
        %v3097 = vshrl.u32 %v3096, 7
        %v3098 = vsub.s32 %v3095, %v3097
        %v3099 = vrot.slane %v3092, %v3098
        %v3100 = vcombine.high %v3099, %v3099
        %v3102 = vlaneseq
        %vm3103 = vcmp.ge.s32.totalorder %v3102, 0
        %vm3104 = vcmp.lt.s32.totalorder %v3102, 256
        %vm3105 = vmand %vm3103, %vm3104
        %3106 = vst.msk [vmem:[%s351] sm:$0x3] %vm3105, %v3100
        %s3107 = sand.u32 %s186, 1
        %s3108 = scalar_lea.sflag [#allocation4], %s3107
        %s3109 = sand.u32 %s186, 1
        %s3110 = smul.addr %s3109, 2
        %s3111 = scalar_lea.vmem [#allocation11], %s3110
        // Predicated region
        $region69: #{tpu_custom_call.1} parent=47 // pred_check
          %p3112 = pneg %p196
        $region70: #{tpu_custom_call.1} parent=47 // pred_check_branch
          %3114 = sbr.rel (%p3112) target = $region72
        $region71: #{tpu_custom_call.1} parent=47 // pred_region
          %s3116 = ssub.s32 32, 32
          %3117 = vsyncadd %s3108, %s3116
          %s3118 = smul.addr %s26, 2
          %s3119 = smul.addr %s3118, 16
          %s3120 = scalar_lea.hbm %s7, %s3119
          %s3122 = sshll.u32 %s3111, 4
          %s3123 = int_to_ptr.vmem [resolvable:$true] %s3122
          %3125 = dma.vmem_to_hbm [thread:$0]  %s3123, 32, %s3120, %s3108
        $region72: #{tpu_custom_call.1} parent=47 // pred_fallthru
          _
      $region48: #{tpu_custom_call.1} parent=5 // pred_fallthru
        _
      %p3126 = scmp.le.s32.totalorder 2, %s21
      // Predicated region
      $region73: #{tpu_custom_call.1} parent=5 // pred_check
        %p3127 = pneg %p3126
      $region74: #{tpu_custom_call.1} parent=5 // pred_check_branch
        %3129 = sbr.rel (%p3127) target = $region76
      $region75: #{tpu_custom_call.1} parent=5 // pred_region
        %s3130 = ssub.s32 %s21, 2
        // Predicated region
        $region77: #{tpu_custom_call.1} parent=75 // pred_check
          %p3131 = pneg %p202
        $region78: #{tpu_custom_call.1} parent=75 // pred_check_branch
          %3133 = sbr.rel (%p3131) target = $region80
        $region79: #{tpu_custom_call.1} parent=75 // pred_region
          %s3134 = sand.u32 %s187, 1
          %s3135 = scalar_lea.sflag [#allocation4], %s3134
          %s3136 = sand.u32 %s187, 1
          %s3137 = smul.addr %s3136, 2
          %s3138 = scalar_lea.vmem [#allocation11], %s3137
          %3139 = dma.done %s3135, 32
        $region80: #{tpu_custom_call.1} parent=75 // pred_fallthru
          _
      $region76: #{tpu_custom_call.1} parent=5 // pred_fallthru
        _
    $region6: #{tpu_custom_call.1} parent=1 // loop_footer
      %s25 = sadd.s32 1, %s21
    $region7: #{tpu_custom_call.1} parent=1 // loop_footer_branch
      %20 = sbr.rel target = $region3
    $region8: #{tpu_custom_call.1} parent=1 // loop_exit
      _
    %3140 = vsyncpa [#allocation3], 1
    %s3141 = scalar_lea.sflag [#allocation3], 1
    %3142 = vsyncpa %s3141, 1
    %3143 = vsyncpa [#allocation6], 1
    %3144 = vsyncpa [#allocation9], 1
    %3145 = vsyncpa [#allocation4], 1
    %s3146 = scalar_lea.sflag [#allocation4], 1
    %3147 = vsyncpa %s3146, 1

</llo_original>
